<compile_context>
chip_gen: v7x
topology: tpu7x:2x2x1
jax: 0.10.0
libtpu: 0.0.40
codegen_flags: <defaults>
</compile_context>

<pallas_src>
import functools
import math

import jax
import jax.numpy as jnp
import numpy as np
from jax.experimental import pallas as pl
from jax.experimental.pallas import tpu as pltpu

# ----------------------------- model config ----------------------------------
NC = 3                                    # number of classes
NO = NC + 5                               # outputs per anchor
ANCHORS = [[10., 13., 16., 30.],          # level 0 (stride 4)
           [30., 61., 62., 45.]]          # level 1 (stride 8)
NL = len(ANCHORS)
NA = len(ANCHORS[0]) // 2
STRIDES = [4.0, 8.0]                      # from the 256x256 dummy forward in __init__
# Detect's anchor_grid == (anchors/stride)*stride == original pixel anchors.
ANCHOR_GRID_PY = tuple(tuple((float(ANCHORS[i][2 * a]), float(ANCHORS[i][2 * a + 1]))
                             for a in range(NA)) for i in range(NL))
_ANCH = jnp.asarray(ANCHORS, jnp.float32).reshape(NL, NA, 2)
_STR = jnp.asarray(STRIDES, jnp.float32).reshape(NL, 1, 1)
ANCHOR_GRID = (_ANCH / _STR) * _STR       # used by the pure-XLA reference

BN_EPS = 1e-3                             # initialize_weights sets eps=0.001
C3_HID = 8                                # C3 hidden channels (16 * 0.5)
SPPF_HID = 16                             # SPPF hidden channels (32 // 2)
OUT_LANES = 128                           # lane-dense packed-output width
NEG = -1e30


def _round_up(v, m):
    return (v + m - 1) // m * m


# ----------------------------- operand slab packing ---------------------------
class SlabPacker:
    """Packs many small 2-D operands into one (rows, width) slab with static offsets."""

    def __init__(self, width, align=8):
        self.width = width
        self.align = align
        self._pieces = []
        self.offsets = {}          # name -> (row_offset, rows, cols)
        self._row = 0

    def add(self, name, arr):
        arr = np.asarray(arr, np.float32)
        assert arr.ndim == 2 and arr.shape[1] <= self.width, (name, arr.shape, self.width)
        self.offsets[name] = (self._row, arr.shape[0], arr.shape[1])
        self._pieces.append(arr)
        self._row += _round_up(arr.shape[0], self.align)

    def finalize(self, dtype):
        rows = max(_round_up(self._row, self.align), self.align)
        slab = np.zeros((rows, self.width), np.float32)
        for name, arr in zip(self.offsets, self._pieces):
            r0, r, c = self.offsets[name]
            slab[r0:r0 + r, :c] = arr
        return jnp.asarray(slab).astype(dtype), dict(self.offsets)


def _tap_selectors(nb, hin, win, hout, wout, stride, pad=1, k=3):
    """Batch-block-diagonal 0/1 selector matrices, one (nb*hout*wout, nb*hin*win) per tap."""
    sin, sout = hin * win, hout * wout
    g = np.zeros((k * k, nb * sout, nb * sin), np.float32)
    for di in range(k):
        for dj in range(k):
            t = di * k + dj
            for b in range(nb):
                for oy in range(hout):
                    for ox in range(wout):
                        iy, ix = oy * stride - pad + di, ox * stride - pad + dj
                        if 0 <= iy < hin and 0 <= ix < win:
                            g[t, b * sout + oy * wout + ox, b * sin + iy * win + ix] = 1.0
    return g


def _pool_mask(nb, h, wd, k=5, pad=2):
    """Additive mask m[p_in, p_out]: 0 inside the kxk window (same sample), -1e30 outside."""
    s = h * wd
    m = np.full((nb * s, nb * s), NEG, np.float32)
    for b in range(nb):
        for oy in range(h):
            for ox in range(wd):
                for iy in range(h):
                    for ix in range(wd):
                        if (oy - pad) <= iy <= (oy - pad + k - 1) and \
                           (ox - pad) <= ix <= (ox - pad + k - 1):
                            m[b * s + iy * wd + ix, b * s + oy * wd + ox] = 0.0
    return m


def _decode_constants(nb, ny, nx, stride, anchors_level):
    """Constants so that decoded = (sig*Q + L)*sig + K  (YOLOv5 Detect eval decode)."""
    q = np.zeros((1, NA * NO), np.float32)
    l = np.zeros((1, NA * NO), np.float32)
    k = np.zeros((nb * ny * nx, NA * NO), np.float32)
    for a in range(NA):
        aw, ah = anchors_level[a]
        q[0, a * NO + 2] = 4.0 * aw                 # wh: (2*sig)^2 * anchor
        q[0, a * NO + 3] = 4.0 * ah
        l[0, a * NO + 0] = 2.0 * stride             # xy: (2*sig + g - 0.5) * stride
        l[0, a * NO + 1] = 2.0 * stride
        l[0, a * NO + 4:a * NO + NO] = 1.0          # conf/cls: sig
    for b in range(nb):
        for gy in range(ny):
            for gx in range(nx):
                r = b * ny * nx + gy * nx + gx
                for a in range(NA):
                    k[r, a * NO + 0] = (gx - 0.5) * stride
                    k[r, a * NO + 1] = (gy - 0.5) * stride
    return q, l, k


def _w1x1(conv):                     # 1x1 conv weight -> (cin, cout)
    w = np.asarray(conv['w'])
    return w.reshape(w.shape[2], w.shape[3])


def _wflat3x3(conv):                 # 3x3 conv weight -> (cin, 9*cout), tap t = di*3+dj
    w = np.asarray(conv['w'])
    cin, cout = w.shape[2], w.shape[3]
    return w.reshape(9, cin, cout).transpose(1, 0, 2).reshape(cin, 9 * cout)


def _bias_row(b):
    return np.asarray(b).reshape(1, -1)


def pack_slabs(params, in_shape):
    n, c, h, w_ = in_shape
    hc0, wc0 = h // 2, w_ // 2
    hc1, wc1 = hc0 // 2, wc0 // 2
    hc3, wc3 = hc1 // 2, wc1 // 2
    k0pad = _round_up(9 * c, 128)
    p = params

    # ---------------- bf16 weight slab ----------------
    w0 = np.asarray(p['l0']['w']).reshape(9 * c, -1)
    w0pad = np.zeros((k0pad, w0.shape[1]), np.float32)
    w0pad[:9 * c] = w0                                   # input is lane-padded to k0pad
    cv3 = _w1x1(p['l2']['cv3'])
    s2 = _w1x1(p['l4']['cv2'])
    wb_items = [
        ('w0', w0pad),
        ('w1', _wflat3x3(p['l1'])),
        ('c3_cv1', _w1x1(p['l2']['cv1'])),
        ('c3_m_cv1', _w1x1(p['l2']['m0_cv1'])),
        ('c3_m_cv2', _wflat3x3(p['l2']['m0_cv2'])),
        ('c3_cv2', _w1x1(p['l2']['cv2'])),
        ('c3_cv3_a', cv3[0:C3_HID]),                     # rows for the bottleneck branch
        ('c3_cv3_b', cv3[C3_HID:2 * C3_HID]),            # rows for the cv2 branch
        ('w3', _wflat3x3(p['l3'])),
        ('sppf_cv1', _w1x1(p['l4']['cv1'])),
        ('sppf_cv2_0', s2[0:SPPF_HID]),
        ('sppf_cv2_1', s2[SPPF_HID:2 * SPPF_HID]),
        ('sppf_cv2_2', s2[2 * SPPF_HID:3 * SPPF_HID]),
        ('sppf_cv2_3', s2[3 * SPPF_HID:4 * SPPF_HID]),
        ('det0', _w1x1(p['l5']['m'][0])),
        ('det1', _w1x1(p['l5']['m'][1])),
    ]
    wb_pack = SlabPacker(max(a.shape[1] for _, a in wb_items), align=16)
    for name, arr in wb_items:
        wb_pack.add(name, arr)
    wb_slab, ow = wb_pack.finalize(jnp.bfloat16)

    # ---------------- bf16 tap-selector slab (one piece per tap, 16-row aligned) ----------
    sel_items = []
    for prefix, g in (('G1', _tap_selectors(n, hc0, wc0, hc1, wc1, 2)),
                      ('Gm', _tap_selectors(n, hc1, wc1, hc1, wc1, 1)),
                      ('G3', _tap_selectors(n, hc1, wc1, hc3, wc3, 2))):
        for t in range(9):
            sel_items.append((f'{prefix}_{t}', g[t]))
    sel_pack = SlabPacker(max(a.shape[1] for _, a in sel_items), align=16)
    for name, arr in sel_items:
        sel_pack.add(name, arr)
    sel_slab, osel = sel_pack.finalize(jnp.bfloat16)

    # ---------------- f32 bias + decode-constant slab ----------------
    q0, l0, k0 = _decode_constants(n, hc1, wc1, STRIDES[0], ANCHOR_GRID_PY[0])
    q1, l1, k1 = _decode_constants(n, hc3, wc3, STRIDES[1], ANCHOR_GRID_PY[1])
    cst_items = [
        ('b0', _bias_row(p['l0']['b'])),
        ('b1', _bias_row(p['l1']['b'])),
        ('b_c3_cv1', _bias_row(p['l2']['cv1']['b'])),
        ('b_c3_m_cv1', _bias_row(p['l2']['m0_cv1']['b'])),
        ('b_c3_m_cv2', _bias_row(p['l2']['m0_cv2']['b'])),
        ('b_c3_cv2', _bias_row(p['l2']['cv2']['b'])),
        ('b_c3_cv3', _bias_row(p['l2']['cv3']['b'])),
        ('b3', _bias_row(p['l3']['b'])),
        ('b_sppf_cv1', _bias_row(p['l4']['cv1']['b'])),
        ('b_sppf_cv2', _bias_row(p['l4']['cv2']['b'])),
        ('b_det0', _bias_row(p['l5']['m'][0]['b'])),
        ('b_det1', _bias_row(p['l5']['m'][1]['b'])),
        ('Q0', q0), ('L0', l0), ('Q1', q1), ('L1', l1),
        ('pmask', _pool_mask(n, hc3, wc3)),
        ('K0', k0), ('K1', k1),
    ]
    cst_pack = SlabPacker(max(a.shape[1] for _, a in cst_items), align=8)
    for name, arr in cst_items:
        cst_pack.add(name, arr)
    cst_slab, oc = cst_pack.finalize(jnp.float32)

    return (wb_slab, ow), (sel_slab, osel), (cst_slab, oc)


# ----------------------------- the fused kernel -------------------------------
def _fused_forward_kernel(x0_ref, wb_ref, sel_ref, cst_ref, out_ref,
                          *, ow, osel, oc, r0, r1):
    f32, bf16 = jnp.float32, jnp.bfloat16

    def w(name):                                  # bf16 weight piece (static slice)
        a, r, c = ow[name]
        return wb_ref[a:a + r, 0:c]

    def sel(name):                                # bf16 selector piece
        a, r, c = osel[name]
        return sel_ref[a:a + r, 0:c]

    def cst(name):                                # f32 bias / constant piece
        a, r, c = oc[name]
        return cst_ref[a:a + r, 0:c]

    def mm(a, b):                                 # bf16 MXU matmul, f32 accumulate
        return jnp.dot(a.astype(bf16), b.astype(bf16), preferred_element_type=f32)

    def silu(v):
        return v * jax.nn.sigmoid(v)

    def conv1x1(x, wn, bn):
        return silu(mm(x, w(wn)) + cst(bn))

    def conv3x3(x, wn, gpref, bn):
        # wide tap matmul: Y = X @ W_flat (cin, 9*cout), then 9 selector matmuls, chained adds
        c9 = ow[wn][2]
        cout = c9 // 9
        y = mm(x, w(wn))
        acc = mm(sel(gpref + '_0'), y[:, 0:cout])
        for t in range(1, 9):
            acc = acc + mm(sel(f'{gpref}_{t}'), y[:, t * cout:(t + 1) * cout])
        return silu(acc + cst(bn))

    # ---------------- backbone ----------------
    h0 = silu(mm(x0_ref[...], w('w0')) + cst('b0'))        # Conv0 (input already im2col'd)
    h1 = conv3x3(h0, 'w1', 'G1', 'b1')                     # Conv1 3x3 s2

    # C3(16->16, n=1, shortcut)
    ya = conv1x1(h1, 'c3_cv1', 'b_c3_cv1')
    bk = conv1x1(ya, 'c3_m_cv1', 'b_c3_m_cv1')
    bk = conv3x3(bk, 'c3_m_cv2', 'Gm', 'b_c3_m_cv2')
    ya = ya + bk                                           # residual add
    yb = conv1x1(h1, 'c3_cv2', 'b_c3_cv2')
    # cv3 on channel-concat([ya, yb]) == row-split weight matmuls (no concat)
    h2 = silu(mm(ya, w('c3_cv3_a')) + mm(yb, w('c3_cv3_b')) + cst('b_c3_cv3'))   # -> Detect P0

    h3 = conv3x3(h2, 'w3', 'G3', 'b3')                     # Conv3 3x3 s2

    # SPPF(32->32, k5): masked spatial max (batch-block-diagonal mask), 3x cascaded
    xc = conv1x1(h3, 'sppf_cv1', 'b_sppf_cv1')
    pmt = cst('pmask')                                     # (r1, r1) additive window mask

    def pool5(v):
        return jnp.max(v[:, None, :] + pmt[:, :, None], axis=0)

    p1 = pool5(xc)
    p2 = pool5(p1)
    p3 = pool5(p2)
    h4 = silu(mm(xc, w('sppf_cv2_0')) + mm(p1, w('sppf_cv2_1'))
              + mm(p2, w('sppf_cv2_2')) + mm(p3, w('sppf_cv2_3'))
              + cst('b_sppf_cv2'))                         # -> Detect P1

    # ---------------- Detect conv + fused decode (2 FMAs, constants precomputed) -------
    t0 = mm(h2, w('det0')) + cst('b_det0')                 # (r0, NA*NO) raw logits
    t1 = mm(h4, w('det1')) + cst('b_det1')                 # (r1, NA*NO)
    s0 = jax.nn.sigmoid(t0)
    s1 = jax.nn.sigmoid(t1)
    z0 = (s0 * cst('Q0') + cst('L0')) * s0 + cst('K0')
    z1 = (s1 * cst('Q1') + cst('L1')) * s1 + cst('K1')

    # lane-dense packed output block: cols [decoded | raw | zero pad], one dense writeback DMA
    c = NA * NO
    out_ref[...] = jnp.zeros(out_ref.shape, f32)
    out_ref[0:r0, 0:c] = z0
    out_ref[0:r0, c:2 * c] = t0
    out_ref[r0:r0 + r1, 0:c] = z1
    out_ref[r0:r0 + r1, c:2 * c] = t1


# ----------------------------- forward builder ---------------------------------
def build_forward(in_shape, params):
    n, c, h, w_ = in_shape
    assert h % 8 == 0 and w_ % 8 == 0, "three stride-2 convs need H, W divisible by 8"
    hc0, wc0 = h // 2, w_ // 2
    hc1, wc1 = hc0 // 2, wc0 // 2
    hc3, wc3 = hc1 // 2, wc1 // 2
    s0, s1 = hc1 * wc1, hc3 * wc3
    r0, r1 = n * s0, n * s1
    k0pad = _round_up(9 * c, 128)
    rows_out = _round_up(r0 + r1, 8)
    assert 2 * NA * NO <= OUT_LANES

    (wb_slab, ow), (sel_slab, osel), (cst_slab, oc) = pack_slabs(params, in_shape)

    kernel = functools.partial(_fused_forward_kernel,
                               ow=ow, osel=osel, oc=oc, r0=r0, r1=r1)

    def full_spec(shape):
        nd = len(shape)
        return pl.BlockSpec(tuple(shape), lambda i, _nd=nd: (0,) * _nd)

    fused = pl.pallas_call(
        kernel,
        grid=(1,),                                  # batch folded into rows -> one grid step
        in_specs=[full_spec((n * hc0 * wc0, k0pad)),
                  full_spec(wb_slab.shape),
                  full_spec(sel_slab.shape),
                  full_spec(cst_slab.shape)],
        out_specs=full_spec((rows_out, OUT_LANES)),
        out_shape=jax.ShapeDtypeStruct((rows_out, OUT_LANES), jnp.float32),
        compiler_params=pltpu.CompilerParams(dimension_semantics=("arbitrary",)),
    )
    # TODO(synk): for larger batch / resolution, chunk the folded rows over a grid axis sized
    # to the core count and replace the dense selectors / O(S^2) pool mask with strided reads.

    @jax.jit
    def forward(x_nchw):
        # Boundary-only layout glue: NCHW->NHWC, one-time im2col of the tiny input,
        # lane padding (9*c -> k0pad) and bf16 cast for the MXU.
        x = jnp.transpose(x_nchw, (0, 2, 3, 1))
        xp = jnp.pad(x, ((0, 0), (1, 1), (1, 1), (0, 0)))
        taps = [xp[:, i:i + 2 * hc0:2, j:j + 2 * wc0:2, :]
                for i in range(3) for j in range(3)]
        x0 = jnp.concatenate(taps, axis=-1).reshape(n * hc0 * wc0, 9 * c)
        x0 = jnp.pad(x0, ((0, 0), (0, k0pad - 9 * c))).astype(jnp.bfloat16)

        out = fused(x0, wb_slab, sel_slab, cst_slab)

        cc = NA * NO
        z0 = out[0:r0, 0:cc].reshape(n, s0, NA, NO).transpose(0, 2, 1, 3).reshape(n, NA * s0, NO)
        z1 = out[r0:r0 + r1, 0:cc].reshape(n, s1, NA, NO).transpose(0, 2, 1, 3).reshape(n, NA * s1, NO)
        z = jnp.concatenate([z0, z1], axis=1)
        raw0 = out[0:r0, cc:2 * cc].reshape(n, hc1, wc1, NA, NO).transpose(0, 3, 1, 2, 4)
        raw1 = out[r0:r0 + r1, cc:2 * cc].reshape(n, hc3, wc3, NA, NO).transpose(0, 3, 1, 2, 4)
        return z, [raw0, raw1]

    return forward


# ----------------------------- deterministic params ---------------------------
class ParamGen:
    def __init__(self, seed=0):
        self.key = jax.random.PRNGKey(seed)

    def normal(self, shape, scale=0.05):
        self.key, sub = jax.random.split(self.key)
        return scale * jax.random.normal(sub, shape, dtype=jnp.float32)

    def uniform(self, shape, lo, hi):
        self.key, sub = jax.random.split(self.key)
        return jax.random.uniform(sub, shape, dtype=jnp.float32, minval=lo, maxval=hi)


def make_conv(pg, cin, cout, k):
    # Conv2d(bias=False) weight (HWIO) + eval-mode BatchNorm2d, folded into (w, b).
    w = pg.normal((k, k, cin, cout), 0.1)
    gamma = pg.uniform((cout,), 0.8, 1.2)
    beta = pg.normal((cout,), 0.05)
    mean = pg.normal((cout,), 0.05)
    var = pg.uniform((cout,), 0.5, 1.5)
    scale = gamma / jnp.sqrt(var + BN_EPS)
    return {'w': w * scale[None, None, None, :], 'b': beta - mean * scale}


def init_params(seed=0):
    pg = ParamGen(seed)
    params = {
        'l0': make_conv(pg, 4, 8, 3),
        'l1': make_conv(pg, 8, 16, 3),
        'l2': {
            'cv1': make_conv(pg, 16, 8, 1),
            'cv2': make_conv(pg, 16, 8, 1),
            'cv3': make_conv(pg, 16, 16, 1),
            'm0_cv1': make_conv(pg, 8, 8, 1),
            'm0_cv2': make_conv(pg, 8, 8, 3),
        },
        'l3': make_conv(pg, 16, 32, 3),
        'l4': {
            'cv1': make_conv(pg, 32, 16, 1),
            'cv2': make_conv(pg, 64, 32, 1),
        },
    }
    # Detect head: 1x1 convs WITH bias, then DetectionModel._initialize_biases()
    det = []
    for cin, s in zip((16, 32), STRIDES):
        w = pg.normal((1, 1, cin, NA * NO), 0.1)
        b = pg.normal((NA * NO,), 0.05).reshape(NA, NO)
        b = b.at[:, 4].add(math.log(8.0 / (640.0 / s) ** 2))
        b = b.at[:, 5:5 + NC].add(math.log(0.6 / (NC - 0.99999)))
        det.append({'w': w, 'b': b.reshape(-1)})
    params['l5'] = {'m': det}
    return params


# ----------------------------- pure-XLA reference (correctness check) ---------
def _ref_conv(x, conv, stride, pad, act=True):
    y = jax.lax.conv_general_dilated(
        x, conv['w'], (stride, stride), ((pad, pad), (pad, pad)),
        dimension_numbers=('NHWC', 'HWIO', 'NHWC'))
    y = y + conv['b']
    return y * jax.nn.sigmoid(y) if act else y


def _ref_pool5(v):
    return jax.lax.reduce_window(v, -jnp.inf, jax.lax.max,
                                 (1, 5, 5, 1), (1, 1, 1, 1),
                                 ((0, 0), (2, 2), (2, 2), (0, 0)))


def reference_forward(x_nchw, params):
    x = jnp.transpose(x_nchw, (0, 2, 3, 1))
    y0 = _ref_conv(x, params['l0'], 2, 1)
    y1 = _ref_conv(y0, params['l1'], 2, 1)
    p2 = params['l2']
    a = _ref_conv(y1, p2['cv1'], 1, 0)
    bb = _ref_conv(a, p2['m0_cv1'], 1, 0)
    bb = _ref_conv(bb, p2['m0_cv2'], 1, 1)
    a = a + bb
    c_branch = _ref_conv(y1, p2['cv2'], 1, 0)
    f0 = _ref_conv(jnp.concatenate([a, c_branch], -1), p2['cv3'], 1, 0)
    y3 = _ref_conv(f0, params['l3'], 2, 1)
    p4 = params['l4']
    xc = _ref_conv(y3, p4['cv1'], 1, 0)
    m1 = _ref_pool5(xc)
    m2 = _ref_pool5(m1)
    m3 = _ref_pool5(m2)
    f1 = _ref_conv(jnp.concatenate([xc, m1, m2, m3], -1), p4['cv2'], 1, 0)
    z_list, raw = [], []
    for i, feat in enumerate([f0, f1]):
        pm = params['l5']['m'][i]
        t = jax.lax.conv_general_dilated(feat, pm['w'], (1, 1), ((0, 0), (0, 0)),
                                         dimension_numbers=('NHWC', 'HWIO', 'NHWC')) + pm['b']
        n_, ny, nx, _ = t.shape
        t5 = t.reshape(n_, ny, nx, NA, NO).transpose(0, 3, 1, 2, 4)
        raw.append(t5)
        s = jax.nn.sigmoid(t5)
        yv, xv = jnp.meshgrid(jnp.arange(ny, dtype=jnp.float32),
                              jnp.arange(nx, dtype=jnp.float32), indexing='ij')
        grid = jnp.stack((xv, yv), -1) - 0.5
        xy = (s[..., 0:2] * 2.0 + grid[None, None]) * STRIDES[i]
        wh = (s[..., 2:4] * 2.0) ** 2 * ANCHOR_GRID[i][None, :, None, None, :]
        y = jnp.concatenate([xy, wh, s[..., 4:]], -1)
        z_list.append(y.reshape(n_, NA * ny * nx, NO))
    return jnp.concatenate(z_list, 1), raw


# TODO(synk): only the eval (non-export, non-augment) forward is implemented; the
# training-mode Detect branch and _forward_augment are out of scope for this kernel.

# ----------------------------- main --------------------------------------------
if __name__ == "__main__":
    key = jax.random.PRNGKey(0)
    x = jax.random.normal(key, (2, 4, 16, 16), dtype=jnp.float32)   # NCHW input
    params = init_params(0)

    forward = build_forward(x.shape, params)
    z, raw = forward(x)
    z = jax.block_until_ready(z)

    # level 0: 2 anchors * 4*4 = 32, level 1: 2 anchors * 2*2 = 8 -> 40 predictions
    assert z.shape == (2, 40, NO), z.shape
    assert raw[0].shape == (2, NA, 4, 4, NO) and raw[1].shape == (2, NA, 2, 2, NO)
    assert bool(jnp.all(jnp.isfinite(z)))

    # Structural correctness vs a pure-XLA f32 reference.  Tolerance is loose on purpose:
    # matmuls run with bf16 operands (f32 accumulate); we verify structure/indexing, not ulps.
    z_ref, raw_ref = reference_forward(x, params)
    assert bool(jnp.allclose(z, z_ref, rtol=8e-2, atol=8e-2)), \
        float(jnp.max(jnp.abs(z - z_ref)))
    assert bool(jnp.allclose(raw[0], raw_ref[0], rtol=8e-2, atol=8e-2))
    assert bool(jnp.allclose(raw[1], raw_ref[1], rtol=8e-2, atol=8e-2))

    print("KERNEL_OK")
</pallas_src>

<mosaic_0001>
module attributes {stable_mosaic.version = 11 : i64} {
  func.func @_fused_forward_kernel(%arg0: i32, %arg1: memref<128x128xbf16, #tpu.memory_space<vmem>>, %arg2: memref<400x288xbf16, #tpu.memory_space<vmem>>, %arg3: memref<720x128xbf16, #tpu.memory_space<vmem>>, %arg4: memref<176x32xf32, #tpu.memory_space<vmem>>, %arg5: memref<40x128xf32, #tpu.memory_space<vmem>>) attributes {dimension_semantics = [#tpu.dimension_semantics<arbitrary>], iteration_bounds = array<i64: 1>, scalar_prefetch = 0 : i64, scratch_operands = 0 : i64, tpu.core_type = #tpu.core_type<tc>, window_params = [{pipeline_mode = #tpu.pipeline_mode<synchronous>, transform_indices = @transform_0, window_bounds = array<i64: 128, 128>}, {pipeline_mode = #tpu.pipeline_mode<synchronous>, transform_indices = @transform_1, window_bounds = array<i64: 400, 288>}, {pipeline_mode = #tpu.pipeline_mode<synchronous>, transform_indices = @transform_2, window_bounds = array<i64: 720, 128>}, {pipeline_mode = #tpu.pipeline_mode<synchronous>, transform_indices = @transform_3, window_bounds = array<i64: 176, 32>}, {pipeline_mode = #tpu.pipeline_mode<synchronous>, transform_indices = @transform_4, window_bounds = array<i64: 40, 128>}]} {
    %c0 = arith.constant 0 : index
    %c0_0 = arith.constant 0 : index
    %0 = vector.load %arg1[%c0, %c0_0] : memref<128x128xbf16, #tpu.memory_space<vmem>>, vector<128x128xbf16>
    %c0_1 = arith.constant 0 : index
    %c0_2 = arith.constant 0 : index
    %1 = vector.load %arg2[%c0_1, %c0_2] : memref<400x288xbf16, #tpu.memory_space<vmem>>, vector<128x8xbf16>
    %cst = arith.constant dense<0.000000e+00> : vector<128x8xf32>
    %2 = tpu.matmul %0, %1, %cst {dimension_numbers = #tpu.dot_dimension_numbers<[1], [0], [0], [1], [0, 0, 1, 1], [], []>} : vector<128x128xbf16>, vector<128x8xbf16>, vector<128x8xf32> -> vector<128x8xf32>
    %c0_3 = arith.constant 0 : index
    %c0_4 = arith.constant 0 : index
    %3 = vector.load %arg4[%c0_3, %c0_4] : memref<176x32xf32, #tpu.memory_space<vmem>>, vector<1x8xf32>
    %4 = vector.broadcast %3 : vector<1x8xf32> to vector<128x8xf32>
    %5 = arith.addf %2, %4 : vector<128x8xf32>
    %6 = arith.negf %5 : vector<128x8xf32>
    %7 = math.exp %6 : vector<128x8xf32>
    %cst_5 = arith.constant 1.000000e+00 : f32
    %8 = vector.broadcast %cst_5 : f32 to vector<128x8xf32>
    %9 = arith.addf %8, %7 : vector<128x8xf32>
    %10 = arith.divf %8, %9 : vector<128x8xf32>
    %11 = arith.mulf %5, %10 : vector<128x8xf32>
    %c128 = arith.constant 128 : index
    %c0_6 = arith.constant 0 : index
    %12 = vector.load %arg2[%c128, %c0_6] : memref<400x288xbf16, #tpu.memory_space<vmem>>, vector<8x144xbf16>
    %13 = arith.truncf %11 : vector<128x8xf32> to vector<128x8xbf16>
    %cst_7 = arith.constant dense<0.000000e+00> : vector<128x144xf32>
    %14 = tpu.matmul %13, %12, %cst_7 {dimension_numbers = #tpu.dot_dimension_numbers<[1], [0], [0], [1], [0, 0, 1, 1], [], []>} : vector<128x8xbf16>, vector<8x144xbf16>, vector<128x144xf32> -> vector<128x144xf32>
    %c0_8 = arith.constant 0 : index
    %c0_9 = arith.constant 0 : index
    %15 = vector.load %arg3[%c0_8, %c0_9] : memref<720x128xbf16, #tpu.memory_space<vmem>>, vector<32x128xbf16>
    %16 = vector.extract_strided_slice %14 {offsets = [0, 0], sizes = [128, 16], strides = [1, 1]} : vector<128x144xf32> to vector<128x16xf32>
    %17 = arith.truncf %16 : vector<128x16xf32> to vector<128x16xbf16>
    %cst_10 = arith.constant dense<0.000000e+00> : vector<32x16xf32>
    %18 = tpu.matmul %15, %17, %cst_10 {dimension_numbers = #tpu.dot_dimension_numbers<[1], [0], [0], [1], [0, 0, 1, 1], [], []>} : vector<32x128xbf16>, vector<128x16xbf16>, vector<32x16xf32> -> vector<32x16xf32>
    %c32 = arith.constant 32 : index
    %c0_11 = arith.constant 0 : index
    %19 = vector.load %arg3[%c32, %c0_11] : memref<720x128xbf16, #tpu.memory_space<vmem>>, vector<32x128xbf16>
    %20 = vector.extract_strided_slice %14 {offsets = [0, 16], sizes = [128, 16], strides = [1, 1]} : vector<128x144xf32> to vector<128x16xf32>
    %21 = arith.truncf %20 : vector<128x16xf32> to vector<128x16xbf16>
    %cst_12 = arith.constant dense<0.000000e+00> : vector<32x16xf32>
    %22 = tpu.matmul %19, %21, %cst_12 {dimension_numbers = #tpu.dot_dimension_numbers<[1], [0], [0], [1], [0, 0, 1, 1], [], []>} : vector<32x128xbf16>, vector<128x16xbf16>, vector<32x16xf32> -> vector<32x16xf32>
    %23 = arith.addf %18, %22 : vector<32x16xf32>
    %c64 = arith.constant 64 : index
    %c0_13 = arith.constant 0 : index
    %24 = vector.load %arg3[%c64, %c0_13] : memref<720x128xbf16, #tpu.memory_space<vmem>>, vector<32x128xbf16>
    %25 = vector.extract_strided_slice %14 {offsets = [0, 32], sizes = [128, 16], strides = [1, 1]} : vector<128x144xf32> to vector<128x16xf32>
    %26 = arith.truncf %25 : vector<128x16xf32> to vector<128x16xbf16>
    %cst_14 = arith.constant dense<0.000000e+00> : vector<32x16xf32>
    %27 = tpu.matmul %24, %26, %cst_14 {dimension_numbers = #tpu.dot_dimension_numbers<[1], [0], [0], [1], [0, 0, 1, 1], [], []>} : vector<32x128xbf16>, vector<128x16xbf16>, vector<32x16xf32> -> vector<32x16xf32>
    %28 = arith.addf %23, %27 : vector<32x16xf32>
    %c96 = arith.constant 96 : index
    %c0_15 = arith.constant 0 : index
    %29 = vector.load %arg3[%c96, %c0_15] : memref<720x128xbf16, #tpu.memory_space<vmem>>, vector<32x128xbf16>
    %30 = vector.extract_strided_slice %14 {offsets = [0, 48], sizes = [128, 16], strides = [1, 1]} : vector<128x144xf32> to vector<128x16xf32>
    %31 = arith.truncf %30 : vector<128x16xf32> to vector<128x16xbf16>
    %cst_16 = arith.constant dense<0.000000e+00> : vector<32x16xf32>
    %32 = tpu.matmul %29, %31, %cst_16 {dimension_numbers = #tpu.dot_dimension_numbers<[1], [0], [0], [1], [0, 0, 1, 1], [], []>} : vector<32x128xbf16>, vector<128x16xbf16>, vector<32x16xf32> -> vector<32x16xf32>
    %33 = arith.addf %28, %32 : vector<32x16xf32>
    %c128_17 = arith.constant 128 : index
    %c0_18 = arith.constant 0 : index
    %34 = vector.load %arg3[%c128_17, %c0_18] : memref<720x128xbf16, #tpu.memory_space<vmem>>, vector<32x128xbf16>
    %35 = vector.extract_strided_slice %14 {offsets = [0, 64], sizes = [128, 16], strides = [1, 1]} : vector<128x144xf32> to vector<128x16xf32>
    %36 = arith.truncf %35 : vector<128x16xf32> to vector<128x16xbf16>
    %cst_19 = arith.constant dense<0.000000e+00> : vector<32x16xf32>
    %37 = tpu.matmul %34, %36, %cst_19 {dimension_numbers = #tpu.dot_dimension_numbers<[1], [0], [0], [1], [0, 0, 1, 1], [], []>} : vector<32x128xbf16>, vector<128x16xbf16>, vector<32x16xf32> -> vector<32x16xf32>
    %38 = arith.addf %33, %37 : vector<32x16xf32>
    %c160 = arith.constant 160 : index
    %c0_20 = arith.constant 0 : index
    %39 = vector.load %arg3[%c160, %c0_20] : memref<720x128xbf16, #tpu.memory_space<vmem>>, vector<32x128xbf16>
    %40 = vector.extract_strided_slice %14 {offsets = [0, 80], sizes = [128, 16], strides = [1, 1]} : vector<128x144xf32> to vector<128x16xf32>
    %41 = arith.truncf %40 : vector<128x16xf32> to vector<128x16xbf16>
    %cst_21 = arith.constant dense<0.000000e+00> : vector<32x16xf32>
    %42 = tpu.matmul %39, %41, %cst_21 {dimension_numbers = #tpu.dot_dimension_numbers<[1], [0], [0], [1], [0, 0, 1, 1], [], []>} : vector<32x128xbf16>, vector<128x16xbf16>, vector<32x16xf32> -> vector<32x16xf32>
    %43 = arith.addf %38, %42 : vector<32x16xf32>
    %c192 = arith.constant 192 : index
    %c0_22 = arith.constant 0 : index
    %44 = vector.load %arg3[%c192, %c0_22] : memref<720x128xbf16, #tpu.memory_space<vmem>>, vector<32x128xbf16>
    %45 = vector.extract_strided_slice %14 {offsets = [0, 96], sizes = [128, 16], strides = [1, 1]} : vector<128x144xf32> to vector<128x16xf32>
    %46 = arith.truncf %45 : vector<128x16xf32> to vector<128x16xbf16>
    %cst_23 = arith.constant dense<0.000000e+00> : vector<32x16xf32>
    %47 = tpu.matmul %44, %46, %cst_23 {dimension_numbers = #tpu.dot_dimension_numbers<[1], [0], [0], [1], [0, 0, 1, 1], [], []>} : vector<32x128xbf16>, vector<128x16xbf16>, vector<32x16xf32> -> vector<32x16xf32>
    %48 = arith.addf %43, %47 : vector<32x16xf32>
    %c224 = arith.constant 224 : index
    %c0_24 = arith.constant 0 : index
    %49 = vector.load %arg3[%c224, %c0_24] : memref<720x128xbf16, #tpu.memory_space<vmem>>, vector<32x128xbf16>
    %50 = vector.extract_strided_slice %14 {offsets = [0, 112], sizes = [128, 16], strides = [1, 1]} : vector<128x144xf32> to vector<128x16xf32>
    %51 = arith.truncf %50 : vector<128x16xf32> to vector<128x16xbf16>
    %cst_25 = arith.constant dense<0.000000e+00> : vector<32x16xf32>
    %52 = tpu.matmul %49, %51, %cst_25 {dimension_numbers = #tpu.dot_dimension_numbers<[1], [0], [0], [1], [0, 0, 1, 1], [], []>} : vector<32x128xbf16>, vector<128x16xbf16>, vector<32x16xf32> -> vector<32x16xf32>
    %53 = arith.addf %48, %52 : vector<32x16xf32>
    %c256 = arith.constant 256 : index
    %c0_26 = arith.constant 0 : index
    %54 = vector.load %arg3[%c256, %c0_26] : memref<720x128xbf16, #tpu.memory_space<vmem>>, vector<32x128xbf16>
    %55 = vector.extract_strided_slice %14 {offsets = [0, 128], sizes = [128, 16], strides = [1, 1]} : vector<128x144xf32> to vector<128x16xf32>
    %56 = arith.truncf %55 : vector<128x16xf32> to vector<128x16xbf16>
    %cst_27 = arith.constant dense<0.000000e+00> : vector<32x16xf32>
    %57 = tpu.matmul %54, %56, %cst_27 {dimension_numbers = #tpu.dot_dimension_numbers<[1], [0], [0], [1], [0, 0, 1, 1], [], []>} : vector<32x128xbf16>, vector<128x16xbf16>, vector<32x16xf32> -> vector<32x16xf32>
    %58 = arith.addf %53, %57 : vector<32x16xf32>
    %c8 = arith.constant 8 : index
    %c0_28 = arith.constant 0 : index
    %59 = vector.load %arg4[%c8, %c0_28] : memref<176x32xf32, #tpu.memory_space<vmem>>, vector<1x16xf32>
    %60 = vector.broadcast %59 : vector<1x16xf32> to vector<32x16xf32>
    %61 = arith.addf %58, %60 : vector<32x16xf32>
    %62 = arith.negf %61 : vector<32x16xf32>
    %63 = math.exp %62 : vector<32x16xf32>
    %cst_29 = arith.constant 1.000000e+00 : f32
    %64 = vector.broadcast %cst_29 : f32 to vector<32x16xf32>
    %65 = arith.addf %64, %63 : vector<32x16xf32>
    %66 = arith.divf %64, %65 : vector<32x16xf32>
    %67 = arith.mulf %61, %66 : vector<32x16xf32>
    %c144 = arith.constant 144 : index
    %c0_30 = arith.constant 0 : index
    %68 = vector.load %arg2[%c144, %c0_30] : memref<400x288xbf16, #tpu.memory_space<vmem>>, vector<16x8xbf16>
    %69 = arith.truncf %67 : vector<32x16xf32> to vector<32x16xbf16>
    %cst_31 = arith.constant dense<0.000000e+00> : vector<32x8xf32>
    %70 = tpu.matmul %69, %68, %cst_31 {dimension_numbers = #tpu.dot_dimension_numbers<[1], [0], [0], [1], [0, 0, 1, 1], [], []>} : vector<32x16xbf16>, vector<16x8xbf16>, vector<32x8xf32> -> vector<32x8xf32>
    %c16 = arith.constant 16 : index
    %c0_32 = arith.constant 0 : index
    %71 = vector.load %arg4[%c16, %c0_32] : memref<176x32xf32, #tpu.memory_space<vmem>>, vector<1x8xf32>
    %72 = vector.broadcast %71 : vector<1x8xf32> to vector<32x8xf32>
    %73 = arith.addf %70, %72 : vector<32x8xf32>
    %74 = arith.negf %73 : vector<32x8xf32>
    %75 = math.exp %74 : vector<32x8xf32>
    %cst_33 = arith.constant 1.000000e+00 : f32
    %76 = vector.broadcast %cst_33 : f32 to vector<32x8xf32>
    %77 = arith.addf %76, %75 : vector<32x8xf32>
    %78 = arith.divf %76, %77 : vector<32x8xf32>
    %79 = arith.mulf %73, %78 : vector<32x8xf32>
    %c160_34 = arith.constant 160 : index
    %c0_35 = arith.constant 0 : index
    %80 = vector.load %arg2[%c160_34, %c0_35] : memref<400x288xbf16, #tpu.memory_space<vmem>>, vector<8x8xbf16>
    %81 = arith.truncf %79 : vector<32x8xf32> to vector<32x8xbf16>
    %cst_36 = arith.constant dense<0.000000e+00> : vector<32x8xf32>
    %82 = tpu.matmul %81, %80, %cst_36 {dimension_numbers = #tpu.dot_dimension_numbers<[1], [0], [0], [1], [0, 0, 1, 1], [], []>} : vector<32x8xbf16>, vector<8x8xbf16>, vector<32x8xf32> -> vector<32x8xf32>
    %c24 = arith.constant 24 : index
    %c0_37 = arith.constant 0 : index
    %83 = vector.load %arg4[%c24, %c0_37] : memref<176x32xf32, #tpu.memory_space<vmem>>, vector<1x8xf32>
    %84 = vector.broadcast %83 : vector<1x8xf32> to vector<32x8xf32>
    %85 = arith.addf %82, %84 : vector<32x8xf32>
    %86 = arith.negf %85 : vector<32x8xf32>
    %87 = math.exp %86 : vector<32x8xf32>
    %cst_38 = arith.constant 1.000000e+00 : f32
    %88 = vector.broadcast %cst_38 : f32 to vector<32x8xf32>
    %89 = arith.addf %88, %87 : vector<32x8xf32>
    %90 = arith.divf %88, %89 : vector<32x8xf32>
    %91 = arith.mulf %85, %90 : vector<32x8xf32>
    %c176 = arith.constant 176 : index
    %c0_39 = arith.constant 0 : index
    %92 = vector.load %arg2[%c176, %c0_39] : memref<400x288xbf16, #tpu.memory_space<vmem>>, vector<8x72xbf16>
    %93 = arith.truncf %91 : vector<32x8xf32> to vector<32x8xbf16>
    %cst_40 = arith.constant dense<0.000000e+00> : vector<32x72xf32>
    %94 = tpu.matmul %93, %92, %cst_40 {dimension_numbers = #tpu.dot_dimension_numbers<[1], [0], [0], [1], [0, 0, 1, 1], [], []>} : vector<32x8xbf16>, vector<8x72xbf16>, vector<32x72xf32> -> vector<32x72xf32>
    %c288 = arith.constant 288 : index
    %c0_41 = arith.constant 0 : index
    %95 = vector.load %arg3[%c288, %c0_41] : memref<720x128xbf16, #tpu.memory_space<vmem>>, vector<32x32xbf16>
    %96 = vector.extract_strided_slice %94 {offsets = [0, 0], sizes = [32, 8], strides = [1, 1]} : vector<32x72xf32> to vector<32x8xf32>
    %97 = arith.truncf %96 : vector<32x8xf32> to vector<32x8xbf16>
    %cst_42 = arith.constant dense<0.000000e+00> : vector<32x8xf32>
    %98 = tpu.matmul %95, %97, %cst_42 {dimension_numbers = #tpu.dot_dimension_numbers<[1], [0], [0], [1], [0, 0, 1, 1], [], []>} : vector<32x32xbf16>, vector<32x8xbf16>, vector<32x8xf32> -> vector<32x8xf32>
    %c320 = arith.constant 320 : index
    %c0_43 = arith.constant 0 : index
    %99 = vector.load %arg3[%c320, %c0_43] : memref<720x128xbf16, #tpu.memory_space<vmem>>, vector<32x32xbf16>
    %100 = vector.extract_strided_slice %94 {offsets = [0, 8], sizes = [32, 8], strides = [1, 1]} : vector<32x72xf32> to vector<32x8xf32>
    %101 = arith.truncf %100 : vector<32x8xf32> to vector<32x8xbf16>
    %cst_44 = arith.constant dense<0.000000e+00> : vector<32x8xf32>
    %102 = tpu.matmul %99, %101, %cst_44 {dimension_numbers = #tpu.dot_dimension_numbers<[1], [0], [0], [1], [0, 0, 1, 1], [], []>} : vector<32x32xbf16>, vector<32x8xbf16>, vector<32x8xf32> -> vector<32x8xf32>
    %103 = arith.addf %98, %102 : vector<32x8xf32>
    %c352 = arith.constant 352 : index
    %c0_45 = arith.constant 0 : index
    %104 = vector.load %arg3[%c352, %c0_45] : memref<720x128xbf16, #tpu.memory_space<vmem>>, vector<32x32xbf16>
    %105 = vector.extract_strided_slice %94 {offsets = [0, 16], sizes = [32, 8], strides = [1, 1]} : vector<32x72xf32> to vector<32x8xf32>
    %106 = arith.truncf %105 : vector<32x8xf32> to vector<32x8xbf16>
    %cst_46 = arith.constant dense<0.000000e+00> : vector<32x8xf32>
    %107 = tpu.matmul %104, %106, %cst_46 {dimension_numbers = #tpu.dot_dimension_numbers<[1], [0], [0], [1], [0, 0, 1, 1], [], []>} : vector<32x32xbf16>, vector<32x8xbf16>, vector<32x8xf32> -> vector<32x8xf32>
    %108 = arith.addf %103, %107 : vector<32x8xf32>
    %c384 = arith.constant 384 : index
    %c0_47 = arith.constant 0 : index
    %109 = vector.load %arg3[%c384, %c0_47] : memref<720x128xbf16, #tpu.memory_space<vmem>>, vector<32x32xbf16>
    %110 = vector.extract_strided_slice %94 {offsets = [0, 24], sizes = [32, 8], strides = [1, 1]} : vector<32x72xf32> to vector<32x8xf32>
    %111 = arith.truncf %110 : vector<32x8xf32> to vector<32x8xbf16>
    %cst_48 = arith.constant dense<0.000000e+00> : vector<32x8xf32>
    %112 = tpu.matmul %109, %111, %cst_48 {dimension_numbers = #tpu.dot_dimension_numbers<[1], [0], [0], [1], [0, 0, 1, 1], [], []>} : vector<32x32xbf16>, vector<32x8xbf16>, vector<32x8xf32> -> vector<32x8xf32>
    %113 = arith.addf %108, %112 : vector<32x8xf32>
    %c416 = arith.constant 416 : index
    %c0_49 = arith.constant 0 : index
    %114 = vector.load %arg3[%c416, %c0_49] : memref<720x128xbf16, #tpu.memory_space<vmem>>, vector<32x32xbf16>
    %115 = vector.extract_strided_slice %94 {offsets = [0, 32], sizes = [32, 8], strides = [1, 1]} : vector<32x72xf32> to vector<32x8xf32>
    %116 = arith.truncf %115 : vector<32x8xf32> to vector<32x8xbf16>
    %cst_50 = arith.constant dense<0.000000e+00> : vector<32x8xf32>
    %117 = tpu.matmul %114, %116, %cst_50 {dimension_numbers = #tpu.dot_dimension_numbers<[1], [0], [0], [1], [0, 0, 1, 1], [], []>} : vector<32x32xbf16>, vector<32x8xbf16>, vector<32x8xf32> -> vector<32x8xf32>
    %118 = arith.addf %113, %117 : vector<32x8xf32>
    %c448 = arith.constant 448 : index
    %c0_51 = arith.constant 0 : index
    %119 = vector.load %arg3[%c448, %c0_51] : memref<720x128xbf16, #tpu.memory_space<vmem>>, vector<32x32xbf16>
    %120 = vector.extract_strided_slice %94 {offsets = [0, 40], sizes = [32, 8], strides = [1, 1]} : vector<32x72xf32> to vector<32x8xf32>
    %121 = arith.truncf %120 : vector<32x8xf32> to vector<32x8xbf16>
    %cst_52 = arith.constant dense<0.000000e+00> : vector<32x8xf32>
    %122 = tpu.matmul %119, %121, %cst_52 {dimension_numbers = #tpu.dot_dimension_numbers<[1], [0], [0], [1], [0, 0, 1, 1], [], []>} : vector<32x32xbf16>, vector<32x8xbf16>, vector<32x8xf32> -> vector<32x8xf32>
    %123 = arith.addf %118, %122 : vector<32x8xf32>
    %c480 = arith.constant 480 : index
    %c0_53 = arith.constant 0 : index
    %124 = vector.load %arg3[%c480, %c0_53] : memref<720x128xbf16, #tpu.memory_space<vmem>>, vector<32x32xbf16>
    %125 = vector.extract_strided_slice %94 {offsets = [0, 48], sizes = [32, 8], strides = [1, 1]} : vector<32x72xf32> to vector<32x8xf32>
    %126 = arith.truncf %125 : vector<32x8xf32> to vector<32x8xbf16>
    %cst_54 = arith.constant dense<0.000000e+00> : vector<32x8xf32>
    %127 = tpu.matmul %124, %126, %cst_54 {dimension_numbers = #tpu.dot_dimension_numbers<[1], [0], [0], [1], [0, 0, 1, 1], [], []>} : vector<32x32xbf16>, vector<32x8xbf16>, vector<32x8xf32> -> vector<32x8xf32>
    %128 = arith.addf %123, %127 : vector<32x8xf32>
    %c512 = arith.constant 512 : index
    %c0_55 = arith.constant 0 : index
    %129 = vector.load %arg3[%c512, %c0_55] : memref<720x128xbf16, #tpu.memory_space<vmem>>, vector<32x32xbf16>
    %130 = vector.extract_strided_slice %94 {offsets = [0, 56], sizes = [32, 8], strides = [1, 1]} : vector<32x72xf32> to vector<32x8xf32>
    %131 = arith.truncf %130 : vector<32x8xf32> to vector<32x8xbf16>
    %cst_56 = arith.constant dense<0.000000e+00> : vector<32x8xf32>
    %132 = tpu.matmul %129, %131, %cst_56 {dimension_numbers = #tpu.dot_dimension_numbers<[1], [0], [0], [1], [0, 0, 1, 1], [], []>} : vector<32x32xbf16>, vector<32x8xbf16>, vector<32x8xf32> -> vector<32x8xf32>
    %133 = arith.addf %128, %132 : vector<32x8xf32>
    %c544 = arith.constant 544 : index
    %c0_57 = arith.constant 0 : index
    %134 = vector.load %arg3[%c544, %c0_57] : memref<720x128xbf16, #tpu.memory_space<vmem>>, vector<32x32xbf16>
    %135 = vector.extract_strided_slice %94 {offsets = [0, 64], sizes = [32, 8], strides = [1, 1]} : vector<32x72xf32> to vector<32x8xf32>
    %136 = arith.truncf %135 : vector<32x8xf32> to vector<32x8xbf16>
    %cst_58 = arith.constant dense<0.000000e+00> : vector<32x8xf32>
    %137 = tpu.matmul %134, %136, %cst_58 {dimension_numbers = #tpu.dot_dimension_numbers<[1], [0], [0], [1], [0, 0, 1, 1], [], []>} : vector<32x32xbf16>, vector<32x8xbf16>, vector<32x8xf32> -> vector<32x8xf32>
    %138 = arith.addf %133, %137 : vector<32x8xf32>
    %c32_59 = arith.constant 32 : index
    %c0_60 = arith.constant 0 : index
    %139 = vector.load %arg4[%c32_59, %c0_60] : memref<176x32xf32, #tpu.memory_space<vmem>>, vector<1x8xf32>
    %140 = vector.broadcast %139 : vector<1x8xf32> to vector<32x8xf32>
    %141 = arith.addf %138, %140 : vector<32x8xf32>
    %142 = arith.negf %141 : vector<32x8xf32>
    %143 = math.exp %142 : vector<32x8xf32>
    %cst_61 = arith.constant 1.000000e+00 : f32
    %144 = vector.broadcast %cst_61 : f32 to vector<32x8xf32>
    %145 = arith.addf %144, %143 : vector<32x8xf32>
    %146 = arith.divf %144, %145 : vector<32x8xf32>
    %147 = arith.mulf %141, %146 : vector<32x8xf32>
    %148 = arith.addf %79, %147 : vector<32x8xf32>
    %c192_62 = arith.constant 192 : index
    %c0_63 = arith.constant 0 : index
    %149 = vector.load %arg2[%c192_62, %c0_63] : memref<400x288xbf16, #tpu.memory_space<vmem>>, vector<16x8xbf16>
    %150 = arith.truncf %67 : vector<32x16xf32> to vector<32x16xbf16>
    %cst_64 = arith.constant dense<0.000000e+00> : vector<32x8xf32>
    %151 = tpu.matmul %150, %149, %cst_64 {dimension_numbers = #tpu.dot_dimension_numbers<[1], [0], [0], [1], [0, 0, 1, 1], [], []>} : vector<32x16xbf16>, vector<16x8xbf16>, vector<32x8xf32> -> vector<32x8xf32>
    %c40 = arith.constant 40 : index
    %c0_65 = arith.constant 0 : index
    %152 = vector.load %arg4[%c40, %c0_65] : memref<176x32xf32, #tpu.memory_space<vmem>>, vector<1x8xf32>
    %153 = vector.broadcast %152 : vector<1x8xf32> to vector<32x8xf32>
    %154 = arith.addf %151, %153 : vector<32x8xf32>
    %155 = arith.negf %154 : vector<32x8xf32>
    %156 = math.exp %155 : vector<32x8xf32>
    %cst_66 = arith.constant 1.000000e+00 : f32
    %157 = vector.broadcast %cst_66 : f32 to vector<32x8xf32>
    %158 = arith.addf %157, %156 : vector<32x8xf32>
    %159 = arith.divf %157, %158 : vector<32x8xf32>
    %160 = arith.mulf %154, %159 : vector<32x8xf32>
    %c208 = arith.constant 208 : index
    %c0_67 = arith.constant 0 : index
    %161 = vector.load %arg2[%c208, %c0_67] : memref<400x288xbf16, #tpu.memory_space<vmem>>, vector<8x16xbf16>
    %162 = arith.truncf %148 : vector<32x8xf32> to vector<32x8xbf16>
    %cst_68 = arith.constant dense<0.000000e+00> : vector<32x16xf32>
    %163 = tpu.matmul %162, %161, %cst_68 {dimension_numbers = #tpu.dot_dimension_numbers<[1], [0], [0], [1], [0, 0, 1, 1], [], []>} : vector<32x8xbf16>, vector<8x16xbf16>, vector<32x16xf32> -> vector<32x16xf32>
    %c224_69 = arith.constant 224 : index
    %c0_70 = arith.constant 0 : index
    %164 = vector.load %arg2[%c224_69, %c0_70] : memref<400x288xbf16, #tpu.memory_space<vmem>>, vector<8x16xbf16>
    %165 = arith.truncf %160 : vector<32x8xf32> to vector<32x8xbf16>
    %cst_71 = arith.constant dense<0.000000e+00> : vector<32x16xf32>
    %166 = tpu.matmul %165, %164, %cst_71 {dimension_numbers = #tpu.dot_dimension_numbers<[1], [0], [0], [1], [0, 0, 1, 1], [], []>} : vector<32x8xbf16>, vector<8x16xbf16>, vector<32x16xf32> -> vector<32x16xf32>
    %167 = arith.addf %163, %166 : vector<32x16xf32>
    %c48 = arith.constant 48 : index
    %c0_72 = arith.constant 0 : index
    %168 = vector.load %arg4[%c48, %c0_72] : memref<176x32xf32, #tpu.memory_space<vmem>>, vector<1x16xf32>
    %169 = vector.broadcast %168 : vector<1x16xf32> to vector<32x16xf32>
    %170 = arith.addf %167, %169 : vector<32x16xf32>
    %171 = arith.negf %170 : vector<32x16xf32>
    %172 = math.exp %171 : vector<32x16xf32>
    %cst_73 = arith.constant 1.000000e+00 : f32
    %173 = vector.broadcast %cst_73 : f32 to vector<32x16xf32>
    %174 = arith.addf %173, %172 : vector<32x16xf32>
    %175 = arith.divf %173, %174 : vector<32x16xf32>
    %176 = arith.mulf %170, %175 : vector<32x16xf32>
    %c240 = arith.constant 240 : index
    %c0_74 = arith.constant 0 : index
    %177 = vector.load %arg2[%c240, %c0_74] : memref<400x288xbf16, #tpu.memory_space<vmem>>, vector<16x288xbf16>
    %178 = arith.truncf %176 : vector<32x16xf32> to vector<32x16xbf16>
    %cst_75 = arith.constant dense<0.000000e+00> : vector<32x288xf32>
    %179 = tpu.matmul %178, %177, %cst_75 {dimension_numbers = #tpu.dot_dimension_numbers<[1], [0], [0], [1], [0, 0, 1, 1], [], []>} : vector<32x16xbf16>, vector<16x288xbf16>, vector<32x288xf32> -> vector<32x288xf32>
    %c576 = arith.constant 576 : index
    %c0_76 = arith.constant 0 : index
    %180 = vector.load %arg3[%c576, %c0_76] : memref<720x128xbf16, #tpu.memory_space<vmem>>, vector<8x32xbf16>
    %181 = vector.extract_strided_slice %179 {offsets = [0, 0], sizes = [32, 32], strides = [1, 1]} : vector<32x288xf32> to vector<32x32xf32>
    %182 = arith.truncf %181 : vector<32x32xf32> to vector<32x32xbf16>
    %cst_77 = arith.constant dense<0.000000e+00> : vector<8x32xf32>
    %183 = tpu.matmul %180, %182, %cst_77 {dimension_numbers = #tpu.dot_dimension_numbers<[1], [0], [0], [1], [0, 0, 1, 1], [], []>} : vector<8x32xbf16>, vector<32x32xbf16>, vector<8x32xf32> -> vector<8x32xf32>
    %c592 = arith.constant 592 : index
    %c0_78 = arith.constant 0 : index
    %184 = vector.load %arg3[%c592, %c0_78] : memref<720x128xbf16, #tpu.memory_space<vmem>>, vector<8x32xbf16>
    %185 = vector.extract_strided_slice %179 {offsets = [0, 32], sizes = [32, 32], strides = [1, 1]} : vector<32x288xf32> to vector<32x32xf32>
    %186 = arith.truncf %185 : vector<32x32xf32> to vector<32x32xbf16>
    %cst_79 = arith.constant dense<0.000000e+00> : vector<8x32xf32>
    %187 = tpu.matmul %184, %186, %cst_79 {dimension_numbers = #tpu.dot_dimension_numbers<[1], [0], [0], [1], [0, 0, 1, 1], [], []>} : vector<8x32xbf16>, vector<32x32xbf16>, vector<8x32xf32> -> vector<8x32xf32>
    %188 = arith.addf %183, %187 : vector<8x32xf32>
    %c608 = arith.constant 608 : index
    %c0_80 = arith.constant 0 : index
    %189 = vector.load %arg3[%c608, %c0_80] : memref<720x128xbf16, #tpu.memory_space<vmem>>, vector<8x32xbf16>
    %190 = vector.extract_strided_slice %179 {offsets = [0, 64], sizes = [32, 32], strides = [1, 1]} : vector<32x288xf32> to vector<32x32xf32>
    %191 = arith.truncf %190 : vector<32x32xf32> to vector<32x32xbf16>
    %cst_81 = arith.constant dense<0.000000e+00> : vector<8x32xf32>
    %192 = tpu.matmul %189, %191, %cst_81 {dimension_numbers = #tpu.dot_dimension_numbers<[1], [0], [0], [1], [0, 0, 1, 1], [], []>} : vector<8x32xbf16>, vector<32x32xbf16>, vector<8x32xf32> -> vector<8x32xf32>
    %193 = arith.addf %188, %192 : vector<8x32xf32>
    %c624 = arith.constant 624 : index
    %c0_82 = arith.constant 0 : index
    %194 = vector.load %arg3[%c624, %c0_82] : memref<720x128xbf16, #tpu.memory_space<vmem>>, vector<8x32xbf16>
    %195 = vector.extract_strided_slice %179 {offsets = [0, 96], sizes = [32, 32], strides = [1, 1]} : vector<32x288xf32> to vector<32x32xf32>
    %196 = arith.truncf %195 : vector<32x32xf32> to vector<32x32xbf16>
    %cst_83 = arith.constant dense<0.000000e+00> : vector<8x32xf32>
    %197 = tpu.matmul %194, %196, %cst_83 {dimension_numbers = #tpu.dot_dimension_numbers<[1], [0], [0], [1], [0, 0, 1, 1], [], []>} : vector<8x32xbf16>, vector<32x32xbf16>, vector<8x32xf32> -> vector<8x32xf32>
    %198 = arith.addf %193, %197 : vector<8x32xf32>
    %c640 = arith.constant 640 : index
    %c0_84 = arith.constant 0 : index
    %199 = vector.load %arg3[%c640, %c0_84] : memref<720x128xbf16, #tpu.memory_space<vmem>>, vector<8x32xbf16>
    %200 = vector.extract_strided_slice %179 {offsets = [0, 128], sizes = [32, 32], strides = [1, 1]} : vector<32x288xf32> to vector<32x32xf32>
    %201 = arith.truncf %200 : vector<32x32xf32> to vector<32x32xbf16>
    %cst_85 = arith.constant dense<0.000000e+00> : vector<8x32xf32>
    %202 = tpu.matmul %199, %201, %cst_85 {dimension_numbers = #tpu.dot_dimension_numbers<[1], [0], [0], [1], [0, 0, 1, 1], [], []>} : vector<8x32xbf16>, vector<32x32xbf16>, vector<8x32xf32> -> vector<8x32xf32>
    %203 = arith.addf %198, %202 : vector<8x32xf32>
    %c656 = arith.constant 656 : index
    %c0_86 = arith.constant 0 : index
    %204 = vector.load %arg3[%c656, %c0_86] : memref<720x128xbf16, #tpu.memory_space<vmem>>, vector<8x32xbf16>
    %205 = vector.extract_strided_slice %179 {offsets = [0, 160], sizes = [32, 32], strides = [1, 1]} : vector<32x288xf32> to vector<32x32xf32>
    %206 = arith.truncf %205 : vector<32x32xf32> to vector<32x32xbf16>
    %cst_87 = arith.constant dense<0.000000e+00> : vector<8x32xf32>
    %207 = tpu.matmul %204, %206, %cst_87 {dimension_numbers = #tpu.dot_dimension_numbers<[1], [0], [0], [1], [0, 0, 1, 1], [], []>} : vector<8x32xbf16>, vector<32x32xbf16>, vector<8x32xf32> -> vector<8x32xf32>
    %208 = arith.addf %203, %207 : vector<8x32xf32>
    %c672 = arith.constant 672 : index
    %c0_88 = arith.constant 0 : index
    %209 = vector.load %arg3[%c672, %c0_88] : memref<720x128xbf16, #tpu.memory_space<vmem>>, vector<8x32xbf16>
    %210 = vector.extract_strided_slice %179 {offsets = [0, 192], sizes = [32, 32], strides = [1, 1]} : vector<32x288xf32> to vector<32x32xf32>
    %211 = arith.truncf %210 : vector<32x32xf32> to vector<32x32xbf16>
    %cst_89 = arith.constant dense<0.000000e+00> : vector<8x32xf32>
    %212 = tpu.matmul %209, %211, %cst_89 {dimension_numbers = #tpu.dot_dimension_numbers<[1], [0], [0], [1], [0, 0, 1, 1], [], []>} : vector<8x32xbf16>, vector<32x32xbf16>, vector<8x32xf32> -> vector<8x32xf32>
    %213 = arith.addf %208, %212 : vector<8x32xf32>
    %c688 = arith.constant 688 : index
    %c0_90 = arith.constant 0 : index
    %214 = vector.load %arg3[%c688, %c0_90] : memref<720x128xbf16, #tpu.memory_space<vmem>>, vector<8x32xbf16>
    %215 = vector.extract_strided_slice %179 {offsets = [0, 224], sizes = [32, 32], strides = [1, 1]} : vector<32x288xf32> to vector<32x32xf32>
    %216 = arith.truncf %215 : vector<32x32xf32> to vector<32x32xbf16>
    %cst_91 = arith.constant dense<0.000000e+00> : vector<8x32xf32>
    %217 = tpu.matmul %214, %216, %cst_91 {dimension_numbers = #tpu.dot_dimension_numbers<[1], [0], [0], [1], [0, 0, 1, 1], [], []>} : vector<8x32xbf16>, vector<32x32xbf16>, vector<8x32xf32> -> vector<8x32xf32>
    %218 = arith.addf %213, %217 : vector<8x32xf32>
    %c704 = arith.constant 704 : index
    %c0_92 = arith.constant 0 : index
    %219 = vector.load %arg3[%c704, %c0_92] : memref<720x128xbf16, #tpu.memory_space<vmem>>, vector<8x32xbf16>
    %220 = vector.extract_strided_slice %179 {offsets = [0, 256], sizes = [32, 32], strides = [1, 1]} : vector<32x288xf32> to vector<32x32xf32>
    %221 = arith.truncf %220 : vector<32x32xf32> to vector<32x32xbf16>
    %cst_93 = arith.constant dense<0.000000e+00> : vector<8x32xf32>
    %222 = tpu.matmul %219, %221, %cst_93 {dimension_numbers = #tpu.dot_dimension_numbers<[1], [0], [0], [1], [0, 0, 1, 1], [], []>} : vector<8x32xbf16>, vector<32x32xbf16>, vector<8x32xf32> -> vector<8x32xf32>
    %223 = arith.addf %218, %222 : vector<8x32xf32>
    %c56 = arith.constant 56 : index
    %c0_94 = arith.constant 0 : index
    %224 = vector.load %arg4[%c56, %c0_94] : memref<176x32xf32, #tpu.memory_space<vmem>>, vector<1x32xf32>
    %225 = vector.broadcast %224 : vector<1x32xf32> to vector<8x32xf32>
    %226 = arith.addf %223, %225 : vector<8x32xf32>
    %227 = arith.negf %226 : vector<8x32xf32>
    %228 = math.exp %227 : vector<8x32xf32>
    %cst_95 = arith.constant 1.000000e+00 : f32
    %229 = vector.broadcast %cst_95 : f32 to vector<8x32xf32>
    %230 = arith.addf %229, %228 : vector<8x32xf32>
    %231 = arith.divf %229, %230 : vector<8x32xf32>
    %232 = arith.mulf %226, %231 : vector<8x32xf32>
    %c256_96 = arith.constant 256 : index
    %c0_97 = arith.constant 0 : index
    %233 = vector.load %arg2[%c256_96, %c0_97] : memref<400x288xbf16, #tpu.memory_space<vmem>>, vector<32x16xbf16>
    %234 = arith.truncf %232 : vector<8x32xf32> to vector<8x32xbf16>
    %cst_98 = arith.constant dense<0.000000e+00> : vector<8x16xf32>
    %235 = tpu.matmul %234, %233, %cst_98 {dimension_numbers = #tpu.dot_dimension_numbers<[1], [0], [0], [1], [0, 0, 1, 1], [], []>} : vector<8x32xbf16>, vector<32x16xbf16>, vector<8x16xf32> -> vector<8x16xf32>
    %c64_99 = arith.constant 64 : index
    %c0_100 = arith.constant 0 : index
    %236 = vector.load %arg4[%c64_99, %c0_100] : memref<176x32xf32, #tpu.memory_space<vmem>>, vector<1x16xf32>
    %237 = vector.broadcast %236 : vector<1x16xf32> to vector<8x16xf32>
    %238 = arith.addf %235, %237 : vector<8x16xf32>
    %239 = arith.negf %238 : vector<8x16xf32>
    %240 = math.exp %239 : vector<8x16xf32>
    %cst_101 = arith.constant 1.000000e+00 : f32
    %241 = vector.broadcast %cst_101 : f32 to vector<8x16xf32>
    %242 = arith.addf %241, %240 : vector<8x16xf32>
    %243 = arith.divf %241, %242 : vector<8x16xf32>
    %244 = arith.mulf %238, %243 : vector<8x16xf32>
    %c128_102 = arith.constant 128 : index
    %c0_103 = arith.constant 0 : index
    %245 = vector.load %arg4[%c128_102, %c0_103] : memref<176x32xf32, #tpu.memory_space<vmem>>, vector<8x8xf32>
    %246 = vector.shape_cast %244 : vector<8x16xf32> to vector<8x1x16xf32>
    %247 = vector.shape_cast %245 : vector<8x8xf32> to vector<8x8x1xf32>
    %248 = vector.broadcast %246 : vector<8x1x16xf32> to vector<8x8x16xf32>
    %249 = vector.broadcast %247 : vector<8x8x1xf32> to vector<8x8x16xf32>
    %250 = arith.addf %248, %249 : vector<8x8x16xf32>
    %cst_104 = arith.constant dense<0xFF800000> : vector<8x16xf32>
    %251 = vector.multi_reduction <maximumf>, %250, %cst_104 [0] : vector<8x8x16xf32> to vector<8x16xf32>
    %252 = vector.shape_cast %251 : vector<8x16xf32> to vector<8x1x16xf32>
    %253 = vector.shape_cast %245 : vector<8x8xf32> to vector<8x8x1xf32>
    %254 = vector.broadcast %252 : vector<8x1x16xf32> to vector<8x8x16xf32>
    %255 = vector.broadcast %253 : vector<8x8x1xf32> to vector<8x8x16xf32>
    %256 = arith.addf %254, %255 : vector<8x8x16xf32>
    %cst_105 = arith.constant dense<0xFF800000> : vector<8x16xf32>
    %257 = vector.multi_reduction <maximumf>, %256, %cst_105 [0] : vector<8x8x16xf32> to vector<8x16xf32>
    %258 = vector.shape_cast %257 : vector<8x16xf32> to vector<8x1x16xf32>
    %259 = vector.shape_cast %245 : vector<8x8xf32> to vector<8x8x1xf32>
    %260 = vector.broadcast %258 : vector<8x1x16xf32> to vector<8x8x16xf32>
    %261 = vector.broadcast %259 : vector<8x8x1xf32> to vector<8x8x16xf32>
    %262 = arith.addf %260, %261 : vector<8x8x16xf32>
    %cst_106 = arith.constant dense<0xFF800000> : vector<8x16xf32>
    %263 = vector.multi_reduction <maximumf>, %262, %cst_106 [0] : vector<8x8x16xf32> to vector<8x16xf32>
    %c288_107 = arith.constant 288 : index
    %c0_108 = arith.constant 0 : index
    %264 = vector.load %arg2[%c288_107, %c0_108] : memref<400x288xbf16, #tpu.memory_space<vmem>>, vector<16x32xbf16>
    %265 = arith.truncf %244 : vector<8x16xf32> to vector<8x16xbf16>
    %cst_109 = arith.constant dense<0.000000e+00> : vector<8x32xf32>
    %266 = tpu.matmul %265, %264, %cst_109 {dimension_numbers = #tpu.dot_dimension_numbers<[1], [0], [0], [1], [0, 0, 1, 1], [], []>} : vector<8x16xbf16>, vector<16x32xbf16>, vector<8x32xf32> -> vector<8x32xf32>
    %c304 = arith.constant 304 : index
    %c0_110 = arith.constant 0 : index
    %267 = vector.load %arg2[%c304, %c0_110] : memref<400x288xbf16, #tpu.memory_space<vmem>>, vector<16x32xbf16>
    %268 = arith.truncf %251 : vector<8x16xf32> to vector<8x16xbf16>
    %cst_111 = arith.constant dense<0.000000e+00> : vector<8x32xf32>
    %269 = tpu.matmul %268, %267, %cst_111 {dimension_numbers = #tpu.dot_dimension_numbers<[1], [0], [0], [1], [0, 0, 1, 1], [], []>} : vector<8x16xbf16>, vector<16x32xbf16>, vector<8x32xf32> -> vector<8x32xf32>
    %270 = arith.addf %266, %269 : vector<8x32xf32>
    %c320_112 = arith.constant 320 : index
    %c0_113 = arith.constant 0 : index
    %271 = vector.load %arg2[%c320_112, %c0_113] : memref<400x288xbf16, #tpu.memory_space<vmem>>, vector<16x32xbf16>
    %272 = arith.truncf %257 : vector<8x16xf32> to vector<8x16xbf16>
    %cst_114 = arith.constant dense<0.000000e+00> : vector<8x32xf32>
    %273 = tpu.matmul %272, %271, %cst_114 {dimension_numbers = #tpu.dot_dimension_numbers<[1], [0], [0], [1], [0, 0, 1, 1], [], []>} : vector<8x16xbf16>, vector<16x32xbf16>, vector<8x32xf32> -> vector<8x32xf32>
    %274 = arith.addf %270, %273 : vector<8x32xf32>
    %c336 = arith.constant 336 : index
    %c0_115 = arith.constant 0 : index
    %275 = vector.load %arg2[%c336, %c0_115] : memref<400x288xbf16, #tpu.memory_space<vmem>>, vector<16x32xbf16>
    %276 = arith.truncf %263 : vector<8x16xf32> to vector<8x16xbf16>
    %cst_116 = arith.constant dense<0.000000e+00> : vector<8x32xf32>
    %277 = tpu.matmul %276, %275, %cst_116 {dimension_numbers = #tpu.dot_dimension_numbers<[1], [0], [0], [1], [0, 0, 1, 1], [], []>} : vector<8x16xbf16>, vector<16x32xbf16>, vector<8x32xf32> -> vector<8x32xf32>
    %278 = arith.addf %274, %277 : vector<8x32xf32>
    %c72 = arith.constant 72 : index
    %c0_117 = arith.constant 0 : index
    %279 = vector.load %arg4[%c72, %c0_117] : memref<176x32xf32, #tpu.memory_space<vmem>>, vector<1x32xf32>
    %280 = vector.broadcast %279 : vector<1x32xf32> to vector<8x32xf32>
    %281 = arith.addf %278, %280 : vector<8x32xf32>
    %282 = arith.negf %281 : vector<8x32xf32>
    %283 = math.exp %282 : vector<8x32xf32>
    %cst_118 = arith.constant 1.000000e+00 : f32
    %284 = vector.broadcast %cst_118 : f32 to vector<8x32xf32>
    %285 = arith.addf %284, %283 : vector<8x32xf32>
    %286 = arith.divf %284, %285 : vector<8x32xf32>
    %287 = arith.mulf %281, %286 : vector<8x32xf32>
    %c352_119 = arith.constant 352 : index
    %c0_120 = arith.constant 0 : index
    %288 = vector.load %arg2[%c352_119, %c0_120] : memref<400x288xbf16, #tpu.memory_space<vmem>>, vector<16x16xbf16>
    %289 = arith.truncf %176 : vector<32x16xf32> to vector<32x16xbf16>
    %cst_121 = arith.constant dense<0.000000e+00> : vector<32x16xf32>
    %290 = tpu.matmul %289, %288, %cst_121 {dimension_numbers = #tpu.dot_dimension_numbers<[1], [0], [0], [1], [0, 0, 1, 1], [], []>} : vector<32x16xbf16>, vector<16x16xbf16>, vector<32x16xf32> -> vector<32x16xf32>
    %c80 = arith.constant 80 : index
    %c0_122 = arith.constant 0 : index
    %291 = vector.load %arg4[%c80, %c0_122] : memref<176x32xf32, #tpu.memory_space<vmem>>, vector<1x16xf32>
    %292 = vector.broadcast %291 : vector<1x16xf32> to vector<32x16xf32>
    %293 = arith.addf %290, %292 : vector<32x16xf32>
    %c368 = arith.constant 368 : index
    %c0_123 = arith.constant 0 : index
    %294 = vector.load %arg2[%c368, %c0_123] : memref<400x288xbf16, #tpu.memory_space<vmem>>, vector<32x16xbf16>
    %295 = arith.truncf %287 : vector<8x32xf32> to vector<8x32xbf16>
    %cst_124 = arith.constant dense<0.000000e+00> : vector<8x16xf32>
    %296 = tpu.matmul %295, %294, %cst_124 {dimension_numbers = #tpu.dot_dimension_numbers<[1], [0], [0], [1], [0, 0, 1, 1], [], []>} : vector<8x32xbf16>, vector<32x16xbf16>, vector<8x16xf32> -> vector<8x16xf32>
    %c88 = arith.constant 88 : index
    %c0_125 = arith.constant 0 : index
    %297 = vector.load %arg4[%c88, %c0_125] : memref<176x32xf32, #tpu.memory_space<vmem>>, vector<1x16xf32>
    %298 = vector.broadcast %297 : vector<1x16xf32> to vector<8x16xf32>
    %299 = arith.addf %296, %298 : vector<8x16xf32>
    %300 = arith.negf %293 : vector<32x16xf32>
    %301 = math.exp %300 : vector<32x16xf32>
    %cst_126 = arith.constant 1.000000e+00 : f32
    %302 = vector.broadcast %cst_126 : f32 to vector<32x16xf32>
    %303 = arith.addf %302, %301 : vector<32x16xf32>
    %304 = arith.divf %302, %303 : vector<32x16xf32>
    %305 = arith.negf %299 : vector<8x16xf32>
    %306 = math.exp %305 : vector<8x16xf32>
    %cst_127 = arith.constant 1.000000e+00 : f32
    %307 = vector.broadcast %cst_127 : f32 to vector<8x16xf32>
    %308 = arith.addf %307, %306 : vector<8x16xf32>
    %309 = arith.divf %307, %308 : vector<8x16xf32>
    %c96_128 = arith.constant 96 : index
    %c0_129 = arith.constant 0 : index
    %310 = vector.load %arg4[%c96_128, %c0_129] : memref<176x32xf32, #tpu.memory_space<vmem>>, vector<1x16xf32>
    %311 = vector.broadcast %310 : vector<1x16xf32> to vector<32x16xf32>
    %312 = arith.mulf %304, %311 : vector<32x16xf32>
    %c104 = arith.constant 104 : index
    %c0_130 = arith.constant 0 : index
    %313 = vector.load %arg4[%c104, %c0_130] : memref<176x32xf32, #tpu.memory_space<vmem>>, vector<1x16xf32>
    %314 = vector.broadcast %313 : vector<1x16xf32> to vector<32x16xf32>
    %315 = arith.addf %312, %314 : vector<32x16xf32>
    %316 = arith.mulf %315, %304 : vector<32x16xf32>
    %c136 = arith.constant 136 : index
    %c0_131 = arith.constant 0 : index
    %317 = vector.load %arg4[%c136, %c0_131] : memref<176x32xf32, #tpu.memory_space<vmem>>, vector<32x16xf32>
    %318 = arith.addf %316, %317 : vector<32x16xf32>
    %c112 = arith.constant 112 : index
    %c0_132 = arith.constant 0 : index
    %319 = vector.load %arg4[%c112, %c0_132] : memref<176x32xf32, #tpu.memory_space<vmem>>, vector<1x16xf32>
    %320 = vector.broadcast %319 : vector<1x16xf32> to vector<8x16xf32>
    %321 = arith.mulf %309, %320 : vector<8x16xf32>
    %c120 = arith.constant 120 : index
    %c0_133 = arith.constant 0 : index
    %322 = vector.load %arg4[%c120, %c0_133] : memref<176x32xf32, #tpu.memory_space<vmem>>, vector<1x16xf32>
    %323 = vector.broadcast %322 : vector<1x16xf32> to vector<8x16xf32>
    %324 = arith.addf %321, %323 : vector<8x16xf32>
    %325 = arith.mulf %324, %309 : vector<8x16xf32>
    %c168 = arith.constant 168 : index
    %c0_134 = arith.constant 0 : index
    %326 = vector.load %arg4[%c168, %c0_134] : memref<176x32xf32, #tpu.memory_space<vmem>>, vector<8x16xf32>
    %327 = arith.addf %325, %326 : vector<8x16xf32>
    %cst_135 = arith.constant 0.000000e+00 : f32
    %328 = vector.broadcast %cst_135 : f32 to vector<40x128xf32>
    %c0_136 = arith.constant 0 : index
    %c0_137 = arith.constant 0 : index
    %329 = vector.load %arg5[%c0_136, %c0_137] : memref<40x128xf32, #tpu.memory_space<vmem>>, vector<40x128xf32>
    tpu.vector_store %arg5[%c0_136, %c0_137], %328 {strides = array<i32>} : memref<40x128xf32, #tpu.memory_space<vmem>>, vector<40x128xf32>,
    %c0_138 = arith.constant 0 : index
    %c0_139 = arith.constant 0 : index
    %330 = vector.load %arg5[%c0_138, %c0_139] : memref<40x128xf32, #tpu.memory_space<vmem>>, vector<32x16xf32>
    tpu.vector_store %arg5[%c0_138, %c0_139], %318 {strides = array<i32>} : memref<40x128xf32, #tpu.memory_space<vmem>>, vector<32x16xf32>,
    %c0_140 = arith.constant 0 : index
    %c16_141 = arith.constant 16 : index
    %331 = vector.load %arg5[%c0_140, %c16_141] : memref<40x128xf32, #tpu.memory_space<vmem>>, vector<32x16xf32>
    tpu.vector_store %arg5[%c0_140, %c16_141], %293 {strides = array<i32>} : memref<40x128xf32, #tpu.memory_space<vmem>>, vector<32x16xf32>,
    %c32_142 = arith.constant 32 : index
    %c0_143 = arith.constant 0 : index
    %332 = vector.load %arg5[%c32_142, %c0_143] : memref<40x128xf32, #tpu.memory_space<vmem>>, vector<8x16xf32>
    tpu.vector_store %arg5[%c32_142, %c0_143], %327 {strides = array<i32>} : memref<40x128xf32, #tpu.memory_space<vmem>>, vector<8x16xf32>,
    %c32_144 = arith.constant 32 : index
    %c16_145 = arith.constant 16 : index
    %333 = vector.load %arg5[%c32_144, %c16_145] : memref<40x128xf32, #tpu.memory_space<vmem>>, vector<8x16xf32>
    tpu.vector_store %arg5[%c32_144, %c16_145], %299 {strides = array<i32>} : memref<40x128xf32, #tpu.memory_space<vmem>>, vector<8x16xf32>,
    return
  }
  func.func @transform_0(%arg0: i32) -> (i32, i32) {
    %c0_i32 = arith.constant 0 : i32
    %c0_i32_0 = arith.constant 0 : i32
    %c0_i32_1 = arith.constant 0 : i32
    return %c0_i32, %c0_i32_0 : i32, i32
  }
  func.func @transform_1(%arg0: i32) -> (i32, i32) {
    %c0_i32 = arith.constant 0 : i32
    %c0_i32_0 = arith.constant 0 : i32
    %c0_i32_1 = arith.constant 0 : i32
    return %c0_i32, %c0_i32_0 : i32, i32
  }
  func.func @transform_2(%arg0: i32) -> (i32, i32) {
    %c0_i32 = arith.constant 0 : i32
    %c0_i32_0 = arith.constant 0 : i32
    %c0_i32_1 = arith.constant 0 : i32
    return %c0_i32, %c0_i32_0 : i32, i32
  }
  func.func @transform_3(%arg0: i32) -> (i32, i32) {
    %c0_i32 = arith.constant 0 : i32
    %c0_i32_0 = arith.constant 0 : i32
    %c0_i32_1 = arith.constant 0 : i32
    return %c0_i32, %c0_i32_0 : i32, i32
  }
  func.func @transform_4(%arg0: i32) -> (i32, i32) {
    %c0_i32 = arith.constant 0 : i32
    %c0_i32_0 = arith.constant 0 : i32
    %c0_i32_1 = arith.constant 0 : i32
    return %c0_i32, %c0_i32_0 : i32, i32
  }
}

</mosaic_0001>

<llo_original>
// kernel: forward.1
$region0: #{forward.1}
  #allocation0 [shape = 'u32[]', space=smem, size = 0x4, offset = 0x4, fixed_abs, tag = 'smem constant byte address 0x4 - core index']
  #allocation1 [shape = 'u32[144,128]{1,0:T(1,128)}', space=vmem, size = 0x12000, scoped, tag = 'internal scratch']
  %s0 = inlined_call_operand.vmem [shape: bf16[128,128], index: 0, kind: input, shape index: {}]
  %s1 = inlined_call_operand.vmem [shape: bf16[400,288], index: 1, kind: input, shape index: {}]
  %s2 = inlined_call_operand.vmem [shape: bf16[720,128], index: 2, kind: input, shape index: {}]
  %s3 = inlined_call_operand.vmem [shape: f32[176,32], index: 3, kind: input, shape index: {}]
  %s4 = inlined_call_operand.vmem [shape: f32[40,128], index: 4, kind: output, shape index: {}]
  %s5 = sld [smem:[#allocation0]]
  $region26: #{forward.1} parent=0
    _
  %s7 = ssub.s32 1, %s5
  %s8 = scalar_select 0, %s7, %s5
  // Predicated region
  $region2: #{forward.1} parent=0 // pred_check
    _
  $region3: #{forward.1} parent=0 // pred_check_branch
    %10 = sbr.rel (0) target = $region5
  $region4: #{forward.1} parent=0 // pred_region
    _
  $region5: #{forward.1} parent=0 // pred_fallthru
    _
  // Predicated region
  $region6: #{forward.1} parent=0 // pred_check
    _
  $region7: #{forward.1} parent=0 // pred_check_branch
    %12 = sbr.rel (0) target = $region9
  $region8: #{forward.1} parent=0 // pred_region
    _
  $region9: #{forward.1} parent=0 // pred_fallthru
    _
  // Predicated region
  $region10: #{forward.1} parent=0 // pred_check
    _
  $region11: #{forward.1} parent=0 // pred_check_branch
    %14 = sbr.rel (0) target = $region13
  $region12: #{forward.1} parent=0 // pred_region
    _
  $region13: #{forward.1} parent=0 // pred_fallthru
    _
  // Predicated region
  $region14: #{forward.1} parent=0 // pred_check
    _
  $region15: #{forward.1} parent=0 // pred_check_branch
    %16 = sbr.rel (0) target = $region17
  $region16: #{forward.1} parent=0 // pred_region
    _
  $region17: #{forward.1} parent=0 // pred_fallthru
    _
  %v18 = vld [vmem:[%s0] sm:$0xf]
  %v19 = vld [vmem:[%s0 + $0x4] sm:$0xf]
  %v20 = vld [vmem:[%s0 + $0x8] sm:$0xf]
  %v21 = vld [vmem:[%s0 + $0xc] sm:$0xf]
  %v22 = vld [vmem:[%s0 + $0x10] sm:$0xf]
  %v23 = vld [vmem:[%s0 + $0x14] sm:$0xf]
  %v24 = vld [vmem:[%s0 + $0x18] sm:$0xf]
  %v25 = vld [vmem:[%s0 + $0x1c] sm:$0xf]
  %v26 = vld [vmem:[%s0 + $0x20] sm:$0xf]
  %v27 = vld [vmem:[%s0 + $0x24] sm:$0xf]
  %v28 = vld [vmem:[%s0 + $0x28] sm:$0xf]
  %v29 = vld [vmem:[%s0 + $0x2c] sm:$0xf]
  %v30 = vld [vmem:[%s0 + $0x30] sm:$0xf]
  %v31 = vld [vmem:[%s0 + $0x34] sm:$0xf]
  %v32 = vld [vmem:[%s0 + $0x38] sm:$0xf]
  %v33 = vld [vmem:[%s0 + $0x3c] sm:$0xf]
  %v34 = vld [vmem:[%s1] sm:$0xf]
  %v35 = vld [vmem:[%s1 + $0xc] sm:$0xf]
  %v36 = vld [vmem:[%s1 + $0x18] sm:$0xf]
  %v37 = vld [vmem:[%s1 + $0x24] sm:$0xf]
  %v38 = vld [vmem:[%s1 + $0x30] sm:$0xf]
  %v39 = vld [vmem:[%s1 + $0x3c] sm:$0xf]
  %v40 = vld [vmem:[%s1 + $0x48] sm:$0xf]
  %v41 = vld [vmem:[%s1 + $0x54] sm:$0xf]
  %v42 = vld [vmem:[%s1 + $0x60] sm:$0xf]
  %v43 = vld [vmem:[%s1 + $0x6c] sm:$0xf]
  %v44 = vld [vmem:[%s1 + $0x78] sm:$0xf]
  %v45 = vld [vmem:[%s1 + $0x84] sm:$0xf]
  %v46 = vld [vmem:[%s1 + $0x90] sm:$0xf]
  %v47 = vld [vmem:[%s1 + $0x9c] sm:$0xf]
  %v48 = vld [vmem:[%s1 + $0xa8] sm:$0xf]
  %v49 = vld [vmem:[%s1 + $0xb4] sm:$0xf]
  %v50 = vld [vmem:[%s3] sm:$0x1]
  %v51 = vlaneseq
  %v52 = vshrl.u32 %v51, 7
  %v53 = vsub.s32 0, %v52
  %v54 = vrot.slane %v50, %v53
  %v71 = vunpack.c.l.b16 %v18
  %v72 = vunpack.c.l.b16 %v19
  %v73 = vunpack.c.l.b16 %v20
  %v74 = vunpack.c.l.b16 %v21
  %v75 = vunpack.c.l.b16 %v22
  %v76 = vunpack.c.l.b16 %v23
  %v77 = vunpack.c.l.b16 %v24
  %v78 = vunpack.c.l.b16 %v25
  %v79 = vunpack.c.l.b16 %v26
  %v80 = vunpack.c.l.b16 %v27
  %v81 = vunpack.c.l.b16 %v28
  %v82 = vunpack.c.l.b16 %v29
  %v83 = vunpack.c.l.b16 %v30
  %v84 = vunpack.c.l.b16 %v31
  %v85 = vunpack.c.l.b16 %v32
  %v86 = vunpack.c.l.b16 %v33
  %v87 = vpack.c.b16 %v72, %v71
  %v88 = vpack.c.b16 %v74, %v73
  %v89 = vpack.c.b16 %v76, %v75
  %v90 = vpack.c.b16 %v78, %v77
  %v91 = vpack.c.b16 %v80, %v79
  %v92 = vpack.c.b16 %v82, %v81
  %v93 = vpack.c.b16 %v84, %v83
  %v94 = vpack.c.b16 %v86, %v85
  %v119 = vunpack.c.l.b16 %v34
  %v120 = vunpack.c.l.b16 %v35
  %v121 = vunpack.c.l.b16 %v36
  %v122 = vunpack.c.l.b16 %v37
  %v123 = vunpack.c.l.b16 %v38
  %v124 = vunpack.c.l.b16 %v39
  %v125 = vunpack.c.l.b16 %v40
  %v126 = vunpack.c.l.b16 %v41
  %v127 = vunpack.c.l.b16 %v42
  %v128 = vunpack.c.l.b16 %v43
  %v129 = vunpack.c.l.b16 %v44
  %v130 = vunpack.c.l.b16 %v45
  %v131 = vunpack.c.l.b16 %v46
  %v132 = vunpack.c.l.b16 %v47
  %v133 = vunpack.c.l.b16 %v48
  %v134 = vunpack.c.l.b16 %v49
  %v135 = vpack.c.b16 %v120, %v119
  %v136 = vpack.c.b16 %v122, %v121
  %v137 = vpack.c.b16 %v124, %v123
  %v138 = vpack.c.b16 %v126, %v125
  %v139 = vpack.c.b16 %v128, %v127
  %v140 = vpack.c.b16 %v130, %v129
  %v141 = vpack.c.b16 %v132, %v131
  %v142 = vpack.c.b16 %v134, %v133
  %151 = vmatprep.subr.bf16.mxu0 0
  %152 = vmatpush1.bf16.msra.mxu0 %v135
  %153 = vmatprep.subr.bf16.mxu0 0
  %154 = vmatpush1.bf16.msra.mxu0 %v136
  %155 = vmatprep.subr.bf16.mxu0 0
  %156 = vmatpush1.bf16.msra.mxu0 %v137
  %157 = vmatprep.subr.bf16.mxu0 0
  %158 = vmatpush1.bf16.msra.mxu0 %v138
  %159 = vmatprep.subr.bf16.mxu0 0
  %160 = vmatpush1.bf16.msra.mxu0 %v139
  %161 = vmatprep.subr.bf16.mxu0 0
  %162 = vmatpush1.bf16.msra.mxu0 %v140
  %163 = vmatprep.subr.bf16.mxu0 0
  %164 = vmatpush1.bf16.msra.mxu0 %v141
  %165 = vmatprep.subr.bf16.mxu0 0
  %166 = vmatpush1.bf16.msra.mxu0 %v142
  %167 = vmatprep.subr.bf16.mxu0 0
  %168 = vmatpush1.bf16.msra.mxu0 0
  %169 = vmatprep.subr.bf16.mxu0 0
  %170 = vmatpush1.bf16.msra.mxu0 0
  %171 = vmatprep.subr.bf16.mxu0 0
  %172 = vmatpush1.bf16.msra.mxu0 0
  %173 = vmatprep.subr.bf16.mxu0 0
  %174 = vmatpush1.bf16.msra.mxu0 0
  %175 = vmatprep.subr.bf16.mxu0 0
  %176 = vmatpush1.bf16.msra.mxu0 0
  %177 = vmatprep.subr.bf16.mxu0 0
  %178 = vmatpush1.bf16.msra.mxu0 0
  %179 = vmatprep.subr.bf16.mxu0 0
  %180 = vmatpush1.bf16.msra.mxu0 0
  %181 = vmatprep.subr.bf16.mxu0 0
  %182 = vmatpush1.bf16.msra.mxu0 0
  %183 = vmatprep.mubr.bf16.mxu0 0
  %184 = vmatmul.mubr.bf16.gmra.mrb[0].mxu0 %v87
  %v185 = vpop.f32.mrb[0].mxu0
  %v186 = vadd.f32 %v54, %v185
  %v187 = vpop.f32.mrb[0].mxu0
  %v188 = vpop.f32.mrb[0].mxu0
  %v189 = vadd.f32 %v54, %v188
  %v190 = vpop.f32.mrb[0].mxu0
  %191 = vmatprep.mubr.bf16.mxu0 0
  %192 = vmatmul.mubr.bf16.gmra.mrb[0].mxu0 %v88
  %v193 = vpop.f32.mrb[0].mxu0
  %v194 = vadd.f32 %v54, %v193
  %v195 = vpop.f32.mrb[0].mxu0
  %v196 = vpop.f32.mrb[0].mxu0
  %v197 = vadd.f32 %v54, %v196
  %v198 = vpop.f32.mrb[0].mxu0
  %199 = vmatprep.mubr.bf16.mxu0 0
  %200 = vmatmul.mubr.bf16.gmra.mrb[0].mxu0 %v89
  %v201 = vpop.f32.mrb[0].mxu0
  %v202 = vadd.f32 %v54, %v201
  %v203 = vpop.f32.mrb[0].mxu0
  %v204 = vpop.f32.mrb[0].mxu0
  %v205 = vadd.f32 %v54, %v204
  %v206 = vpop.f32.mrb[0].mxu0
  %207 = vmatprep.mubr.bf16.mxu0 0
  %208 = vmatmul.mubr.bf16.gmra.mrb[0].mxu0 %v90
  %v209 = vpop.f32.mrb[0].mxu0
  %v210 = vadd.f32 %v54, %v209
  %v211 = vpop.f32.mrb[0].mxu0
  %v212 = vpop.f32.mrb[0].mxu0
  %v213 = vadd.f32 %v54, %v212
  %v214 = vpop.f32.mrb[0].mxu0
  %215 = vmatprep.mubr.bf16.mxu0 0
  %216 = vmatmul.mubr.bf16.gmra.mrb[0].mxu0 %v91
  %v217 = vpop.f32.mrb[0].mxu0
  %v218 = vadd.f32 %v54, %v217
  %v219 = vpop.f32.mrb[0].mxu0
  %v220 = vpop.f32.mrb[0].mxu0
  %v221 = vadd.f32 %v54, %v220
  %v222 = vpop.f32.mrb[0].mxu0
  %223 = vmatprep.mubr.bf16.mxu0 0
  %224 = vmatmul.mubr.bf16.gmra.mrb[0].mxu0 %v92
  %v225 = vpop.f32.mrb[0].mxu0
  %v226 = vadd.f32 %v54, %v225
  %v227 = vpop.f32.mrb[0].mxu0
  %v228 = vpop.f32.mrb[0].mxu0
  %v229 = vadd.f32 %v54, %v228
  %v230 = vpop.f32.mrb[0].mxu0
  %231 = vmatprep.mubr.bf16.mxu0 0
  %232 = vmatmul.mubr.bf16.gmra.mrb[0].mxu0 %v93
  %v233 = vpop.f32.mrb[0].mxu0
  %v234 = vadd.f32 %v54, %v233
  %v235 = vpop.f32.mrb[0].mxu0
  %v236 = vpop.f32.mrb[0].mxu0
  %v237 = vadd.f32 %v54, %v236
  %v238 = vpop.f32.mrb[0].mxu0
  %239 = vmatprep.mubr.bf16.mxu0 0
  %240 = vmatmul.mubr.bf16.gmra.mrb[0].mxu0 %v94
  %v241 = vpop.f32.mrb[0].mxu0
  %v242 = vadd.f32 %v54, %v241
  %v243 = vpop.f32.mrb[0].mxu0
  %v244 = vpop.f32.mrb[0].mxu0
  %v245 = vadd.f32 %v54, %v244
  %v246 = vpop.f32.mrb[0].mxu0
  %247 = vdwg.mxu0
  %v248 = vxor.u32 %v186, 2147483648
  %v249 = vxor.u32 %v189, 2147483648
  %v250 = vxor.u32 %v194, 2147483648
  %v251 = vxor.u32 %v197, 2147483648
  %v252 = vxor.u32 %v202, 2147483648
  %v253 = vxor.u32 %v205, 2147483648
  %v254 = vxor.u32 %v210, 2147483648
  %v255 = vxor.u32 %v213, 2147483648
  %v256 = vxor.u32 %v218, 2147483648
  %v257 = vxor.u32 %v221, 2147483648
  %v258 = vxor.u32 %v226, 2147483648
  %v259 = vxor.u32 %v229, 2147483648
  %v260 = vxor.u32 %v234, 2147483648
  %v261 = vxor.u32 %v237, 2147483648
  %v262 = vxor.u32 %v242, 2147483648
  %v263 = vxor.u32 %v245, 2147483648
  %v264 = vmul.f32 %v248, 1.442695
  %v265 = vpow.pop %v264
  %v266 = vmul.f32 %v249, 1.442695
  %v267 = vpow.pop %v266
  %v268 = vmul.f32 %v250, 1.442695
  %v269 = vpow.pop %v268
  %v270 = vmul.f32 %v251, 1.442695
  %v271 = vpow.pop %v270
  %v272 = vmul.f32 %v252, 1.442695
  %v273 = vpow.pop %v272
  %v274 = vmul.f32 %v253, 1.442695
  %v275 = vpow.pop %v274
  %v276 = vmul.f32 %v254, 1.442695
  %v277 = vpow.pop %v276
  %v278 = vmul.f32 %v255, 1.442695
  %v279 = vpow.pop %v278
  %v280 = vmul.f32 %v256, 1.442695
  %v281 = vpow.pop %v280
  %v282 = vmul.f32 %v257, 1.442695
  %v283 = vpow.pop %v282
  %v284 = vmul.f32 %v258, 1.442695
  %v285 = vpow.pop %v284
  %v286 = vmul.f32 %v259, 1.442695
  %v287 = vpow.pop %v286
  %v288 = vmul.f32 %v260, 1.442695
  %v289 = vpow.pop %v288
  %v290 = vmul.f32 %v261, 1.442695
  %v291 = vpow.pop %v290
  %v292 = vmul.f32 %v262, 1.442695
  %v293 = vpow.pop %v292
  %v294 = vmul.f32 %v263, 1.442695
  %v295 = vpow.pop %v294
  %v296 = vadd.f32 %v265, 1.0
  %v297 = vadd.f32 %v267, 1.0
  %v298 = vadd.f32 %v269, 1.0
  %v299 = vadd.f32 %v271, 1.0
  %v300 = vadd.f32 %v273, 1.0
  %v301 = vadd.f32 %v275, 1.0
  %v302 = vadd.f32 %v277, 1.0
  %v303 = vadd.f32 %v279, 1.0
  %v304 = vadd.f32 %v281, 1.0
  %v305 = vadd.f32 %v283, 1.0
  %v306 = vadd.f32 %v285, 1.0
  %v307 = vadd.f32 %v287, 1.0
  %v308 = vadd.f32 %v289, 1.0
  %v309 = vadd.f32 %v291, 1.0
  %v310 = vadd.f32 %v293, 1.0
  %v311 = vadd.f32 %v295, 1.0
  %v312 = vrcp.pop %v296
  %v313 = vmul.f32 1.0, %v312
  %v314 = vrcp.pop %v297
  %v315 = vmul.f32 1.0, %v314
  %v316 = vrcp.pop %v298
  %v317 = vmul.f32 1.0, %v316
  %v318 = vrcp.pop %v299
  %v319 = vmul.f32 1.0, %v318
  %v320 = vrcp.pop %v300
  %v321 = vmul.f32 1.0, %v320
  %v322 = vrcp.pop %v301
  %v323 = vmul.f32 1.0, %v322
  %v324 = vrcp.pop %v302
  %v325 = vmul.f32 1.0, %v324
  %v326 = vrcp.pop %v303
  %v327 = vmul.f32 1.0, %v326
  %v328 = vrcp.pop %v304
  %v329 = vmul.f32 1.0, %v328
  %v330 = vrcp.pop %v305
  %v331 = vmul.f32 1.0, %v330
  %v332 = vrcp.pop %v306
  %v333 = vmul.f32 1.0, %v332
  %v334 = vrcp.pop %v307
  %v335 = vmul.f32 1.0, %v334
  %v336 = vrcp.pop %v308
  %v337 = vmul.f32 1.0, %v336
  %v338 = vrcp.pop %v309
  %v339 = vmul.f32 1.0, %v338
  %v340 = vrcp.pop %v310
  %v341 = vmul.f32 1.0, %v340
  %v342 = vrcp.pop %v311
  %v343 = vmul.f32 1.0, %v342
  %v344 = vmul.f32 %v186, %v313
  %v345 = vmul.f32 %v189, %v315
  %v346 = vmul.f32 %v194, %v317
  %v347 = vmul.f32 %v197, %v319
  %v348 = vmul.f32 %v202, %v321
  %v349 = vmul.f32 %v205, %v323
  %v350 = vmul.f32 %v210, %v325
  %v351 = vmul.f32 %v213, %v327
  %v352 = vmul.f32 %v218, %v329
  %v353 = vmul.f32 %v221, %v331
  %v354 = vmul.f32 %v226, %v333
  %v355 = vmul.f32 %v229, %v335
  %v356 = vmul.f32 %v234, %v337
  %v357 = vmul.f32 %v237, %v339
  %v358 = vmul.f32 %v242, %v341
  %v359 = vmul.f32 %v245, %v343
  %v360 = vld [vmem:[%s1 + $0xc0] sm:$0xff]
  %v361 = vpack.c.bf16 %v345, %v344
  %v362 = vpack.c.bf16 %v347, %v346
  %v363 = vpack.c.bf16 %v349, %v348
  %v364 = vpack.c.bf16 %v351, %v350
  %v365 = vpack.c.bf16 %v353, %v352
  %v366 = vpack.c.bf16 %v355, %v354
  %v367 = vpack.c.bf16 %v357, %v356
  %v368 = vpack.c.bf16 %v359, %v358
  %v370 = vunpack.c.l.b16 %v360
  %v371 = vunpack.c.h.b16 %v360
  %v372 = vpack.c.b16 %v370, %v370
  %v373 = vpack.c.b16 %v371, %v371
  %vm374 = vcmask 64512
  %v376 = vsel %vm374, %v361, 0
  %v379 = vsel %vm374, %v362, 0
  %v382 = vsel %vm374, %v363, 0
  %v385 = vsel %vm374, %v364, 0
  %v388 = vsel %vm374, %v365, 0
  %v391 = vsel %vm374, %v366, 0
  %v394 = vsel %vm374, %v367, 0
  %v397 = vsel %vm374, %v368, 0
  %vm399 = vcmask 1043456
  %v401 = vsel %vm399, %v372, 0
  %v404 = vsel %vm399, %v373, 0
  %406 = vmatprep.subr.bf16.mxu0 %v404
  %407 = vmatpush1.bf16.msra.mxu0 %v401
  %408 = vmatprep.subr.bf16.mxu0 0
  %409 = vmatpush1.bf16.msra.mxu0 0
  %410 = vmatprep.subr.bf16.mxu0 0
  %411 = vmatpush1.bf16.msra.mxu0 0
  %412 = vmatprep.subr.bf16.mxu0 0
  %413 = vmatpush1.bf16.msra.mxu0 0
  %414 = vmatprep.subr.bf16.mxu0 0
  %415 = vmatpush1.bf16.msra.mxu0 0
  %416 = vmatprep.subr.bf16.mxu0 0
  %417 = vmatpush1.bf16.msra.mxu0 0
  %418 = vmatprep.subr.bf16.mxu0 0
  %419 = vmatpush1.bf16.msra.mxu0 0
  %420 = vmatprep.subr.bf16.mxu0 0
  %421 = vmatpush1.bf16.msra.mxu0 0
  %422 = vmatprep.subr.bf16.mxu0 0
  %423 = vmatpush1.bf16.msra.mxu0 0
  %424 = vmatprep.subr.bf16.mxu0 0
  %425 = vmatpush1.bf16.msra.mxu0 0
  %426 = vmatprep.subr.bf16.mxu0 0
  %427 = vmatpush1.bf16.msra.mxu0 0
  %428 = vmatprep.subr.bf16.mxu0 0
  %429 = vmatpush1.bf16.msra.mxu0 0
  %430 = vmatprep.subr.bf16.mxu0 0
  %431 = vmatpush1.bf16.msra.mxu0 0
  %432 = vmatprep.subr.bf16.mxu0 0
  %433 = vmatpush1.bf16.msra.mxu0 0
  %434 = vmatprep.subr.bf16.mxu0 0
  %435 = vmatpush1.bf16.msra.mxu0 0
  %436 = vmatprep.subr.bf16.mxu0 0
  %437 = vmatpush1.bf16.msra.mxu0 0
  %438 = vmatprep.mubr.bf16.mxu0 0
  %439 = vmatmul.mubr.bf16.gmra.mrb[0].mxu0 %v376
  %v440 = vpop.f32.mrb[0].mxu0
  %v441 = vadd.f32 0.0, %v440
  %v442 = vpop.f32.mrb[0].mxu0
  %v443 = vadd.f32 0.0, %v442
  %v444 = vpop.f32.mrb[0].mxu0
  %v445 = vadd.f32 0.0, %v444
  %v446 = vpop.f32.mrb[0].mxu0
  %v447 = vadd.f32 0.0, %v446
  %448 = vmatprep.mubr.bf16.mxu0 0
  %449 = vmatmul.mubr.bf16.gmra.mrb[0].mxu0 %v379
  %v450 = vpop.f32.mrb[0].mxu0
  %v451 = vadd.f32 0.0, %v450
  %v452 = vpop.f32.mrb[0].mxu0
  %v453 = vadd.f32 0.0, %v452
  %v454 = vpop.f32.mrb[0].mxu0
  %v455 = vadd.f32 0.0, %v454
  %v456 = vpop.f32.mrb[0].mxu0
  %v457 = vadd.f32 0.0, %v456
  %458 = vmatprep.mubr.bf16.mxu0 0
  %459 = vmatmul.mubr.bf16.gmra.mrb[0].mxu0 %v382
  %v460 = vpop.f32.mrb[0].mxu0
  %v461 = vadd.f32 0.0, %v460
  %v462 = vpop.f32.mrb[0].mxu0
  %v463 = vadd.f32 0.0, %v462
  %v464 = vpop.f32.mrb[0].mxu0
  %v465 = vadd.f32 0.0, %v464
  %v466 = vpop.f32.mrb[0].mxu0
  %v467 = vadd.f32 0.0, %v466
  %468 = vmatprep.mubr.bf16.mxu0 0
  %469 = vmatmul.mubr.bf16.gmra.mrb[0].mxu0 %v385
  %v470 = vpop.f32.mrb[0].mxu0
  %v471 = vadd.f32 0.0, %v470
  %v472 = vpop.f32.mrb[0].mxu0
  %v473 = vadd.f32 0.0, %v472
  %v474 = vpop.f32.mrb[0].mxu0
  %v475 = vadd.f32 0.0, %v474
  %v476 = vpop.f32.mrb[0].mxu0
  %v477 = vadd.f32 0.0, %v476
  %478 = vmatprep.mubr.bf16.mxu0 0
  %479 = vmatmul.mubr.bf16.gmra.mrb[0].mxu0 %v388
  %v480 = vpop.f32.mrb[0].mxu0
  %v481 = vadd.f32 0.0, %v480
  %v482 = vpop.f32.mrb[0].mxu0
  %v483 = vadd.f32 0.0, %v482
  %v484 = vpop.f32.mrb[0].mxu0
  %v485 = vadd.f32 0.0, %v484
  %v486 = vpop.f32.mrb[0].mxu0
  %v487 = vadd.f32 0.0, %v486
  %488 = vmatprep.mubr.bf16.mxu0 0
  %489 = vmatmul.mubr.bf16.gmra.mrb[0].mxu0 %v391
  %v490 = vpop.f32.mrb[0].mxu0
  %v491 = vadd.f32 0.0, %v490
  %v492 = vpop.f32.mrb[0].mxu0
  %v493 = vadd.f32 0.0, %v492
  %v494 = vpop.f32.mrb[0].mxu0
  %v495 = vadd.f32 0.0, %v494
  %v496 = vpop.f32.mrb[0].mxu0
  %v497 = vadd.f32 0.0, %v496
  %498 = vmatprep.mubr.bf16.mxu0 0
  %499 = vmatmul.mubr.bf16.gmra.mrb[0].mxu0 %v394
  %v500 = vpop.f32.mrb[0].mxu0
  %v501 = vadd.f32 0.0, %v500
  %v502 = vpop.f32.mrb[0].mxu0
  %v503 = vadd.f32 0.0, %v502
  %v504 = vpop.f32.mrb[0].mxu0
  %v505 = vadd.f32 0.0, %v504
  %v506 = vpop.f32.mrb[0].mxu0
  %v507 = vadd.f32 0.0, %v506
  %508 = vmatprep.mubr.bf16.mxu0 0
  %509 = vmatmul.mubr.bf16.gmra.mrb[0].mxu0 %v397
  %v510 = vpop.f32.mrb[0].mxu0
  %v511 = vadd.f32 0.0, %v510
  %v512 = vpop.f32.mrb[0].mxu0
  %v513 = vadd.f32 0.0, %v512
  %v514 = vpop.f32.mrb[0].mxu0
  %v515 = vadd.f32 0.0, %v514
  %v516 = vpop.f32.mrb[0].mxu0
  %v517 = vadd.f32 0.0, %v516
  %518 = vdwg.mxu0
  %v519 = vld [vmem:[%s2] sm:$0xf]
  %v520 = vld [vmem:[%s2 + $0x4] sm:$0xf]
  %v521 = vld [vmem:[%s2 + $0x8] sm:$0xf]
  %v522 = vld [vmem:[%s2 + $0xc] sm:$0xf]
  %v523 = vpack.c.bf16 %v445, %v441
  %v524 = vpack.c.bf16 %v455, %v451
  %v525 = vpack.c.bf16 %v465, %v461
  %v526 = vpack.c.bf16 %v475, %v471
  %v527 = vpack.c.bf16 %v485, %v481
  %v528 = vpack.c.bf16 %v495, %v491
  %v529 = vpack.c.bf16 %v505, %v501
  %v530 = vpack.c.bf16 %v515, %v511
  %v531 = vld [vmem:[%s2 + $0x10] sm:$0xf]
  %v532 = vld [vmem:[%s2 + $0x14] sm:$0xf]
  %v533 = vld [vmem:[%s2 + $0x18] sm:$0xf]
  %v534 = vld [vmem:[%s2 + $0x1c] sm:$0xf]
  %v539 = vunpack.c.l.b16 %v531
  %v540 = vunpack.c.l.b16 %v532
  %v541 = vunpack.c.l.b16 %v533
  %v542 = vunpack.c.l.b16 %v534
  %v543 = vpack.c.b16 %v540, %v539
  %v544 = vpack.c.b16 %v542, %v541
  %555 = vrot.lane.b32.xlu0 %v523, 112
  %v556 = vpop.permute.xlu0 %555
  %557 = vrot.lane.b32.xlu0 %v524, 112
  %v558 = vpop.permute.xlu0 %557
  %559 = vrot.lane.b32.xlu0 %v525, 112
  %v560 = vpop.permute.xlu0 %559
  %561 = vrot.lane.b32.xlu0 %v526, 112
  %v562 = vpop.permute.xlu0 %561
  %563 = vrot.lane.b32.xlu0 %v527, 112
  %v564 = vpop.permute.xlu0 %563
  %565 = vrot.lane.b32.xlu0 %v528, 112
  %v566 = vpop.permute.xlu0 %565
  %567 = vrot.lane.b32.xlu0 %v529, 112
  %v568 = vpop.permute.xlu0 %567
  %569 = vrot.lane.b32.xlu0 %v530, 112
  %v570 = vpop.permute.xlu0 %569
  %579 = vmatprep.subr.bf16.mxu0 0
  %580 = vmatpush1.bf16.msra.mxu0 %v556
  %581 = vmatprep.subr.bf16.mxu0 0
  %582 = vmatpush1.bf16.msra.mxu0 %v558
  %583 = vmatprep.subr.bf16.mxu0 0
  %584 = vmatpush1.bf16.msra.mxu0 %v560
  %585 = vmatprep.subr.bf16.mxu0 0
  %586 = vmatpush1.bf16.msra.mxu0 %v562
  %587 = vmatprep.subr.bf16.mxu0 0
  %588 = vmatpush1.bf16.msra.mxu0 %v564
  %589 = vmatprep.subr.bf16.mxu0 0
  %590 = vmatpush1.bf16.msra.mxu0 %v566
  %591 = vmatprep.subr.bf16.mxu0 0
  %592 = vmatpush1.bf16.msra.mxu0 %v568
  %593 = vmatprep.subr.bf16.mxu0 0
  %594 = vmatpush1.bf16.msra.mxu0 %v570
  %595 = vmatprep.subr.bf16.mxu0 0
  %596 = vmatpush1.bf16.msra.mxu0 0
  %597 = vmatprep.subr.bf16.mxu0 0
  %598 = vmatpush1.bf16.msra.mxu0 0
  %599 = vmatprep.subr.bf16.mxu0 0
  %600 = vmatpush1.bf16.msra.mxu0 0
  %601 = vmatprep.subr.bf16.mxu0 0
  %602 = vmatpush1.bf16.msra.mxu0 0
  %603 = vmatprep.subr.bf16.mxu0 0
  %604 = vmatpush1.bf16.msra.mxu0 0
  %605 = vmatprep.subr.bf16.mxu0 0
  %606 = vmatpush1.bf16.msra.mxu0 0
  %607 = vmatprep.subr.bf16.mxu0 0
  %608 = vmatpush1.bf16.msra.mxu0 0
  %609 = vmatprep.subr.bf16.mxu0 0
  %610 = vmatpush1.bf16.msra.mxu0 0
  %611 = vmatprep.mubr.bf16.mxu0 0
  %612 = vmatmul.mubr.bf16.gmra.mrb[0].mxu0 %v543
  %v613 = vpop.f32.mrb[0].mxu0
  %v614 = vadd.f32 0.0, %v613
  %v615 = vpop.f32.mrb[0].mxu0
  %v616 = vpop.f32.mrb[0].mxu0
  %v617 = vadd.f32 0.0, %v616
  %v618 = vpop.f32.mrb[0].mxu0
  %619 = vmatprep.mubr.bf16.mxu0 0
  %620 = vmatmul.mubr.bf16.gmra.mrb[0].mxu0 %v544
  %v621 = vpop.f32.mrb[0].mxu0
  %v622 = vadd.f32 0.0, %v621
  %v623 = vpop.f32.mrb[0].mxu0
  %v624 = vpop.f32.mrb[0].mxu0
  %v625 = vadd.f32 0.0, %v624
  %v626 = vpop.f32.mrb[0].mxu0
  %627 = vdwg.mxu0
  %v632 = vunpack.c.l.b16 %v519
  %v633 = vunpack.c.l.b16 %v520
  %v634 = vunpack.c.l.b16 %v521
  %v635 = vunpack.c.l.b16 %v522
  %v636 = vpack.c.b16 %v633, %v632
  %v637 = vpack.c.b16 %v635, %v634
  %640 = vmatprep.subr.bf16.mxu0 0
  %641 = vmatpush1.bf16.msra.mxu0 %v523
  %642 = vmatprep.subr.bf16.mxu0 0
  %643 = vmatpush1.bf16.msra.mxu0 %v524
  %644 = vmatprep.subr.bf16.mxu0 0
  %645 = vmatpush1.bf16.msra.mxu0 %v525
  %646 = vmatprep.subr.bf16.mxu0 0
  %647 = vmatpush1.bf16.msra.mxu0 %v526
  %648 = vmatprep.subr.bf16.mxu0 0
  %649 = vmatpush1.bf16.msra.mxu0 %v527
  %650 = vmatprep.subr.bf16.mxu0 0
  %651 = vmatpush1.bf16.msra.mxu0 %v528
  %652 = vmatprep.subr.bf16.mxu0 0
  %653 = vmatpush1.bf16.msra.mxu0 %v529
  %654 = vmatprep.subr.bf16.mxu0 0
  %655 = vmatpush1.bf16.msra.mxu0 %v530
  %656 = vmatprep.subr.bf16.mxu0 0
  %657 = vmatpush1.bf16.msra.mxu0 0
  %658 = vmatprep.subr.bf16.mxu0 0
  %659 = vmatpush1.bf16.msra.mxu0 0
  %660 = vmatprep.subr.bf16.mxu0 0
  %661 = vmatpush1.bf16.msra.mxu0 0
  %662 = vmatprep.subr.bf16.mxu0 0
  %663 = vmatpush1.bf16.msra.mxu0 0
  %664 = vmatprep.subr.bf16.mxu0 0
  %665 = vmatpush1.bf16.msra.mxu0 0
  %666 = vmatprep.subr.bf16.mxu0 0
  %667 = vmatpush1.bf16.msra.mxu0 0
  %668 = vmatprep.subr.bf16.mxu0 0
  %669 = vmatpush1.bf16.msra.mxu0 0
  %670 = vmatprep.subr.bf16.mxu0 0
  %671 = vmatpush1.bf16.msra.mxu0 0
  %672 = vmatprep.mubr.bf16.mxu0 0
  %673 = vmatmul.mubr.bf16.gmra.mrb[0].mxu0 %v636
  %v674 = vpop.f32.mrb[0].mxu0
  %v675 = vadd.f32 %v614, %v674
  %v676 = vpop.f32.mrb[0].mxu0
  %v677 = vpop.f32.mrb[0].mxu0
  %v678 = vadd.f32 %v617, %v677
  %v679 = vpop.f32.mrb[0].mxu0
  %680 = vmatprep.mubr.bf16.mxu0 0
  %681 = vmatmul.mubr.bf16.gmra.mrb[0].mxu0 %v637
  %v682 = vpop.f32.mrb[0].mxu0
  %v683 = vadd.f32 %v622, %v682
  %v684 = vpop.f32.mrb[0].mxu0
  %v685 = vpop.f32.mrb[0].mxu0
  %v686 = vadd.f32 %v625, %v685
  %v687 = vpop.f32.mrb[0].mxu0
  %688 = vdwg.mxu0
  %v689 = vld [vmem:[%s2 + $0x20] sm:$0xf]
  %v690 = vld [vmem:[%s2 + $0x24] sm:$0xf]
  %v691 = vld [vmem:[%s2 + $0x28] sm:$0xf]
  %v692 = vld [vmem:[%s2 + $0x2c] sm:$0xf]
  %v697 = vunpack.c.l.b16 %v689
  %v698 = vunpack.c.l.b16 %v690
  %v699 = vunpack.c.l.b16 %v691
  %v700 = vunpack.c.l.b16 %v692
  %v701 = vpack.c.b16 %v698, %v697
  %v702 = vpack.c.b16 %v700, %v699
  %705 = vrot.lane.b32.xlu0 %v523, 96
  %v706 = vpop.permute.xlu0 %705
  %707 = vrot.lane.b32.xlu0 %v524, 96
  %v708 = vpop.permute.xlu0 %707
  %709 = vrot.lane.b32.xlu0 %v525, 96
  %v710 = vpop.permute.xlu0 %709
  %711 = vrot.lane.b32.xlu0 %v526, 96
  %v712 = vpop.permute.xlu0 %711
  %713 = vrot.lane.b32.xlu0 %v527, 96
  %v714 = vpop.permute.xlu0 %713
  %715 = vrot.lane.b32.xlu0 %v528, 96
  %v716 = vpop.permute.xlu0 %715
  %717 = vrot.lane.b32.xlu0 %v529, 96
  %v718 = vpop.permute.xlu0 %717
  %719 = vrot.lane.b32.xlu0 %v530, 96
  %v720 = vpop.permute.xlu0 %719
  %729 = vmatprep.subr.bf16.mxu0 0
  %730 = vmatpush1.bf16.msra.mxu0 %v706
  %731 = vmatprep.subr.bf16.mxu0 0
  %732 = vmatpush1.bf16.msra.mxu0 %v708
  %733 = vmatprep.subr.bf16.mxu0 0
  %734 = vmatpush1.bf16.msra.mxu0 %v710
  %735 = vmatprep.subr.bf16.mxu0 0
  %736 = vmatpush1.bf16.msra.mxu0 %v712
  %737 = vmatprep.subr.bf16.mxu0 0
  %738 = vmatpush1.bf16.msra.mxu0 %v714
  %739 = vmatprep.subr.bf16.mxu0 0
  %740 = vmatpush1.bf16.msra.mxu0 %v716
  %741 = vmatprep.subr.bf16.mxu0 0
  %742 = vmatpush1.bf16.msra.mxu0 %v718
  %743 = vmatprep.subr.bf16.mxu0 0
  %744 = vmatpush1.bf16.msra.mxu0 %v720
  %745 = vmatprep.subr.bf16.mxu0 0
  %746 = vmatpush1.bf16.msra.mxu0 0
  %747 = vmatprep.subr.bf16.mxu0 0
  %748 = vmatpush1.bf16.msra.mxu0 0
  %749 = vmatprep.subr.bf16.mxu0 0
  %750 = vmatpush1.bf16.msra.mxu0 0
  %751 = vmatprep.subr.bf16.mxu0 0
  %752 = vmatpush1.bf16.msra.mxu0 0
  %753 = vmatprep.subr.bf16.mxu0 0
  %754 = vmatpush1.bf16.msra.mxu0 0
  %755 = vmatprep.subr.bf16.mxu0 0
  %756 = vmatpush1.bf16.msra.mxu0 0
  %757 = vmatprep.subr.bf16.mxu0 0
  %758 = vmatpush1.bf16.msra.mxu0 0
  %759 = vmatprep.subr.bf16.mxu0 0
  %760 = vmatpush1.bf16.msra.mxu0 0
  %761 = vmatprep.mubr.bf16.mxu0 0
  %762 = vmatmul.mubr.bf16.gmra.mrb[0].mxu0 %v701
  %v763 = vpop.f32.mrb[0].mxu0
  %v764 = vadd.f32 0.0, %v763
  %v765 = vpop.f32.mrb[0].mxu0
  %v766 = vpop.f32.mrb[0].mxu0
  %v767 = vadd.f32 0.0, %v766
  %v768 = vpop.f32.mrb[0].mxu0
  %769 = vmatprep.mubr.bf16.mxu0 0
  %770 = vmatmul.mubr.bf16.gmra.mrb[0].mxu0 %v702
  %v771 = vpop.f32.mrb[0].mxu0
  %v772 = vadd.f32 0.0, %v771
  %v773 = vpop.f32.mrb[0].mxu0
  %v774 = vpop.f32.mrb[0].mxu0
  %v775 = vadd.f32 0.0, %v774
  %v776 = vpop.f32.mrb[0].mxu0
  %777 = vdwg.mxu0
  %v778 = vadd.f32 %v675, %v764
  %v779 = vadd.f32 %v678, %v767
  %v780 = vadd.f32 %v683, %v772
  %v781 = vadd.f32 %v686, %v775
  %v782 = vld [vmem:[%s2 + $0x30] sm:$0xf]
  %v783 = vld [vmem:[%s2 + $0x34] sm:$0xf]
  %v784 = vld [vmem:[%s2 + $0x38] sm:$0xf]
  %v785 = vld [vmem:[%s2 + $0x3c] sm:$0xf]
  %v790 = vunpack.c.l.b16 %v782
  %v791 = vunpack.c.l.b16 %v783
  %v792 = vunpack.c.l.b16 %v784
  %v793 = vunpack.c.l.b16 %v785
  %v794 = vpack.c.b16 %v791, %v790
  %v795 = vpack.c.b16 %v793, %v792
  %798 = vrot.lane.b32.xlu0 %v523, 80
  %v799 = vpop.permute.xlu0 %798
  %800 = vrot.lane.b32.xlu0 %v524, 80
  %v801 = vpop.permute.xlu0 %800
  %802 = vrot.lane.b32.xlu0 %v525, 80
  %v803 = vpop.permute.xlu0 %802
  %804 = vrot.lane.b32.xlu0 %v526, 80
  %v805 = vpop.permute.xlu0 %804
  %806 = vrot.lane.b32.xlu0 %v527, 80
  %v807 = vpop.permute.xlu0 %806
  %808 = vrot.lane.b32.xlu0 %v528, 80
  %v809 = vpop.permute.xlu0 %808
  %810 = vrot.lane.b32.xlu0 %v529, 80
  %v811 = vpop.permute.xlu0 %810
  %812 = vrot.lane.b32.xlu0 %v530, 80
  %v813 = vpop.permute.xlu0 %812
  %822 = vmatprep.subr.bf16.mxu0 0
  %823 = vmatpush1.bf16.msra.mxu0 %v799
  %824 = vmatprep.subr.bf16.mxu0 0
  %825 = vmatpush1.bf16.msra.mxu0 %v801
  %826 = vmatprep.subr.bf16.mxu0 0
  %827 = vmatpush1.bf16.msra.mxu0 %v803
  %828 = vmatprep.subr.bf16.mxu0 0
  %829 = vmatpush1.bf16.msra.mxu0 %v805
  %830 = vmatprep.subr.bf16.mxu0 0
  %831 = vmatpush1.bf16.msra.mxu0 %v807
  %832 = vmatprep.subr.bf16.mxu0 0
  %833 = vmatpush1.bf16.msra.mxu0 %v809
  %834 = vmatprep.subr.bf16.mxu0 0
  %835 = vmatpush1.bf16.msra.mxu0 %v811
  %836 = vmatprep.subr.bf16.mxu0 0
  %837 = vmatpush1.bf16.msra.mxu0 %v813
  %838 = vmatprep.subr.bf16.mxu0 0
  %839 = vmatpush1.bf16.msra.mxu0 0
  %840 = vmatprep.subr.bf16.mxu0 0
  %841 = vmatpush1.bf16.msra.mxu0 0
  %842 = vmatprep.subr.bf16.mxu0 0
  %843 = vmatpush1.bf16.msra.mxu0 0
  %844 = vmatprep.subr.bf16.mxu0 0
  %845 = vmatpush1.bf16.msra.mxu0 0
  %846 = vmatprep.subr.bf16.mxu0 0
  %847 = vmatpush1.bf16.msra.mxu0 0
  %848 = vmatprep.subr.bf16.mxu0 0
  %849 = vmatpush1.bf16.msra.mxu0 0
  %850 = vmatprep.subr.bf16.mxu0 0
  %851 = vmatpush1.bf16.msra.mxu0 0
  %852 = vmatprep.subr.bf16.mxu0 0
  %853 = vmatpush1.bf16.msra.mxu0 0
  %854 = vmatprep.mubr.bf16.mxu0 0
  %855 = vmatmul.mubr.bf16.gmra.mrb[0].mxu0 %v794
  %v856 = vpop.f32.mrb[0].mxu0
  %v857 = vadd.f32 0.0, %v856
  %v858 = vpop.f32.mrb[0].mxu0
  %v859 = vpop.f32.mrb[0].mxu0
  %v860 = vadd.f32 0.0, %v859
  %v861 = vpop.f32.mrb[0].mxu0
  %862 = vmatprep.mubr.bf16.mxu0 0
  %863 = vmatmul.mubr.bf16.gmra.mrb[0].mxu0 %v795
  %v864 = vpop.f32.mrb[0].mxu0
  %v865 = vadd.f32 0.0, %v864
  %v866 = vpop.f32.mrb[0].mxu0
  %v867 = vpop.f32.mrb[0].mxu0
  %v868 = vadd.f32 0.0, %v867
  %v869 = vpop.f32.mrb[0].mxu0
  %870 = vdwg.mxu0
  %v871 = vadd.f32 %v778, %v857
  %v872 = vadd.f32 %v779, %v860
  %v873 = vadd.f32 %v780, %v865
  %v874 = vadd.f32 %v781, %v868
  %v875 = vld [vmem:[%s2 + $0x40] sm:$0xf]
  %v876 = vld [vmem:[%s2 + $0x44] sm:$0xf]
  %v877 = vld [vmem:[%s2 + $0x48] sm:$0xf]
  %v878 = vld [vmem:[%s2 + $0x4c] sm:$0xf]
  %v883 = vunpack.c.l.b16 %v875
  %v884 = vunpack.c.l.b16 %v876
  %v885 = vunpack.c.l.b16 %v877
  %v886 = vunpack.c.l.b16 %v878
  %v887 = vpack.c.b16 %v884, %v883
  %v888 = vpack.c.b16 %v886, %v885
  %891 = vrot.lane.b32.xlu0 %v523, 64
  %v892 = vpop.permute.xlu0 %891
  %893 = vrot.lane.b32.xlu0 %v524, 64
  %v894 = vpop.permute.xlu0 %893
  %895 = vrot.lane.b32.xlu0 %v525, 64
  %v896 = vpop.permute.xlu0 %895
  %897 = vrot.lane.b32.xlu0 %v526, 64
  %v898 = vpop.permute.xlu0 %897
  %899 = vrot.lane.b32.xlu0 %v527, 64
  %v900 = vpop.permute.xlu0 %899
  %901 = vrot.lane.b32.xlu0 %v528, 64
  %v902 = vpop.permute.xlu0 %901
  %903 = vrot.lane.b32.xlu0 %v529, 64
  %v904 = vpop.permute.xlu0 %903
  %905 = vrot.lane.b32.xlu0 %v530, 64
  %v906 = vpop.permute.xlu0 %905
  %915 = vmatprep.subr.bf16.mxu0 0
  %916 = vmatpush1.bf16.msra.mxu0 %v892
  %917 = vmatprep.subr.bf16.mxu0 0
  %918 = vmatpush1.bf16.msra.mxu0 %v894
  %919 = vmatprep.subr.bf16.mxu0 0
  %920 = vmatpush1.bf16.msra.mxu0 %v896
  %921 = vmatprep.subr.bf16.mxu0 0
  %922 = vmatpush1.bf16.msra.mxu0 %v898
  %923 = vmatprep.subr.bf16.mxu0 0
  %924 = vmatpush1.bf16.msra.mxu0 %v900
  %925 = vmatprep.subr.bf16.mxu0 0
  %926 = vmatpush1.bf16.msra.mxu0 %v902
  %927 = vmatprep.subr.bf16.mxu0 0
  %928 = vmatpush1.bf16.msra.mxu0 %v904
  %929 = vmatprep.subr.bf16.mxu0 0
  %930 = vmatpush1.bf16.msra.mxu0 %v906
  %931 = vmatprep.subr.bf16.mxu0 0
  %932 = vmatpush1.bf16.msra.mxu0 0
  %933 = vmatprep.subr.bf16.mxu0 0
  %934 = vmatpush1.bf16.msra.mxu0 0
  %935 = vmatprep.subr.bf16.mxu0 0
  %936 = vmatpush1.bf16.msra.mxu0 0
  %937 = vmatprep.subr.bf16.mxu0 0
  %938 = vmatpush1.bf16.msra.mxu0 0
  %939 = vmatprep.subr.bf16.mxu0 0
  %940 = vmatpush1.bf16.msra.mxu0 0
  %941 = vmatprep.subr.bf16.mxu0 0
  %942 = vmatpush1.bf16.msra.mxu0 0
  %943 = vmatprep.subr.bf16.mxu0 0
  %944 = vmatpush1.bf16.msra.mxu0 0
  %945 = vmatprep.subr.bf16.mxu0 0
  %946 = vmatpush1.bf16.msra.mxu0 0
  %947 = vmatprep.mubr.bf16.mxu0 0
  %948 = vmatmul.mubr.bf16.gmra.mrb[0].mxu0 %v887
  %v949 = vpop.f32.mrb[0].mxu0
  %v950 = vadd.f32 0.0, %v949
  %v951 = vpop.f32.mrb[0].mxu0
  %v952 = vpop.f32.mrb[0].mxu0
  %v953 = vadd.f32 0.0, %v952
  %v954 = vpop.f32.mrb[0].mxu0
  %955 = vmatprep.mubr.bf16.mxu0 0
  %956 = vmatmul.mubr.bf16.gmra.mrb[0].mxu0 %v888
  %v957 = vpop.f32.mrb[0].mxu0
  %v958 = vadd.f32 0.0, %v957
  %v959 = vpop.f32.mrb[0].mxu0
  %v960 = vpop.f32.mrb[0].mxu0
  %v961 = vadd.f32 0.0, %v960
  %v962 = vpop.f32.mrb[0].mxu0
  %963 = vdwg.mxu0
  %v964 = vadd.f32 %v871, %v950
  %v965 = vadd.f32 %v872, %v953
  %v966 = vadd.f32 %v873, %v958
  %v967 = vadd.f32 %v874, %v961
  %v968 = vld [vmem:[%s2 + $0x50] sm:$0xf]
  %v969 = vld [vmem:[%s2 + $0x54] sm:$0xf]
  %v970 = vld [vmem:[%s2 + $0x58] sm:$0xf]
  %v971 = vld [vmem:[%s2 + $0x5c] sm:$0xf]
  %v976 = vunpack.c.l.b16 %v968
  %v977 = vunpack.c.l.b16 %v969
  %v978 = vunpack.c.l.b16 %v970
  %v979 = vunpack.c.l.b16 %v971
  %v980 = vpack.c.b16 %v977, %v976
  %v981 = vpack.c.b16 %v979, %v978
  %984 = vrot.lane.b32.xlu0 %v523, 48
  %v985 = vpop.permute.xlu0 %984
  %986 = vrot.lane.b32.xlu0 %v524, 48
  %v987 = vpop.permute.xlu0 %986
  %988 = vrot.lane.b32.xlu0 %v525, 48
  %v989 = vpop.permute.xlu0 %988
  %990 = vrot.lane.b32.xlu0 %v526, 48
  %v991 = vpop.permute.xlu0 %990
  %992 = vrot.lane.b32.xlu0 %v527, 48
  %v993 = vpop.permute.xlu0 %992
  %994 = vrot.lane.b32.xlu0 %v528, 48
  %v995 = vpop.permute.xlu0 %994
  %996 = vrot.lane.b32.xlu0 %v529, 48
  %v997 = vpop.permute.xlu0 %996
  %998 = vrot.lane.b32.xlu0 %v530, 48
  %v999 = vpop.permute.xlu0 %998
  %1008 = vmatprep.subr.bf16.mxu0 0
  %1009 = vmatpush1.bf16.msra.mxu0 %v985
  %1010 = vmatprep.subr.bf16.mxu0 0
  %1011 = vmatpush1.bf16.msra.mxu0 %v987
  %1012 = vmatprep.subr.bf16.mxu0 0
  %1013 = vmatpush1.bf16.msra.mxu0 %v989
  %1014 = vmatprep.subr.bf16.mxu0 0
  %1015 = vmatpush1.bf16.msra.mxu0 %v991
  %1016 = vmatprep.subr.bf16.mxu0 0
  %1017 = vmatpush1.bf16.msra.mxu0 %v993
  %1018 = vmatprep.subr.bf16.mxu0 0
  %1019 = vmatpush1.bf16.msra.mxu0 %v995
  %1020 = vmatprep.subr.bf16.mxu0 0
  %1021 = vmatpush1.bf16.msra.mxu0 %v997
  %1022 = vmatprep.subr.bf16.mxu0 0
  %1023 = vmatpush1.bf16.msra.mxu0 %v999
  %1024 = vmatprep.subr.bf16.mxu0 0
  %1025 = vmatpush1.bf16.msra.mxu0 0
  %1026 = vmatprep.subr.bf16.mxu0 0
  %1027 = vmatpush1.bf16.msra.mxu0 0
  %1028 = vmatprep.subr.bf16.mxu0 0
  %1029 = vmatpush1.bf16.msra.mxu0 0
  %1030 = vmatprep.subr.bf16.mxu0 0
  %1031 = vmatpush1.bf16.msra.mxu0 0
  %1032 = vmatprep.subr.bf16.mxu0 0
  %1033 = vmatpush1.bf16.msra.mxu0 0
  %1034 = vmatprep.subr.bf16.mxu0 0
  %1035 = vmatpush1.bf16.msra.mxu0 0
  %1036 = vmatprep.subr.bf16.mxu0 0
  %1037 = vmatpush1.bf16.msra.mxu0 0
  %1038 = vmatprep.subr.bf16.mxu0 0
  %1039 = vmatpush1.bf16.msra.mxu0 0
  %1040 = vmatprep.mubr.bf16.mxu0 0
  %1041 = vmatmul.mubr.bf16.gmra.mrb[0].mxu0 %v980
  %v1042 = vpop.f32.mrb[0].mxu0
  %v1043 = vadd.f32 0.0, %v1042
  %v1044 = vpop.f32.mrb[0].mxu0
  %v1045 = vpop.f32.mrb[0].mxu0
  %v1046 = vadd.f32 0.0, %v1045
  %v1047 = vpop.f32.mrb[0].mxu0
  %1048 = vmatprep.mubr.bf16.mxu0 0
  %1049 = vmatmul.mubr.bf16.gmra.mrb[0].mxu0 %v981
  %v1050 = vpop.f32.mrb[0].mxu0
  %v1051 = vadd.f32 0.0, %v1050
  %v1052 = vpop.f32.mrb[0].mxu0
  %v1053 = vpop.f32.mrb[0].mxu0
  %v1054 = vadd.f32 0.0, %v1053
  %v1055 = vpop.f32.mrb[0].mxu0
  %1056 = vdwg.mxu0
  %v1057 = vadd.f32 %v964, %v1043
  %v1058 = vadd.f32 %v965, %v1046
  %v1059 = vadd.f32 %v966, %v1051
  %v1060 = vadd.f32 %v967, %v1054
  %v1061 = vld [vmem:[%s2 + $0x60] sm:$0xf]
  %v1062 = vld [vmem:[%s2 + $0x64] sm:$0xf]
  %v1063 = vld [vmem:[%s2 + $0x68] sm:$0xf]
  %v1064 = vld [vmem:[%s2 + $0x6c] sm:$0xf]
  %v1069 = vunpack.c.l.b16 %v1061
  %v1070 = vunpack.c.l.b16 %v1062
  %v1071 = vunpack.c.l.b16 %v1063
  %v1072 = vunpack.c.l.b16 %v1064
  %v1073 = vpack.c.b16 %v1070, %v1069
  %v1074 = vpack.c.b16 %v1072, %v1071
  %1077 = vrot.lane.b32.xlu0 %v523, 32
  %v1078 = vpop.permute.xlu0 %1077
  %1079 = vrot.lane.b32.xlu0 %v524, 32
  %v1080 = vpop.permute.xlu0 %1079
  %1081 = vrot.lane.b32.xlu0 %v525, 32
  %v1082 = vpop.permute.xlu0 %1081
  %1083 = vrot.lane.b32.xlu0 %v526, 32
  %v1084 = vpop.permute.xlu0 %1083
  %1085 = vrot.lane.b32.xlu0 %v527, 32
  %v1086 = vpop.permute.xlu0 %1085
  %1087 = vrot.lane.b32.xlu0 %v528, 32
  %v1088 = vpop.permute.xlu0 %1087
  %1089 = vrot.lane.b32.xlu0 %v529, 32
  %v1090 = vpop.permute.xlu0 %1089
  %1091 = vrot.lane.b32.xlu0 %v530, 32
  %v1092 = vpop.permute.xlu0 %1091
  %1101 = vmatprep.subr.bf16.mxu0 0
  %1102 = vmatpush1.bf16.msra.mxu0 %v1078
  %1103 = vmatprep.subr.bf16.mxu0 0
  %1104 = vmatpush1.bf16.msra.mxu0 %v1080
  %1105 = vmatprep.subr.bf16.mxu0 0
  %1106 = vmatpush1.bf16.msra.mxu0 %v1082
  %1107 = vmatprep.subr.bf16.mxu0 0
  %1108 = vmatpush1.bf16.msra.mxu0 %v1084
  %1109 = vmatprep.subr.bf16.mxu0 0
  %1110 = vmatpush1.bf16.msra.mxu0 %v1086
  %1111 = vmatprep.subr.bf16.mxu0 0
  %1112 = vmatpush1.bf16.msra.mxu0 %v1088
  %1113 = vmatprep.subr.bf16.mxu0 0
  %1114 = vmatpush1.bf16.msra.mxu0 %v1090
  %1115 = vmatprep.subr.bf16.mxu0 0
  %1116 = vmatpush1.bf16.msra.mxu0 %v1092
  %1117 = vmatprep.subr.bf16.mxu0 0
  %1118 = vmatpush1.bf16.msra.mxu0 0
  %1119 = vmatprep.subr.bf16.mxu0 0
  %1120 = vmatpush1.bf16.msra.mxu0 0
  %1121 = vmatprep.subr.bf16.mxu0 0
  %1122 = vmatpush1.bf16.msra.mxu0 0
  %1123 = vmatprep.subr.bf16.mxu0 0
  %1124 = vmatpush1.bf16.msra.mxu0 0
  %1125 = vmatprep.subr.bf16.mxu0 0
  %1126 = vmatpush1.bf16.msra.mxu0 0
  %1127 = vmatprep.subr.bf16.mxu0 0
  %1128 = vmatpush1.bf16.msra.mxu0 0
  %1129 = vmatprep.subr.bf16.mxu0 0
  %1130 = vmatpush1.bf16.msra.mxu0 0
  %1131 = vmatprep.subr.bf16.mxu0 0
  %1132 = vmatpush1.bf16.msra.mxu0 0
  %1133 = vmatprep.mubr.bf16.mxu0 0
  %1134 = vmatmul.mubr.bf16.gmra.mrb[0].mxu0 %v1073
  %v1135 = vpop.f32.mrb[0].mxu0
  %v1136 = vadd.f32 0.0, %v1135
  %v1137 = vpop.f32.mrb[0].mxu0
  %v1138 = vpop.f32.mrb[0].mxu0
  %v1139 = vadd.f32 0.0, %v1138
  %v1140 = vpop.f32.mrb[0].mxu0
  %1141 = vmatprep.mubr.bf16.mxu0 0
  %1142 = vmatmul.mubr.bf16.gmra.mrb[0].mxu0 %v1074
  %v1143 = vpop.f32.mrb[0].mxu0
  %v1144 = vadd.f32 0.0, %v1143
  %v1145 = vpop.f32.mrb[0].mxu0
  %v1146 = vpop.f32.mrb[0].mxu0
  %v1147 = vadd.f32 0.0, %v1146
  %v1148 = vpop.f32.mrb[0].mxu0
  %1149 = vdwg.mxu0
  %v1150 = vadd.f32 %v1057, %v1136
  %v1151 = vadd.f32 %v1058, %v1139
  %v1152 = vadd.f32 %v1059, %v1144
  %v1153 = vadd.f32 %v1060, %v1147
  %v1154 = vld [vmem:[%s2 + $0x70] sm:$0xf]
  %v1155 = vld [vmem:[%s2 + $0x74] sm:$0xf]
  %v1156 = vld [vmem:[%s2 + $0x78] sm:$0xf]
  %v1157 = vld [vmem:[%s2 + $0x7c] sm:$0xf]
  %v1162 = vunpack.c.l.b16 %v1154
  %v1163 = vunpack.c.l.b16 %v1155
  %v1164 = vunpack.c.l.b16 %v1156
  %v1165 = vunpack.c.l.b16 %v1157
  %v1166 = vpack.c.b16 %v1163, %v1162
  %v1167 = vpack.c.b16 %v1165, %v1164
  %1170 = vrot.lane.b32.xlu0 %v523, 16
  %v1171 = vpop.permute.xlu0 %1170
  %1172 = vrot.lane.b32.xlu0 %v524, 16
  %v1173 = vpop.permute.xlu0 %1172
  %1174 = vrot.lane.b32.xlu0 %v525, 16
  %v1175 = vpop.permute.xlu0 %1174
  %1176 = vrot.lane.b32.xlu0 %v526, 16
  %v1177 = vpop.permute.xlu0 %1176
  %1178 = vrot.lane.b32.xlu0 %v527, 16
  %v1179 = vpop.permute.xlu0 %1178
  %1180 = vrot.lane.b32.xlu0 %v528, 16
  %v1181 = vpop.permute.xlu0 %1180
  %1182 = vrot.lane.b32.xlu0 %v529, 16
  %v1183 = vpop.permute.xlu0 %1182
  %1184 = vrot.lane.b32.xlu0 %v530, 16
  %v1185 = vpop.permute.xlu0 %1184
  %1194 = vmatprep.subr.bf16.mxu0 0
  %1195 = vmatpush1.bf16.msra.mxu0 %v1171
  %1196 = vmatprep.subr.bf16.mxu0 0
  %1197 = vmatpush1.bf16.msra.mxu0 %v1173
  %1198 = vmatprep.subr.bf16.mxu0 0
  %1199 = vmatpush1.bf16.msra.mxu0 %v1175
  %1200 = vmatprep.subr.bf16.mxu0 0
  %1201 = vmatpush1.bf16.msra.mxu0 %v1177
  %1202 = vmatprep.subr.bf16.mxu0 0
  %1203 = vmatpush1.bf16.msra.mxu0 %v1179
  %1204 = vmatprep.subr.bf16.mxu0 0
  %1205 = vmatpush1.bf16.msra.mxu0 %v1181
  %1206 = vmatprep.subr.bf16.mxu0 0
  %1207 = vmatpush1.bf16.msra.mxu0 %v1183
  %1208 = vmatprep.subr.bf16.mxu0 0
  %1209 = vmatpush1.bf16.msra.mxu0 %v1185
  %1210 = vmatprep.subr.bf16.mxu0 0
  %1211 = vmatpush1.bf16.msra.mxu0 0
  %1212 = vmatprep.subr.bf16.mxu0 0
  %1213 = vmatpush1.bf16.msra.mxu0 0
  %1214 = vmatprep.subr.bf16.mxu0 0
  %1215 = vmatpush1.bf16.msra.mxu0 0
  %1216 = vmatprep.subr.bf16.mxu0 0
  %1217 = vmatpush1.bf16.msra.mxu0 0
  %1218 = vmatprep.subr.bf16.mxu0 0
  %1219 = vmatpush1.bf16.msra.mxu0 0
  %1220 = vmatprep.subr.bf16.mxu0 0
  %1221 = vmatpush1.bf16.msra.mxu0 0
  %1222 = vmatprep.subr.bf16.mxu0 0
  %1223 = vmatpush1.bf16.msra.mxu0 0
  %1224 = vmatprep.subr.bf16.mxu0 0
  %1225 = vmatpush1.bf16.msra.mxu0 0
  %1226 = vmatprep.mubr.bf16.mxu0 0
  %1227 = vmatmul.mubr.bf16.gmra.mrb[0].mxu0 %v1166
  %v1228 = vpop.f32.mrb[0].mxu0
  %v1229 = vadd.f32 0.0, %v1228
  %v1230 = vpop.f32.mrb[0].mxu0
  %v1231 = vpop.f32.mrb[0].mxu0
  %v1232 = vadd.f32 0.0, %v1231
  %v1233 = vpop.f32.mrb[0].mxu0
  %1234 = vmatprep.mubr.bf16.mxu0 0
  %1235 = vmatmul.mubr.bf16.gmra.mrb[0].mxu0 %v1167
  %v1236 = vpop.f32.mrb[0].mxu0
  %v1237 = vadd.f32 0.0, %v1236
  %v1238 = vpop.f32.mrb[0].mxu0
  %v1239 = vpop.f32.mrb[0].mxu0
  %v1240 = vadd.f32 0.0, %v1239
  %v1241 = vpop.f32.mrb[0].mxu0
  %1242 = vdwg.mxu0
  %v1243 = vadd.f32 %v1150, %v1229
  %v1244 = vadd.f32 %v1151, %v1232
  %v1245 = vadd.f32 %v1152, %v1237
  %v1246 = vadd.f32 %v1153, %v1240
  %v1247 = vld [vmem:[%s2 + $0x80] sm:$0xf]
  %v1248 = vld [vmem:[%s2 + $0x84] sm:$0xf]
  %v1249 = vld [vmem:[%s2 + $0x88] sm:$0xf]
  %v1250 = vld [vmem:[%s2 + $0x8c] sm:$0xf]
  %v1251 = vpack.c.bf16 %v447, %v443
  %v1252 = vpack.c.bf16 %v457, %v453
  %v1253 = vpack.c.bf16 %v467, %v463
  %v1254 = vpack.c.bf16 %v477, %v473
  %v1255 = vpack.c.bf16 %v487, %v483
  %v1256 = vpack.c.bf16 %v497, %v493
  %v1257 = vpack.c.bf16 %v507, %v503
  %v1258 = vpack.c.bf16 %v517, %v513
  %v1263 = vunpack.c.l.b16 %v1247
  %v1264 = vunpack.c.l.b16 %v1248
  %v1265 = vunpack.c.l.b16 %v1249
  %v1266 = vunpack.c.l.b16 %v1250
  %v1267 = vpack.c.b16 %v1264, %v1263
  %v1268 = vpack.c.b16 %v1266, %v1265
  %1271 = vmatprep.subr.bf16.mxu0 0
  %1272 = vmatpush1.bf16.msra.mxu0 %v1251
  %1273 = vmatprep.subr.bf16.mxu0 0
  %1274 = vmatpush1.bf16.msra.mxu0 %v1252
  %1275 = vmatprep.subr.bf16.mxu0 0
  %1276 = vmatpush1.bf16.msra.mxu0 %v1253
  %1277 = vmatprep.subr.bf16.mxu0 0
  %1278 = vmatpush1.bf16.msra.mxu0 %v1254
  %1279 = vmatprep.subr.bf16.mxu0 0
  %1280 = vmatpush1.bf16.msra.mxu0 %v1255
  %1281 = vmatprep.subr.bf16.mxu0 0
  %1282 = vmatpush1.bf16.msra.mxu0 %v1256
  %1283 = vmatprep.subr.bf16.mxu0 0
  %1284 = vmatpush1.bf16.msra.mxu0 %v1257
  %1285 = vmatprep.subr.bf16.mxu0 0
  %1286 = vmatpush1.bf16.msra.mxu0 %v1258
  %1287 = vmatprep.subr.bf16.mxu0 0
  %1288 = vmatpush1.bf16.msra.mxu0 0
  %1289 = vmatprep.subr.bf16.mxu0 0
  %1290 = vmatpush1.bf16.msra.mxu0 0
  %1291 = vmatprep.subr.bf16.mxu0 0
  %1292 = vmatpush1.bf16.msra.mxu0 0
  %1293 = vmatprep.subr.bf16.mxu0 0
  %1294 = vmatpush1.bf16.msra.mxu0 0
  %1295 = vmatprep.subr.bf16.mxu0 0
  %1296 = vmatpush1.bf16.msra.mxu0 0
  %1297 = vmatprep.subr.bf16.mxu0 0
  %1298 = vmatpush1.bf16.msra.mxu0 0
  %1299 = vmatprep.subr.bf16.mxu0 0
  %1300 = vmatpush1.bf16.msra.mxu0 0
  %1301 = vmatprep.subr.bf16.mxu0 0
  %1302 = vmatpush1.bf16.msra.mxu0 0
  %1303 = vmatprep.mubr.bf16.mxu0 0
  %1304 = vmatmul.mubr.bf16.gmra.mrb[0].mxu0 %v1267
  %v1305 = vpop.f32.mrb[0].mxu0
  %v1306 = vadd.f32 0.0, %v1305
  %v1307 = vpop.f32.mrb[0].mxu0
  %v1308 = vpop.f32.mrb[0].mxu0
  %v1309 = vadd.f32 0.0, %v1308
  %v1310 = vpop.f32.mrb[0].mxu0
  %1311 = vmatprep.mubr.bf16.mxu0 0
  %1312 = vmatmul.mubr.bf16.gmra.mrb[0].mxu0 %v1268
  %v1313 = vpop.f32.mrb[0].mxu0
  %v1314 = vadd.f32 0.0, %v1313
  %v1315 = vpop.f32.mrb[0].mxu0
  %v1316 = vpop.f32.mrb[0].mxu0
  %v1317 = vadd.f32 0.0, %v1316
  %v1318 = vpop.f32.mrb[0].mxu0
  %1319 = vdwg.mxu0
  %v1320 = vadd.f32 %v1243, %v1306
  %v1321 = vadd.f32 %v1244, %v1309
  %v1322 = vadd.f32 %v1245, %v1314
  %v1323 = vadd.f32 %v1246, %v1317
  %v1324 = vld [vmem:[%s3 + $0x8] sm:$0x1]
  %v1325 = vlaneseq
  %v1326 = vshrl.u32 %v1325, 7
  %v1327 = vsub.s32 0, %v1326
  %v1328 = vrot.slane %v1324, %v1327
  %v1329 = vadd.f32 %v1320, %v1328
  %v1330 = vadd.f32 %v1321, %v1328
  %v1331 = vadd.f32 %v1322, %v1328
  %v1332 = vadd.f32 %v1323, %v1328
  %v1333 = vxor.u32 %v1329, 2147483648
  %v1334 = vxor.u32 %v1330, 2147483648
  %v1335 = vxor.u32 %v1331, 2147483648
  %v1336 = vxor.u32 %v1332, 2147483648
  %v1337 = vmul.f32 %v1333, 1.442695
  %v1338 = vpow.pop %v1337
  %v1339 = vmul.f32 %v1334, 1.442695
  %v1340 = vpow.pop %v1339
  %v1341 = vmul.f32 %v1335, 1.442695
  %v1342 = vpow.pop %v1341
  %v1343 = vmul.f32 %v1336, 1.442695
  %v1344 = vpow.pop %v1343
  %v1345 = vadd.f32 %v1338, 1.0
  %v1346 = vadd.f32 %v1340, 1.0
  %v1347 = vadd.f32 %v1342, 1.0
  %v1348 = vadd.f32 %v1344, 1.0
  %v1349 = vrcp.pop %v1345
  %v1350 = vmul.f32 1.0, %v1349
  %v1351 = vrcp.pop %v1346
  %v1352 = vmul.f32 1.0, %v1351
  %v1353 = vrcp.pop %v1347
  %v1354 = vmul.f32 1.0, %v1353
  %v1355 = vrcp.pop %v1348
  %v1356 = vmul.f32 1.0, %v1355
  %v1357 = vmul.f32 %v1329, %v1350
  %v1358 = vmul.f32 %v1330, %v1352
  %v1359 = vmul.f32 %v1331, %v1354
  %v1360 = vmul.f32 %v1332, %v1356
  %v1361 = vld [vmem:[%s1 + $0xd8] sm:$0xf]
  %v1362 = vld [vmem:[%s1 + $0xe4] sm:$0xf]
  %v1363 = vpack.c.bf16 %v1358, %v1357
  %v1364 = vpack.c.bf16 %v1360, %v1359
  %v1365 = vld [vmem:[%s3 + $0x10] sm:$0x1]
  %v1366 = vlaneseq
  %v1367 = vshrl.u32 %v1366, 7
  %v1368 = vsub.s32 0, %v1367
  %v1369 = vrot.slane %v1365, %v1368
  %v1372 = vunpack.c.l.b16 %v1361
  %v1373 = vunpack.c.l.b16 %v1362
  %v1374 = vpack.c.b16 %v1373, %v1372
  %vm1376 = vcmask 130048
  %v1378 = vsel %vm1376, %v1363, 0
  %v1381 = vsel %vm1376, %v1364, 0
  %1383 = vmatprep.subr.bf16.mxu0 0
  %1384 = vmatpush1.bf16.msra.mxu0 %v1374
  %1385 = vmatprep.subr.bf16.mxu0 0
  %1386 = vmatpush1.bf16.msra.mxu0 0
  %1387 = vmatprep.subr.bf16.mxu0 0
  %1388 = vmatpush1.bf16.msra.mxu0 0
  %1389 = vmatprep.subr.bf16.mxu0 0
  %1390 = vmatpush1.bf16.msra.mxu0 0
  %1391 = vmatprep.subr.bf16.mxu0 0
  %1392 = vmatpush1.bf16.msra.mxu0 0
  %1393 = vmatprep.subr.bf16.mxu0 0
  %1394 = vmatpush1.bf16.msra.mxu0 0
  %1395 = vmatprep.subr.bf16.mxu0 0
  %1396 = vmatpush1.bf16.msra.mxu0 0
  %1397 = vmatprep.subr.bf16.mxu0 0
  %1398 = vmatpush1.bf16.msra.mxu0 0
  %1399 = vmatprep.subr.bf16.mxu0 0
  %1400 = vmatpush1.bf16.msra.mxu0 0
  %1401 = vmatprep.subr.bf16.mxu0 0
  %1402 = vmatpush1.bf16.msra.mxu0 0
  %1403 = vmatprep.subr.bf16.mxu0 0
  %1404 = vmatpush1.bf16.msra.mxu0 0
  %1405 = vmatprep.subr.bf16.mxu0 0
  %1406 = vmatpush1.bf16.msra.mxu0 0
  %1407 = vmatprep.subr.bf16.mxu0 0
  %1408 = vmatpush1.bf16.msra.mxu0 0
  %1409 = vmatprep.subr.bf16.mxu0 0
  %1410 = vmatpush1.bf16.msra.mxu0 0
  %1411 = vmatprep.subr.bf16.mxu0 0
  %1412 = vmatpush1.bf16.msra.mxu0 0
  %1413 = vmatprep.subr.bf16.mxu0 0
  %1414 = vmatpush1.bf16.msra.mxu0 0
  %1415 = vmatprep.mubr.bf16.mxu0 0
  %1416 = vmatmul.mubr.bf16.gmra.mrb[0].mxu0 %v1378
  %v1417 = vpop.f32.mrb[0].mxu0
  %v1418 = vadd.f32 %v1369, %v1417
  %v1419 = vpop.f32.mrb[0].mxu0
  %v1420 = vpop.f32.mrb[0].mxu0
  %v1421 = vadd.f32 %v1369, %v1420
  %v1422 = vpop.f32.mrb[0].mxu0
  %1423 = vmatprep.mubr.bf16.mxu0 0
  %1424 = vmatmul.mubr.bf16.gmra.mrb[0].mxu0 %v1381
  %v1425 = vpop.f32.mrb[0].mxu0
  %v1426 = vadd.f32 %v1369, %v1425
  %v1427 = vpop.f32.mrb[0].mxu0
  %v1428 = vpop.f32.mrb[0].mxu0
  %v1429 = vadd.f32 %v1369, %v1428
  %v1430 = vpop.f32.mrb[0].mxu0
  %1431 = vdwg.mxu0
  %v1432 = vxor.u32 %v1418, 2147483648
  %v1433 = vxor.u32 %v1421, 2147483648
  %v1434 = vxor.u32 %v1426, 2147483648
  %v1435 = vxor.u32 %v1429, 2147483648
  %v1436 = vmul.f32 %v1432, 1.442695
  %v1437 = vpow.pop %v1436
  %v1438 = vmul.f32 %v1433, 1.442695
  %v1439 = vpow.pop %v1438
  %v1440 = vmul.f32 %v1434, 1.442695
  %v1441 = vpow.pop %v1440
  %v1442 = vmul.f32 %v1435, 1.442695
  %v1443 = vpow.pop %v1442
  %v1444 = vadd.f32 %v1437, 1.0
  %v1445 = vadd.f32 %v1439, 1.0
  %v1446 = vadd.f32 %v1441, 1.0
  %v1447 = vadd.f32 %v1443, 1.0
  %v1448 = vrcp.pop %v1444
  %v1449 = vmul.f32 1.0, %v1448
  %v1450 = vrcp.pop %v1445
  %v1451 = vmul.f32 1.0, %v1450
  %v1452 = vrcp.pop %v1446
  %v1453 = vmul.f32 1.0, %v1452
  %v1454 = vrcp.pop %v1447
  %v1455 = vmul.f32 1.0, %v1454
  %v1456 = vmul.f32 %v1418, %v1449
  %v1457 = vmul.f32 %v1421, %v1451
  %v1458 = vmul.f32 %v1426, %v1453
  %v1459 = vmul.f32 %v1429, %v1455
  %v1460 = vld [vmem:[%s1 + $0xf0] sm:$0xf]
  %v1461 = vpack.c.bf16 %v1457, %v1456
  %v1462 = vpack.c.bf16 %v1459, %v1458
  %v1463 = vld [vmem:[%s3 + $0x18] sm:$0x1]
  %v1464 = vlaneseq
  %v1465 = vshrl.u32 %v1464, 7
  %v1466 = vsub.s32 0, %v1465
  %v1467 = vrot.slane %v1463, %v1466
  %v1469 = vsel %vm374, %v1461, 0
  %v1472 = vsel %vm374, %v1462, 0
  %v1475 = vsel %vm399, %v1460, 0
  %1477 = vmatprep.subr.bf16.mxu0 0
  %1478 = vmatpush1.bf16.msra.mxu0 %v1475
  %1479 = vmatprep.subr.bf16.mxu0 0
  %1480 = vmatpush1.bf16.msra.mxu0 0
  %1481 = vmatprep.subr.bf16.mxu0 0
  %1482 = vmatpush1.bf16.msra.mxu0 0
  %1483 = vmatprep.subr.bf16.mxu0 0
  %1484 = vmatpush1.bf16.msra.mxu0 0
  %1485 = vmatprep.subr.bf16.mxu0 0
  %1486 = vmatpush1.bf16.msra.mxu0 0
  %1487 = vmatprep.subr.bf16.mxu0 0
  %1488 = vmatpush1.bf16.msra.mxu0 0
  %1489 = vmatprep.subr.bf16.mxu0 0
  %1490 = vmatpush1.bf16.msra.mxu0 0
  %1491 = vmatprep.subr.bf16.mxu0 0
  %1492 = vmatpush1.bf16.msra.mxu0 0
  %1493 = vmatprep.subr.bf16.mxu0 0
  %1494 = vmatpush1.bf16.msra.mxu0 0
  %1495 = vmatprep.subr.bf16.mxu0 0
  %1496 = vmatpush1.bf16.msra.mxu0 0
  %1497 = vmatprep.subr.bf16.mxu0 0
  %1498 = vmatpush1.bf16.msra.mxu0 0
  %1499 = vmatprep.subr.bf16.mxu0 0
  %1500 = vmatpush1.bf16.msra.mxu0 0
  %1501 = vmatprep.subr.bf16.mxu0 0
  %1502 = vmatpush1.bf16.msra.mxu0 0
  %1503 = vmatprep.subr.bf16.mxu0 0
  %1504 = vmatpush1.bf16.msra.mxu0 0
  %1505 = vmatprep.subr.bf16.mxu0 0
  %1506 = vmatpush1.bf16.msra.mxu0 0
  %1507 = vmatprep.subr.bf16.mxu0 0
  %1508 = vmatpush1.bf16.msra.mxu0 0
  %1509 = vmatprep.mubr.bf16.mxu0 0
  %1510 = vmatmul.mubr.bf16.gmra.mrb[0].mxu0 %v1469
  %v1511 = vpop.f32.mrb[0].mxu0
  %v1512 = vadd.f32 %v1467, %v1511
  %v1513 = vpop.f32.mrb[0].mxu0
  %v1514 = vpop.f32.mrb[0].mxu0
  %v1515 = vadd.f32 %v1467, %v1514
  %v1516 = vpop.f32.mrb[0].mxu0
  %1517 = vmatprep.mubr.bf16.mxu0 0
  %1518 = vmatmul.mubr.bf16.gmra.mrb[0].mxu0 %v1472
  %v1519 = vpop.f32.mrb[0].mxu0
  %v1520 = vadd.f32 %v1467, %v1519
  %v1521 = vpop.f32.mrb[0].mxu0
  %v1522 = vpop.f32.mrb[0].mxu0
  %v1523 = vadd.f32 %v1467, %v1522
  %v1524 = vpop.f32.mrb[0].mxu0
  %1525 = vdwg.mxu0
  %v1526 = vxor.u32 %v1512, 2147483648
  %v1527 = vxor.u32 %v1515, 2147483648
  %v1528 = vxor.u32 %v1520, 2147483648
  %v1529 = vxor.u32 %v1523, 2147483648
  %v1530 = vmul.f32 %v1526, 1.442695
  %v1531 = vpow.pop %v1530
  %v1532 = vmul.f32 %v1527, 1.442695
  %v1533 = vpow.pop %v1532
  %v1534 = vmul.f32 %v1528, 1.442695
  %v1535 = vpow.pop %v1534
  %v1536 = vmul.f32 %v1529, 1.442695
  %v1537 = vpow.pop %v1536
  %v1538 = vadd.f32 %v1531, 1.0
  %v1539 = vadd.f32 %v1533, 1.0
  %v1540 = vadd.f32 %v1535, 1.0
  %v1541 = vadd.f32 %v1537, 1.0
  %v1542 = vrcp.pop %v1538
  %v1543 = vmul.f32 1.0, %v1542
  %v1544 = vrcp.pop %v1539
  %v1545 = vmul.f32 1.0, %v1544
  %v1546 = vrcp.pop %v1540
  %v1547 = vmul.f32 1.0, %v1546
  %v1548 = vrcp.pop %v1541
  %v1549 = vmul.f32 1.0, %v1548
  %v1550 = vmul.f32 %v1512, %v1543
  %v1551 = vmul.f32 %v1515, %v1545
  %v1552 = vmul.f32 %v1520, %v1547
  %v1553 = vmul.f32 %v1523, %v1549
  %v1554 = vld [vmem:[%s1 + $0x108] sm:$0xf]
  %v1555 = vpack.c.bf16 %v1551, %v1550
  %v1556 = vpack.c.bf16 %v1553, %v1552
  %v1558 = vsel %vm374, %v1555, 0
  %v1561 = vsel %vm374, %v1556, 0
  %v1564 = vsel %vm399, %v1554, 0
  %1566 = vmatprep.subr.bf16.mxu0 0
  %1567 = vmatpush1.bf16.msra.mxu0 %v1564
  %1568 = vmatprep.subr.bf16.mxu0 0
  %1569 = vmatpush1.bf16.msra.mxu0 0
  %1570 = vmatprep.subr.bf16.mxu0 0
  %1571 = vmatpush1.bf16.msra.mxu0 0
  %1572 = vmatprep.subr.bf16.mxu0 0
  %1573 = vmatpush1.bf16.msra.mxu0 0
  %1574 = vmatprep.subr.bf16.mxu0 0
  %1575 = vmatpush1.bf16.msra.mxu0 0
  %1576 = vmatprep.subr.bf16.mxu0 0
  %1577 = vmatpush1.bf16.msra.mxu0 0
  %1578 = vmatprep.subr.bf16.mxu0 0
  %1579 = vmatpush1.bf16.msra.mxu0 0
  %1580 = vmatprep.subr.bf16.mxu0 0
  %1581 = vmatpush1.bf16.msra.mxu0 0
  %1582 = vmatprep.subr.bf16.mxu0 0
  %1583 = vmatpush1.bf16.msra.mxu0 0
  %1584 = vmatprep.subr.bf16.mxu0 0
  %1585 = vmatpush1.bf16.msra.mxu0 0
  %1586 = vmatprep.subr.bf16.mxu0 0
  %1587 = vmatpush1.bf16.msra.mxu0 0
  %1588 = vmatprep.subr.bf16.mxu0 0
  %1589 = vmatpush1.bf16.msra.mxu0 0
  %1590 = vmatprep.subr.bf16.mxu0 0
  %1591 = vmatpush1.bf16.msra.mxu0 0
  %1592 = vmatprep.subr.bf16.mxu0 0
  %1593 = vmatpush1.bf16.msra.mxu0 0
  %1594 = vmatprep.subr.bf16.mxu0 0
  %1595 = vmatpush1.bf16.msra.mxu0 0
  %1596 = vmatprep.subr.bf16.mxu0 0
  %1597 = vmatpush1.bf16.msra.mxu0 0
  %1598 = vmatprep.mubr.bf16.mxu0 0
  %1599 = vmatmul.mubr.bf16.gmra.mrb[0].mxu0 %v1558
  %v1600 = vpop.f32.mrb[0].mxu0
  %v1601 = vadd.f32 0.0, %v1600
  %v1602 = vpop.f32.mrb[0].mxu0
  %v1603 = vpop.f32.mrb[0].mxu0
  %v1604 = vadd.f32 0.0, %v1603
  %v1605 = vpop.f32.mrb[0].mxu0
  %1606 = vmatprep.mubr.bf16.mxu0 0
  %1607 = vmatmul.mubr.bf16.gmra.mrb[0].mxu0 %v1561
  %v1608 = vpop.f32.mrb[0].mxu0
  %v1609 = vadd.f32 0.0, %v1608
  %v1610 = vpop.f32.mrb[0].mxu0
  %v1611 = vpop.f32.mrb[0].mxu0
  %v1612 = vadd.f32 0.0, %v1611
  %v1613 = vpop.f32.mrb[0].mxu0
  %1614 = vdwg.mxu0
  %v1615 = vld [vmem:[%s2 + $0x90] sm:$0xf]
  %v1616 = vld [vmem:[%s2 + $0x94] sm:$0xf]
  %v1617 = vld [vmem:[%s2 + $0x98] sm:$0xf]
  %v1618 = vld [vmem:[%s2 + $0x9c] sm:$0xf]
  %v1619 = vpack.c.bf16 %v1604, %v1601
  %v1620 = vpack.c.bf16 %v1612, %v1609
  %v1621 = vld [vmem:[%s2 + $0xa0] sm:$0xf]
  %v1622 = vld [vmem:[%s2 + $0xa4] sm:$0xf]
  %v1623 = vld [vmem:[%s2 + $0xa8] sm:$0xf]
  %v1624 = vld [vmem:[%s2 + $0xac] sm:$0xf]
  %v1629 = vunpack.c.l.b16 %v1621
  %v1630 = vunpack.c.l.b16 %v1622
  %v1631 = vunpack.c.l.b16 %v1623
  %v1632 = vunpack.c.l.b16 %v1624
  %v1633 = vpack.c.b16 %v1630, %v1629
  %v1634 = vpack.c.b16 %v1632, %v1631
  %1637 = vrot.lane.b32.xlu0 %v1619, 120
  %v1638 = vpop.permute.xlu0 %1637
  %1639 = vrot.lane.b32.xlu0 %v1620, 120
  %v1640 = vpop.permute.xlu0 %1639
  %vm1643 = vcmask 261120
  %v1645 = vsel %vm1643, %v1633, 0
  %v1648 = vsel %vm1643, %v1634, 0
  %1650 = vmatprep.subr.bf16.mxu0 0
  %1651 = vmatpush1.bf16.msra.mxu0 %v1638
  %1652 = vmatprep.subr.bf16.mxu0 0
  %1653 = vmatpush1.bf16.msra.mxu0 %v1640
  %1654 = vmatprep.subr.bf16.mxu0 0
  %1655 = vmatpush1.bf16.msra.mxu0 0
  %1656 = vmatprep.subr.bf16.mxu0 0
  %1657 = vmatpush1.bf16.msra.mxu0 0
  %1658 = vmatprep.subr.bf16.mxu0 0
  %1659 = vmatpush1.bf16.msra.mxu0 0
  %1660 = vmatprep.subr.bf16.mxu0 0
  %1661 = vmatpush1.bf16.msra.mxu0 0
  %1662 = vmatprep.subr.bf16.mxu0 0
  %1663 = vmatpush1.bf16.msra.mxu0 0
  %1664 = vmatprep.subr.bf16.mxu0 0
  %1665 = vmatpush1.bf16.msra.mxu0 0
  %1666 = vmatprep.subr.bf16.mxu0 0
  %1667 = vmatpush1.bf16.msra.mxu0 0
  %1668 = vmatprep.subr.bf16.mxu0 0
  %1669 = vmatpush1.bf16.msra.mxu0 0
  %1670 = vmatprep.subr.bf16.mxu0 0
  %1671 = vmatpush1.bf16.msra.mxu0 0
  %1672 = vmatprep.subr.bf16.mxu0 0
  %1673 = vmatpush1.bf16.msra.mxu0 0
  %1674 = vmatprep.subr.bf16.mxu0 0
  %1675 = vmatpush1.bf16.msra.mxu0 0
  %1676 = vmatprep.subr.bf16.mxu0 0
  %1677 = vmatpush1.bf16.msra.mxu0 0
  %1678 = vmatprep.subr.bf16.mxu0 0
  %1679 = vmatpush1.bf16.msra.mxu0 0
  %1680 = vmatprep.subr.bf16.mxu0 0
  %1681 = vmatpush1.bf16.msra.mxu0 0
  %1682 = vmatprep.mubr.bf16.mxu0 0
  %1683 = vmatmul.mubr.bf16.gmra.mrb[0].mxu0 %v1645
  %v1684 = vpop.f32.mrb[0].mxu0
  %v1685 = vadd.f32 0.0, %v1684
  %v1686 = vpop.f32.mrb[0].mxu0
  %v1687 = vpop.f32.mrb[0].mxu0
  %v1688 = vadd.f32 0.0, %v1687
  %v1689 = vpop.f32.mrb[0].mxu0
  %1690 = vmatprep.mubr.bf16.mxu0 0
  %1691 = vmatmul.mubr.bf16.gmra.mrb[0].mxu0 %v1648
  %v1692 = vpop.f32.mrb[0].mxu0
  %v1693 = vadd.f32 0.0, %v1692
  %v1694 = vpop.f32.mrb[0].mxu0
  %v1695 = vpop.f32.mrb[0].mxu0
  %v1696 = vadd.f32 0.0, %v1695
  %v1697 = vpop.f32.mrb[0].mxu0
  %1698 = vdwg.mxu0
  %v1703 = vunpack.c.l.b16 %v1615
  %v1704 = vunpack.c.l.b16 %v1616
  %v1705 = vunpack.c.l.b16 %v1617
  %v1706 = vunpack.c.l.b16 %v1618
  %v1707 = vpack.c.b16 %v1704, %v1703
  %v1708 = vpack.c.b16 %v1706, %v1705
  %v1710 = vsel %vm1643, %v1707, 0
  %v1713 = vsel %vm1643, %v1708, 0
  %1715 = vmatprep.subr.bf16.mxu0 0
  %1716 = vmatpush1.bf16.msra.mxu0 %v1619
  %1717 = vmatprep.subr.bf16.mxu0 0
  %1718 = vmatpush1.bf16.msra.mxu0 %v1620
  %1719 = vmatprep.subr.bf16.mxu0 0
  %1720 = vmatpush1.bf16.msra.mxu0 0
  %1721 = vmatprep.subr.bf16.mxu0 0
  %1722 = vmatpush1.bf16.msra.mxu0 0
  %1723 = vmatprep.subr.bf16.mxu0 0
  %1724 = vmatpush1.bf16.msra.mxu0 0
  %1725 = vmatprep.subr.bf16.mxu0 0
  %1726 = vmatpush1.bf16.msra.mxu0 0
  %1727 = vmatprep.subr.bf16.mxu0 0
  %1728 = vmatpush1.bf16.msra.mxu0 0
  %1729 = vmatprep.subr.bf16.mxu0 0
  %1730 = vmatpush1.bf16.msra.mxu0 0
  %1731 = vmatprep.subr.bf16.mxu0 0
  %1732 = vmatpush1.bf16.msra.mxu0 0
  %1733 = vmatprep.subr.bf16.mxu0 0
  %1734 = vmatpush1.bf16.msra.mxu0 0
  %1735 = vmatprep.subr.bf16.mxu0 0
  %1736 = vmatpush1.bf16.msra.mxu0 0
  %1737 = vmatprep.subr.bf16.mxu0 0
  %1738 = vmatpush1.bf16.msra.mxu0 0
  %1739 = vmatprep.subr.bf16.mxu0 0
  %1740 = vmatpush1.bf16.msra.mxu0 0
  %1741 = vmatprep.subr.bf16.mxu0 0
  %1742 = vmatpush1.bf16.msra.mxu0 0
  %1743 = vmatprep.subr.bf16.mxu0 0
  %1744 = vmatpush1.bf16.msra.mxu0 0
  %1745 = vmatprep.subr.bf16.mxu0 0
  %1746 = vmatpush1.bf16.msra.mxu0 0
  %1747 = vmatprep.mubr.bf16.mxu0 0
  %1748 = vmatmul.mubr.bf16.gmra.mrb[0].mxu0 %v1710
  %v1749 = vpop.f32.mrb[0].mxu0
  %v1750 = vadd.f32 %v1685, %v1749
  %v1751 = vpop.f32.mrb[0].mxu0
  %v1752 = vpop.f32.mrb[0].mxu0
  %v1753 = vadd.f32 %v1688, %v1752
  %v1754 = vpop.f32.mrb[0].mxu0
  %1755 = vmatprep.mubr.bf16.mxu0 0
  %1756 = vmatmul.mubr.bf16.gmra.mrb[0].mxu0 %v1713
  %v1757 = vpop.f32.mrb[0].mxu0
  %v1758 = vadd.f32 %v1693, %v1757
  %v1759 = vpop.f32.mrb[0].mxu0
  %v1760 = vpop.f32.mrb[0].mxu0
  %v1761 = vadd.f32 %v1696, %v1760
  %v1762 = vpop.f32.mrb[0].mxu0
  %1763 = vdwg.mxu0
  %v1764 = vld [vmem:[%s2 + $0xb0] sm:$0xf]
  %v1765 = vld [vmem:[%s2 + $0xb4] sm:$0xf]
  %v1766 = vld [vmem:[%s2 + $0xb8] sm:$0xf]
  %v1767 = vld [vmem:[%s2 + $0xbc] sm:$0xf]
  %v1772 = vunpack.c.l.b16 %v1764
  %v1773 = vunpack.c.l.b16 %v1765
  %v1774 = vunpack.c.l.b16 %v1766
  %v1775 = vunpack.c.l.b16 %v1767
  %v1776 = vpack.c.b16 %v1773, %v1772
  %v1777 = vpack.c.b16 %v1775, %v1774
  %1778 = vrot.lane.b32.xlu0 %v1619, 112
  %v1779 = vpop.permute.xlu0 %1778
  %1780 = vrot.lane.b32.xlu0 %v1620, 112
  %v1781 = vpop.permute.xlu0 %1780
  %v1785 = vsel %vm1643, %v1776, 0
  %v1788 = vsel %vm1643, %v1777, 0
  %1790 = vmatprep.subr.bf16.mxu0 0
  %1791 = vmatpush1.bf16.msra.mxu0 %v1779
  %1792 = vmatprep.subr.bf16.mxu0 0
  %1793 = vmatpush1.bf16.msra.mxu0 %v1781
  %1794 = vmatprep.subr.bf16.mxu0 0
  %1795 = vmatpush1.bf16.msra.mxu0 0
  %1796 = vmatprep.subr.bf16.mxu0 0
  %1797 = vmatpush1.bf16.msra.mxu0 0
  %1798 = vmatprep.subr.bf16.mxu0 0
  %1799 = vmatpush1.bf16.msra.mxu0 0
  %1800 = vmatprep.subr.bf16.mxu0 0
  %1801 = vmatpush1.bf16.msra.mxu0 0
  %1802 = vmatprep.subr.bf16.mxu0 0
  %1803 = vmatpush1.bf16.msra.mxu0 0
  %1804 = vmatprep.subr.bf16.mxu0 0
  %1805 = vmatpush1.bf16.msra.mxu0 0
  %1806 = vmatprep.subr.bf16.mxu0 0
  %1807 = vmatpush1.bf16.msra.mxu0 0
  %1808 = vmatprep.subr.bf16.mxu0 0
  %1809 = vmatpush1.bf16.msra.mxu0 0
  %1810 = vmatprep.subr.bf16.mxu0 0
  %1811 = vmatpush1.bf16.msra.mxu0 0
  %1812 = vmatprep.subr.bf16.mxu0 0
  %1813 = vmatpush1.bf16.msra.mxu0 0
  %1814 = vmatprep.subr.bf16.mxu0 0
  %1815 = vmatpush1.bf16.msra.mxu0 0
  %1816 = vmatprep.subr.bf16.mxu0 0
  %1817 = vmatpush1.bf16.msra.mxu0 0
  %1818 = vmatprep.subr.bf16.mxu0 0
  %1819 = vmatpush1.bf16.msra.mxu0 0
  %1820 = vmatprep.subr.bf16.mxu0 0
  %1821 = vmatpush1.bf16.msra.mxu0 0
  %1822 = vmatprep.mubr.bf16.mxu0 0
  %1823 = vmatmul.mubr.bf16.gmra.mrb[0].mxu0 %v1785
  %v1824 = vpop.f32.mrb[0].mxu0
  %v1825 = vadd.f32 0.0, %v1824
  %v1826 = vpop.f32.mrb[0].mxu0
  %v1827 = vpop.f32.mrb[0].mxu0
  %v1828 = vadd.f32 0.0, %v1827
  %v1829 = vpop.f32.mrb[0].mxu0
  %1830 = vmatprep.mubr.bf16.mxu0 0
  %1831 = vmatmul.mubr.bf16.gmra.mrb[0].mxu0 %v1788
  %v1832 = vpop.f32.mrb[0].mxu0
  %v1833 = vadd.f32 0.0, %v1832
  %v1834 = vpop.f32.mrb[0].mxu0
  %v1835 = vpop.f32.mrb[0].mxu0
  %v1836 = vadd.f32 0.0, %v1835
  %v1837 = vpop.f32.mrb[0].mxu0
  %1838 = vdwg.mxu0
  %v1839 = vadd.f32 %v1750, %v1825
  %v1840 = vadd.f32 %v1753, %v1828
  %v1841 = vadd.f32 %v1758, %v1833
  %v1842 = vadd.f32 %v1761, %v1836
  %v1843 = vld [vmem:[%s2 + $0xc0] sm:$0xf]
  %v1844 = vld [vmem:[%s2 + $0xc4] sm:$0xf]
  %v1845 = vld [vmem:[%s2 + $0xc8] sm:$0xf]
  %v1846 = vld [vmem:[%s2 + $0xcc] sm:$0xf]
  %v1851 = vunpack.c.l.b16 %v1843
  %v1852 = vunpack.c.l.b16 %v1844
  %v1853 = vunpack.c.l.b16 %v1845
  %v1854 = vunpack.c.l.b16 %v1846
  %v1855 = vpack.c.b16 %v1852, %v1851
  %v1856 = vpack.c.b16 %v1854, %v1853
  %1857 = vrot.lane.b32.xlu0 %v1619, 104
  %v1858 = vpop.permute.xlu0 %1857
  %1859 = vrot.lane.b32.xlu0 %v1620, 104
  %v1860 = vpop.permute.xlu0 %1859
  %v1864 = vsel %vm1643, %v1855, 0
  %v1867 = vsel %vm1643, %v1856, 0
  %1869 = vmatprep.subr.bf16.mxu0 0
  %1870 = vmatpush1.bf16.msra.mxu0 %v1858
  %1871 = vmatprep.subr.bf16.mxu0 0
  %1872 = vmatpush1.bf16.msra.mxu0 %v1860
  %1873 = vmatprep.subr.bf16.mxu0 0
  %1874 = vmatpush1.bf16.msra.mxu0 0
  %1875 = vmatprep.subr.bf16.mxu0 0
  %1876 = vmatpush1.bf16.msra.mxu0 0
  %1877 = vmatprep.subr.bf16.mxu0 0
  %1878 = vmatpush1.bf16.msra.mxu0 0
  %1879 = vmatprep.subr.bf16.mxu0 0
  %1880 = vmatpush1.bf16.msra.mxu0 0
  %1881 = vmatprep.subr.bf16.mxu0 0
  %1882 = vmatpush1.bf16.msra.mxu0 0
  %1883 = vmatprep.subr.bf16.mxu0 0
  %1884 = vmatpush1.bf16.msra.mxu0 0
  %1885 = vmatprep.subr.bf16.mxu0 0
  %1886 = vmatpush1.bf16.msra.mxu0 0
  %1887 = vmatprep.subr.bf16.mxu0 0
  %1888 = vmatpush1.bf16.msra.mxu0 0
  %1889 = vmatprep.subr.bf16.mxu0 0
  %1890 = vmatpush1.bf16.msra.mxu0 0
  %1891 = vmatprep.subr.bf16.mxu0 0
  %1892 = vmatpush1.bf16.msra.mxu0 0
  %1893 = vmatprep.subr.bf16.mxu0 0
  %1894 = vmatpush1.bf16.msra.mxu0 0
  %1895 = vmatprep.subr.bf16.mxu0 0
  %1896 = vmatpush1.bf16.msra.mxu0 0
  %1897 = vmatprep.subr.bf16.mxu0 0
  %1898 = vmatpush1.bf16.msra.mxu0 0
  %1899 = vmatprep.subr.bf16.mxu0 0
  %1900 = vmatpush1.bf16.msra.mxu0 0
  %1901 = vmatprep.mubr.bf16.mxu0 0
  %1902 = vmatmul.mubr.bf16.gmra.mrb[0].mxu0 %v1864
  %v1903 = vpop.f32.mrb[0].mxu0
  %v1904 = vadd.f32 0.0, %v1903
  %v1905 = vpop.f32.mrb[0].mxu0
  %v1906 = vpop.f32.mrb[0].mxu0
  %v1907 = vadd.f32 0.0, %v1906
  %v1908 = vpop.f32.mrb[0].mxu0
  %1909 = vmatprep.mubr.bf16.mxu0 0
  %1910 = vmatmul.mubr.bf16.gmra.mrb[0].mxu0 %v1867
  %v1911 = vpop.f32.mrb[0].mxu0
  %v1912 = vadd.f32 0.0, %v1911
  %v1913 = vpop.f32.mrb[0].mxu0
  %v1914 = vpop.f32.mrb[0].mxu0
  %v1915 = vadd.f32 0.0, %v1914
  %v1916 = vpop.f32.mrb[0].mxu0
  %1917 = vdwg.mxu0
  %v1918 = vadd.f32 %v1839, %v1904
  %v1919 = vadd.f32 %v1840, %v1907
  %v1920 = vadd.f32 %v1841, %v1912
  %v1921 = vadd.f32 %v1842, %v1915
  %v1922 = vld [vmem:[%s2 + $0xd0] sm:$0xf]
  %v1923 = vld [vmem:[%s2 + $0xd4] sm:$0xf]
  %v1924 = vld [vmem:[%s2 + $0xd8] sm:$0xf]
  %v1925 = vld [vmem:[%s2 + $0xdc] sm:$0xf]
  %v1930 = vunpack.c.l.b16 %v1922
  %v1931 = vunpack.c.l.b16 %v1923
  %v1932 = vunpack.c.l.b16 %v1924
  %v1933 = vunpack.c.l.b16 %v1925
  %v1934 = vpack.c.b16 %v1931, %v1930
  %v1935 = vpack.c.b16 %v1933, %v1932
  %1936 = vrot.lane.b32.xlu0 %v1619, 96
  %v1937 = vpop.permute.xlu0 %1936
  %1938 = vrot.lane.b32.xlu0 %v1620, 96
  %v1939 = vpop.permute.xlu0 %1938
  %v1943 = vsel %vm1643, %v1934, 0
  %v1946 = vsel %vm1643, %v1935, 0
  %1948 = vmatprep.subr.bf16.mxu0 0
  %1949 = vmatpush1.bf16.msra.mxu0 %v1937
  %1950 = vmatprep.subr.bf16.mxu0 0
  %1951 = vmatpush1.bf16.msra.mxu0 %v1939
  %1952 = vmatprep.subr.bf16.mxu0 0
  %1953 = vmatpush1.bf16.msra.mxu0 0
  %1954 = vmatprep.subr.bf16.mxu0 0
  %1955 = vmatpush1.bf16.msra.mxu0 0
  %1956 = vmatprep.subr.bf16.mxu0 0
  %1957 = vmatpush1.bf16.msra.mxu0 0
  %1958 = vmatprep.subr.bf16.mxu0 0
  %1959 = vmatpush1.bf16.msra.mxu0 0
  %1960 = vmatprep.subr.bf16.mxu0 0
  %1961 = vmatpush1.bf16.msra.mxu0 0
  %1962 = vmatprep.subr.bf16.mxu0 0
  %1963 = vmatpush1.bf16.msra.mxu0 0
  %1964 = vmatprep.subr.bf16.mxu0 0
  %1965 = vmatpush1.bf16.msra.mxu0 0
  %1966 = vmatprep.subr.bf16.mxu0 0
  %1967 = vmatpush1.bf16.msra.mxu0 0
  %1968 = vmatprep.subr.bf16.mxu0 0
  %1969 = vmatpush1.bf16.msra.mxu0 0
  %1970 = vmatprep.subr.bf16.mxu0 0
  %1971 = vmatpush1.bf16.msra.mxu0 0
  %1972 = vmatprep.subr.bf16.mxu0 0
  %1973 = vmatpush1.bf16.msra.mxu0 0
  %1974 = vmatprep.subr.bf16.mxu0 0
  %1975 = vmatpush1.bf16.msra.mxu0 0
  %1976 = vmatprep.subr.bf16.mxu0 0
  %1977 = vmatpush1.bf16.msra.mxu0 0
  %1978 = vmatprep.subr.bf16.mxu0 0
  %1979 = vmatpush1.bf16.msra.mxu0 0
  %1980 = vmatprep.mubr.bf16.mxu0 0
  %1981 = vmatmul.mubr.bf16.gmra.mrb[0].mxu0 %v1943
  %v1982 = vpop.f32.mrb[0].mxu0
  %v1983 = vadd.f32 0.0, %v1982
  %v1984 = vpop.f32.mrb[0].mxu0
  %v1985 = vpop.f32.mrb[0].mxu0
  %v1986 = vadd.f32 0.0, %v1985
  %v1987 = vpop.f32.mrb[0].mxu0
  %1988 = vmatprep.mubr.bf16.mxu0 0
  %1989 = vmatmul.mubr.bf16.gmra.mrb[0].mxu0 %v1946
  %v1990 = vpop.f32.mrb[0].mxu0
  %v1991 = vadd.f32 0.0, %v1990
  %v1992 = vpop.f32.mrb[0].mxu0
  %v1993 = vpop.f32.mrb[0].mxu0
  %v1994 = vadd.f32 0.0, %v1993
  %v1995 = vpop.f32.mrb[0].mxu0
  %1996 = vdwg.mxu0
  %v1997 = vadd.f32 %v1918, %v1983
  %v1998 = vadd.f32 %v1919, %v1986
  %v1999 = vadd.f32 %v1920, %v1991
  %v2000 = vadd.f32 %v1921, %v1994
  %v2001 = vld [vmem:[%s2 + $0xe0] sm:$0xf]
  %v2002 = vld [vmem:[%s2 + $0xe4] sm:$0xf]
  %v2003 = vld [vmem:[%s2 + $0xe8] sm:$0xf]
  %v2004 = vld [vmem:[%s2 + $0xec] sm:$0xf]
  %v2009 = vunpack.c.l.b16 %v2001
  %v2010 = vunpack.c.l.b16 %v2002
  %v2011 = vunpack.c.l.b16 %v2003
  %v2012 = vunpack.c.l.b16 %v2004
  %v2013 = vpack.c.b16 %v2010, %v2009
  %v2014 = vpack.c.b16 %v2012, %v2011
  %2015 = vrot.lane.b32.xlu0 %v1619, 88
  %v2016 = vpop.permute.xlu0 %2015
  %2017 = vrot.lane.b32.xlu0 %v1620, 88
  %v2018 = vpop.permute.xlu0 %2017
  %v2022 = vsel %vm1643, %v2013, 0
  %v2025 = vsel %vm1643, %v2014, 0
  %2027 = vmatprep.subr.bf16.mxu0 0
  %2028 = vmatpush1.bf16.msra.mxu0 %v2016
  %2029 = vmatprep.subr.bf16.mxu0 0
  %2030 = vmatpush1.bf16.msra.mxu0 %v2018
  %2031 = vmatprep.subr.bf16.mxu0 0
  %2032 = vmatpush1.bf16.msra.mxu0 0
  %2033 = vmatprep.subr.bf16.mxu0 0
  %2034 = vmatpush1.bf16.msra.mxu0 0
  %2035 = vmatprep.subr.bf16.mxu0 0
  %2036 = vmatpush1.bf16.msra.mxu0 0
  %2037 = vmatprep.subr.bf16.mxu0 0
  %2038 = vmatpush1.bf16.msra.mxu0 0
  %2039 = vmatprep.subr.bf16.mxu0 0
  %2040 = vmatpush1.bf16.msra.mxu0 0
  %2041 = vmatprep.subr.bf16.mxu0 0
  %2042 = vmatpush1.bf16.msra.mxu0 0
  %2043 = vmatprep.subr.bf16.mxu0 0
  %2044 = vmatpush1.bf16.msra.mxu0 0
  %2045 = vmatprep.subr.bf16.mxu0 0
  %2046 = vmatpush1.bf16.msra.mxu0 0
  %2047 = vmatprep.subr.bf16.mxu0 0
  %2048 = vmatpush1.bf16.msra.mxu0 0
  %2049 = vmatprep.subr.bf16.mxu0 0
  %2050 = vmatpush1.bf16.msra.mxu0 0
  %2051 = vmatprep.subr.bf16.mxu0 0
  %2052 = vmatpush1.bf16.msra.mxu0 0
  %2053 = vmatprep.subr.bf16.mxu0 0
  %2054 = vmatpush1.bf16.msra.mxu0 0
  %2055 = vmatprep.subr.bf16.mxu0 0
  %2056 = vmatpush1.bf16.msra.mxu0 0
  %2057 = vmatprep.subr.bf16.mxu0 0
  %2058 = vmatpush1.bf16.msra.mxu0 0
  %2059 = vmatprep.mubr.bf16.mxu0 0
  %2060 = vmatmul.mubr.bf16.gmra.mrb[0].mxu0 %v2022
  %v2061 = vpop.f32.mrb[0].mxu0
  %v2062 = vadd.f32 0.0, %v2061
  %v2063 = vpop.f32.mrb[0].mxu0
  %v2064 = vpop.f32.mrb[0].mxu0
  %v2065 = vadd.f32 0.0, %v2064
  %v2066 = vpop.f32.mrb[0].mxu0
  %2067 = vmatprep.mubr.bf16.mxu0 0
  %2068 = vmatmul.mubr.bf16.gmra.mrb[0].mxu0 %v2025
  %v2069 = vpop.f32.mrb[0].mxu0
  %v2070 = vadd.f32 0.0, %v2069
  %v2071 = vpop.f32.mrb[0].mxu0
  %v2072 = vpop.f32.mrb[0].mxu0
  %v2073 = vadd.f32 0.0, %v2072
  %v2074 = vpop.f32.mrb[0].mxu0
  %2075 = vdwg.mxu0
  %v2076 = vadd.f32 %v1997, %v2062
  %v2077 = vadd.f32 %v1998, %v2065
  %v2078 = vadd.f32 %v1999, %v2070
  %v2079 = vadd.f32 %v2000, %v2073
  %v2080 = vld [vmem:[%s2 + $0xf0] sm:$0xf]
  %v2081 = vld [vmem:[%s2 + $0xf4] sm:$0xf]
  %v2082 = vld [vmem:[%s2 + $0xf8] sm:$0xf]
  %v2083 = vld [vmem:[%s2 + $0xfc] sm:$0xf]
  %v2088 = vunpack.c.l.b16 %v2080
  %v2089 = vunpack.c.l.b16 %v2081
  %v2090 = vunpack.c.l.b16 %v2082
  %v2091 = vunpack.c.l.b16 %v2083
  %v2092 = vpack.c.b16 %v2089, %v2088
  %v2093 = vpack.c.b16 %v2091, %v2090
  %2094 = vrot.lane.b32.xlu0 %v1619, 80
  %v2095 = vpop.permute.xlu0 %2094
  %2096 = vrot.lane.b32.xlu0 %v1620, 80
  %v2097 = vpop.permute.xlu0 %2096
  %v2101 = vsel %vm1643, %v2092, 0
  %v2104 = vsel %vm1643, %v2093, 0
  %2106 = vmatprep.subr.bf16.mxu0 0
  %2107 = vmatpush1.bf16.msra.mxu0 %v2095
  %2108 = vmatprep.subr.bf16.mxu0 0
  %2109 = vmatpush1.bf16.msra.mxu0 %v2097
  %2110 = vmatprep.subr.bf16.mxu0 0
  %2111 = vmatpush1.bf16.msra.mxu0 0
  %2112 = vmatprep.subr.bf16.mxu0 0
  %2113 = vmatpush1.bf16.msra.mxu0 0
  %2114 = vmatprep.subr.bf16.mxu0 0
  %2115 = vmatpush1.bf16.msra.mxu0 0
  %2116 = vmatprep.subr.bf16.mxu0 0
  %2117 = vmatpush1.bf16.msra.mxu0 0
  %2118 = vmatprep.subr.bf16.mxu0 0
  %2119 = vmatpush1.bf16.msra.mxu0 0
  %2120 = vmatprep.subr.bf16.mxu0 0
  %2121 = vmatpush1.bf16.msra.mxu0 0
  %2122 = vmatprep.subr.bf16.mxu0 0
  %2123 = vmatpush1.bf16.msra.mxu0 0
  %2124 = vmatprep.subr.bf16.mxu0 0
  %2125 = vmatpush1.bf16.msra.mxu0 0
  %2126 = vmatprep.subr.bf16.mxu0 0
  %2127 = vmatpush1.bf16.msra.mxu0 0
  %2128 = vmatprep.subr.bf16.mxu0 0
  %2129 = vmatpush1.bf16.msra.mxu0 0
  %2130 = vmatprep.subr.bf16.mxu0 0
  %2131 = vmatpush1.bf16.msra.mxu0 0
  %2132 = vmatprep.subr.bf16.mxu0 0
  %2133 = vmatpush1.bf16.msra.mxu0 0
  %2134 = vmatprep.subr.bf16.mxu0 0
  %2135 = vmatpush1.bf16.msra.mxu0 0
  %2136 = vmatprep.subr.bf16.mxu0 0
  %2137 = vmatpush1.bf16.msra.mxu0 0
  %2138 = vmatprep.mubr.bf16.mxu0 0
  %2139 = vmatmul.mubr.bf16.gmra.mrb[0].mxu0 %v2101
  %v2140 = vpop.f32.mrb[0].mxu0
  %v2141 = vadd.f32 0.0, %v2140
  %v2142 = vpop.f32.mrb[0].mxu0
  %v2143 = vpop.f32.mrb[0].mxu0
  %v2144 = vadd.f32 0.0, %v2143
  %v2145 = vpop.f32.mrb[0].mxu0
  %2146 = vmatprep.mubr.bf16.mxu0 0
  %2147 = vmatmul.mubr.bf16.gmra.mrb[0].mxu0 %v2104
  %v2148 = vpop.f32.mrb[0].mxu0
  %v2149 = vadd.f32 0.0, %v2148
  %v2150 = vpop.f32.mrb[0].mxu0
  %v2151 = vpop.f32.mrb[0].mxu0
  %v2152 = vadd.f32 0.0, %v2151
  %v2153 = vpop.f32.mrb[0].mxu0
  %2154 = vdwg.mxu0
  %v2155 = vadd.f32 %v2076, %v2141
  %v2156 = vadd.f32 %v2077, %v2144
  %v2157 = vadd.f32 %v2078, %v2149
  %v2158 = vadd.f32 %v2079, %v2152
  %v2159 = vld [vmem:[%s2 + $0x100] sm:$0xf]
  %v2160 = vld [vmem:[%s2 + $0x104] sm:$0xf]
  %v2161 = vld [vmem:[%s2 + $0x108] sm:$0xf]
  %v2162 = vld [vmem:[%s2 + $0x10c] sm:$0xf]
  %v2167 = vunpack.c.l.b16 %v2159
  %v2168 = vunpack.c.l.b16 %v2160
  %v2169 = vunpack.c.l.b16 %v2161
  %v2170 = vunpack.c.l.b16 %v2162
  %v2171 = vpack.c.b16 %v2168, %v2167
  %v2172 = vpack.c.b16 %v2170, %v2169
  %2173 = vrot.lane.b32.xlu0 %v1619, 72
  %v2174 = vpop.permute.xlu0 %2173
  %2175 = vrot.lane.b32.xlu0 %v1620, 72
  %v2176 = vpop.permute.xlu0 %2175
  %v2180 = vsel %vm1643, %v2171, 0
  %v2183 = vsel %vm1643, %v2172, 0
  %2185 = vmatprep.subr.bf16.mxu0 0
  %2186 = vmatpush1.bf16.msra.mxu0 %v2174
  %2187 = vmatprep.subr.bf16.mxu0 0
  %2188 = vmatpush1.bf16.msra.mxu0 %v2176
  %2189 = vmatprep.subr.bf16.mxu0 0
  %2190 = vmatpush1.bf16.msra.mxu0 0
  %2191 = vmatprep.subr.bf16.mxu0 0
  %2192 = vmatpush1.bf16.msra.mxu0 0
  %2193 = vmatprep.subr.bf16.mxu0 0
  %2194 = vmatpush1.bf16.msra.mxu0 0
  %2195 = vmatprep.subr.bf16.mxu0 0
  %2196 = vmatpush1.bf16.msra.mxu0 0
  %2197 = vmatprep.subr.bf16.mxu0 0
  %2198 = vmatpush1.bf16.msra.mxu0 0
  %2199 = vmatprep.subr.bf16.mxu0 0
  %2200 = vmatpush1.bf16.msra.mxu0 0
  %2201 = vmatprep.subr.bf16.mxu0 0
  %2202 = vmatpush1.bf16.msra.mxu0 0
  %2203 = vmatprep.subr.bf16.mxu0 0
  %2204 = vmatpush1.bf16.msra.mxu0 0
  %2205 = vmatprep.subr.bf16.mxu0 0
  %2206 = vmatpush1.bf16.msra.mxu0 0
  %2207 = vmatprep.subr.bf16.mxu0 0
  %2208 = vmatpush1.bf16.msra.mxu0 0
  %2209 = vmatprep.subr.bf16.mxu0 0
  %2210 = vmatpush1.bf16.msra.mxu0 0
  %2211 = vmatprep.subr.bf16.mxu0 0
  %2212 = vmatpush1.bf16.msra.mxu0 0
  %2213 = vmatprep.subr.bf16.mxu0 0
  %2214 = vmatpush1.bf16.msra.mxu0 0
  %2215 = vmatprep.subr.bf16.mxu0 0
  %2216 = vmatpush1.bf16.msra.mxu0 0
  %2217 = vmatprep.mubr.bf16.mxu0 0
  %2218 = vmatmul.mubr.bf16.gmra.mrb[0].mxu0 %v2180
  %v2219 = vpop.f32.mrb[0].mxu0
  %v2220 = vadd.f32 0.0, %v2219
  %v2221 = vpop.f32.mrb[0].mxu0
  %v2222 = vpop.f32.mrb[0].mxu0
  %v2223 = vadd.f32 0.0, %v2222
  %v2224 = vpop.f32.mrb[0].mxu0
  %2225 = vmatprep.mubr.bf16.mxu0 0
  %2226 = vmatmul.mubr.bf16.gmra.mrb[0].mxu0 %v2183
  %v2227 = vpop.f32.mrb[0].mxu0
  %v2228 = vadd.f32 0.0, %v2227
  %v2229 = vpop.f32.mrb[0].mxu0
  %v2230 = vpop.f32.mrb[0].mxu0
  %v2231 = vadd.f32 0.0, %v2230
  %v2232 = vpop.f32.mrb[0].mxu0
  %2233 = vdwg.mxu0
  %v2234 = vadd.f32 %v2155, %v2220
  %v2235 = vadd.f32 %v2156, %v2223
  %v2236 = vadd.f32 %v2157, %v2228
  %v2237 = vadd.f32 %v2158, %v2231
  %v2238 = vld [vmem:[%s2 + $0x110] sm:$0xf]
  %v2239 = vld [vmem:[%s2 + $0x114] sm:$0xf]
  %v2240 = vld [vmem:[%s2 + $0x118] sm:$0xf]
  %v2241 = vld [vmem:[%s2 + $0x11c] sm:$0xf]
  %v2246 = vunpack.c.l.b16 %v2238
  %v2247 = vunpack.c.l.b16 %v2239
  %v2248 = vunpack.c.l.b16 %v2240
  %v2249 = vunpack.c.l.b16 %v2241
  %v2250 = vpack.c.b16 %v2247, %v2246
  %v2251 = vpack.c.b16 %v2249, %v2248
  %2252 = vrot.lane.b32.xlu0 %v1619, 64
  %v2253 = vpop.permute.xlu0 %2252
  %2254 = vrot.lane.b32.xlu0 %v1620, 64
  %v2255 = vpop.permute.xlu0 %2254
  %v2259 = vsel %vm1643, %v2250, 0
  %v2262 = vsel %vm1643, %v2251, 0
  %2264 = vmatprep.subr.bf16.mxu0 0
  %2265 = vmatpush1.bf16.msra.mxu0 %v2253
  %2266 = vmatprep.subr.bf16.mxu0 0
  %2267 = vmatpush1.bf16.msra.mxu0 %v2255
  %2268 = vmatprep.subr.bf16.mxu0 0
  %2269 = vmatpush1.bf16.msra.mxu0 0
  %2270 = vmatprep.subr.bf16.mxu0 0
  %2271 = vmatpush1.bf16.msra.mxu0 0
  %2272 = vmatprep.subr.bf16.mxu0 0
  %2273 = vmatpush1.bf16.msra.mxu0 0
  %2274 = vmatprep.subr.bf16.mxu0 0
  %2275 = vmatpush1.bf16.msra.mxu0 0
  %2276 = vmatprep.subr.bf16.mxu0 0
  %2277 = vmatpush1.bf16.msra.mxu0 0
  %2278 = vmatprep.subr.bf16.mxu0 0
  %2279 = vmatpush1.bf16.msra.mxu0 0
  %2280 = vmatprep.subr.bf16.mxu0 0
  %2281 = vmatpush1.bf16.msra.mxu0 0
  %2282 = vmatprep.subr.bf16.mxu0 0
  %2283 = vmatpush1.bf16.msra.mxu0 0
  %2284 = vmatprep.subr.bf16.mxu0 0
  %2285 = vmatpush1.bf16.msra.mxu0 0
  %2286 = vmatprep.subr.bf16.mxu0 0
  %2287 = vmatpush1.bf16.msra.mxu0 0
  %2288 = vmatprep.subr.bf16.mxu0 0
  %2289 = vmatpush1.bf16.msra.mxu0 0
  %2290 = vmatprep.subr.bf16.mxu0 0
  %2291 = vmatpush1.bf16.msra.mxu0 0
  %2292 = vmatprep.subr.bf16.mxu0 0
  %2293 = vmatpush1.bf16.msra.mxu0 0
  %2294 = vmatprep.subr.bf16.mxu0 0
  %2295 = vmatpush1.bf16.msra.mxu0 0
  %2296 = vmatprep.mubr.bf16.mxu0 0
  %2297 = vmatmul.mubr.bf16.gmra.mrb[0].mxu0 %v2259
  %v2298 = vpop.f32.mrb[0].mxu0
  %v2299 = vadd.f32 0.0, %v2298
  %v2300 = vpop.f32.mrb[0].mxu0
  %v2301 = vpop.f32.mrb[0].mxu0
  %v2302 = vadd.f32 0.0, %v2301
  %v2303 = vpop.f32.mrb[0].mxu0
  %2304 = vmatprep.mubr.bf16.mxu0 0
  %2305 = vmatmul.mubr.bf16.gmra.mrb[0].mxu0 %v2262
  %v2306 = vpop.f32.mrb[0].mxu0
  %v2307 = vadd.f32 0.0, %v2306
  %v2308 = vpop.f32.mrb[0].mxu0
  %v2309 = vpop.f32.mrb[0].mxu0
  %v2310 = vadd.f32 0.0, %v2309
  %v2311 = vpop.f32.mrb[0].mxu0
  %2312 = vdwg.mxu0
  %v2313 = vadd.f32 %v2234, %v2299
  %v2314 = vadd.f32 %v2235, %v2302
  %v2315 = vadd.f32 %v2236, %v2307
  %v2316 = vadd.f32 %v2237, %v2310
  %v2317 = vld [vmem:[%s3 + $0x20] sm:$0x1]
  %v2318 = vlaneseq
  %v2319 = vshrl.u32 %v2318, 7
  %v2320 = vsub.s32 0, %v2319
  %v2321 = vrot.slane %v2317, %v2320
  %v2322 = vadd.f32 %v2313, %v2321
  %v2323 = vadd.f32 %v2314, %v2321
  %v2324 = vadd.f32 %v2315, %v2321
  %v2325 = vadd.f32 %v2316, %v2321
  %v2326 = vxor.u32 %v2322, 2147483648
  %v2327 = vxor.u32 %v2323, 2147483648
  %v2328 = vxor.u32 %v2324, 2147483648
  %v2329 = vxor.u32 %v2325, 2147483648
  %v2330 = vmul.f32 %v2326, 1.442695
  %v2331 = vpow.pop %v2330
  %v2332 = vmul.f32 %v2327, 1.442695
  %v2333 = vpow.pop %v2332
  %v2334 = vmul.f32 %v2328, 1.442695
  %v2335 = vpow.pop %v2334
  %v2336 = vmul.f32 %v2329, 1.442695
  %v2337 = vpow.pop %v2336
  %v2338 = vadd.f32 %v2331, 1.0
  %v2339 = vadd.f32 %v2333, 1.0
  %v2340 = vadd.f32 %v2335, 1.0
  %v2341 = vadd.f32 %v2337, 1.0
  %v2342 = vrcp.pop %v2338
  %v2343 = vmul.f32 1.0, %v2342
  %v2344 = vrcp.pop %v2339
  %v2345 = vmul.f32 1.0, %v2344
  %v2346 = vrcp.pop %v2340
  %v2347 = vmul.f32 1.0, %v2346
  %v2348 = vrcp.pop %v2341
  %v2349 = vmul.f32 1.0, %v2348
  %v2350 = vmul.f32 %v2322, %v2343
  %v2351 = vmul.f32 %v2323, %v2345
  %v2352 = vmul.f32 %v2324, %v2347
  %v2353 = vmul.f32 %v2325, %v2349
  %v2354 = vadd.f32 %v1456, %v2350
  %v2355 = vadd.f32 %v1457, %v2351
  %v2356 = vadd.f32 %v1458, %v2352
  %v2357 = vadd.f32 %v1459, %v2353
  %v2358 = vld [vmem:[%s1 + $0x120] sm:$0xf]
  %v2359 = vld [vmem:[%s1 + $0x12c] sm:$0xf]
  %v2360 = vld [vmem:[%s3 + $0x28] sm:$0x1]
  %v2361 = vlaneseq
  %v2362 = vshrl.u32 %v2361, 7
  %v2363 = vsub.s32 0, %v2362
  %v2364 = vrot.slane %v2360, %v2363
  %v2367 = vunpack.c.l.b16 %v2358
  %v2368 = vunpack.c.l.b16 %v2359
  %v2369 = vpack.c.b16 %v2368, %v2367
  %2371 = vmatprep.subr.bf16.mxu0 0
  %2372 = vmatpush1.bf16.msra.mxu0 %v2369
  %2373 = vmatprep.subr.bf16.mxu0 0
  %2374 = vmatpush1.bf16.msra.mxu0 0
  %2375 = vmatprep.subr.bf16.mxu0 0
  %2376 = vmatpush1.bf16.msra.mxu0 0
  %2377 = vmatprep.subr.bf16.mxu0 0
  %2378 = vmatpush1.bf16.msra.mxu0 0
  %2379 = vmatprep.subr.bf16.mxu0 0
  %2380 = vmatpush1.bf16.msra.mxu0 0
  %2381 = vmatprep.subr.bf16.mxu0 0
  %2382 = vmatpush1.bf16.msra.mxu0 0
  %2383 = vmatprep.subr.bf16.mxu0 0
  %2384 = vmatpush1.bf16.msra.mxu0 0
  %2385 = vmatprep.subr.bf16.mxu0 0
  %2386 = vmatpush1.bf16.msra.mxu0 0
  %2387 = vmatprep.subr.bf16.mxu0 0
  %2388 = vmatpush1.bf16.msra.mxu0 0
  %2389 = vmatprep.subr.bf16.mxu0 0
  %2390 = vmatpush1.bf16.msra.mxu0 0
  %2391 = vmatprep.subr.bf16.mxu0 0
  %2392 = vmatpush1.bf16.msra.mxu0 0
  %2393 = vmatprep.subr.bf16.mxu0 0
  %2394 = vmatpush1.bf16.msra.mxu0 0
  %2395 = vmatprep.subr.bf16.mxu0 0
  %2396 = vmatpush1.bf16.msra.mxu0 0
  %2397 = vmatprep.subr.bf16.mxu0 0
  %2398 = vmatpush1.bf16.msra.mxu0 0
  %2399 = vmatprep.subr.bf16.mxu0 0
  %2400 = vmatpush1.bf16.msra.mxu0 0
  %2401 = vmatprep.subr.bf16.mxu0 0
  %2402 = vmatpush1.bf16.msra.mxu0 0
  %2403 = vmatprep.mubr.bf16.mxu0 0
  %2404 = vmatmul.mubr.bf16.gmra.mrb[0].mxu0 %v1378
  %v2405 = vpop.f32.mrb[0].mxu0
  %v2406 = vadd.f32 %v2364, %v2405
  %v2407 = vpop.f32.mrb[0].mxu0
  %v2408 = vpop.f32.mrb[0].mxu0
  %v2409 = vadd.f32 %v2364, %v2408
  %v2410 = vpop.f32.mrb[0].mxu0
  %2411 = vmatprep.mubr.bf16.mxu0 0
  %2412 = vmatmul.mubr.bf16.gmra.mrb[0].mxu0 %v1381
  %v2413 = vpop.f32.mrb[0].mxu0
  %v2414 = vadd.f32 %v2364, %v2413
  %v2415 = vpop.f32.mrb[0].mxu0
  %v2416 = vpop.f32.mrb[0].mxu0
  %v2417 = vadd.f32 %v2364, %v2416
  %v2418 = vpop.f32.mrb[0].mxu0
  %2419 = vdwg.mxu0
  %v2420 = vxor.u32 %v2406, 2147483648
  %v2421 = vxor.u32 %v2409, 2147483648
  %v2422 = vxor.u32 %v2414, 2147483648
  %v2423 = vxor.u32 %v2417, 2147483648
  %v2424 = vmul.f32 %v2420, 1.442695
  %v2425 = vpow.pop %v2424
  %v2426 = vmul.f32 %v2421, 1.442695
  %v2427 = vpow.pop %v2426
  %v2428 = vmul.f32 %v2422, 1.442695
  %v2429 = vpow.pop %v2428
  %v2430 = vmul.f32 %v2423, 1.442695
  %v2431 = vpow.pop %v2430
  %v2432 = vadd.f32 %v2425, 1.0
  %v2433 = vadd.f32 %v2427, 1.0
  %v2434 = vadd.f32 %v2429, 1.0
  %v2435 = vadd.f32 %v2431, 1.0
  %v2436 = vrcp.pop %v2432
  %v2437 = vmul.f32 1.0, %v2436
  %v2438 = vrcp.pop %v2433
  %v2439 = vmul.f32 1.0, %v2438
  %v2440 = vrcp.pop %v2434
  %v2441 = vmul.f32 1.0, %v2440
  %v2442 = vrcp.pop %v2435
  %v2443 = vmul.f32 1.0, %v2442
  %v2444 = vmul.f32 %v2406, %v2437
  %v2445 = vmul.f32 %v2409, %v2439
  %v2446 = vmul.f32 %v2414, %v2441
  %v2447 = vmul.f32 %v2417, %v2443
  %v2448 = vld [vmem:[%s1 + $0x138] sm:$0xf]
  %v2449 = vpack.c.bf16 %v2355, %v2354
  %v2450 = vpack.c.bf16 %v2357, %v2356
  %v2451 = vld [vmem:[%s1 + $0x150] sm:$0xf]
  %v2452 = vpack.c.bf16 %v2445, %v2444
  %v2453 = vpack.c.bf16 %v2447, %v2446
  %v2455 = vsel %vm374, %v2452, 0
  %v2458 = vsel %vm374, %v2453, 0
  %v2461 = vsel %vm399, %v2451, 0
  %2463 = vmatprep.subr.bf16.mxu0 0
  %2464 = vmatpush1.bf16.msra.mxu0 %v2461
  %2465 = vmatprep.subr.bf16.mxu0 0
  %2466 = vmatpush1.bf16.msra.mxu0 0
  %2467 = vmatprep.subr.bf16.mxu0 0
  %2468 = vmatpush1.bf16.msra.mxu0 0
  %2469 = vmatprep.subr.bf16.mxu0 0
  %2470 = vmatpush1.bf16.msra.mxu0 0
  %2471 = vmatprep.subr.bf16.mxu0 0
  %2472 = vmatpush1.bf16.msra.mxu0 0
  %2473 = vmatprep.subr.bf16.mxu0 0
  %2474 = vmatpush1.bf16.msra.mxu0 0
  %2475 = vmatprep.subr.bf16.mxu0 0
  %2476 = vmatpush1.bf16.msra.mxu0 0
  %2477 = vmatprep.subr.bf16.mxu0 0
  %2478 = vmatpush1.bf16.msra.mxu0 0
  %2479 = vmatprep.subr.bf16.mxu0 0
  %2480 = vmatpush1.bf16.msra.mxu0 0
  %2481 = vmatprep.subr.bf16.mxu0 0
  %2482 = vmatpush1.bf16.msra.mxu0 0
  %2483 = vmatprep.subr.bf16.mxu0 0
  %2484 = vmatpush1.bf16.msra.mxu0 0
  %2485 = vmatprep.subr.bf16.mxu0 0
  %2486 = vmatpush1.bf16.msra.mxu0 0
  %2487 = vmatprep.subr.bf16.mxu0 0
  %2488 = vmatpush1.bf16.msra.mxu0 0
  %2489 = vmatprep.subr.bf16.mxu0 0
  %2490 = vmatpush1.bf16.msra.mxu0 0
  %2491 = vmatprep.subr.bf16.mxu0 0
  %2492 = vmatpush1.bf16.msra.mxu0 0
  %2493 = vmatprep.subr.bf16.mxu0 0
  %2494 = vmatpush1.bf16.msra.mxu0 0
  %2495 = vmatprep.mubr.bf16.mxu0 0
  %2496 = vmatmul.mubr.bf16.gmra.mrb[0].mxu0 %v2455
  %v2497 = vpop.f32.mrb[0].mxu0
  %v2498 = vadd.f32 0.0, %v2497
  %v2499 = vpop.f32.mrb[0].mxu0
  %v2500 = vpop.f32.mrb[0].mxu0
  %v2501 = vadd.f32 0.0, %v2500
  %v2502 = vpop.f32.mrb[0].mxu0
  %2503 = vmatprep.mubr.bf16.mxu0 0
  %2504 = vmatmul.mubr.bf16.gmra.mrb[0].mxu0 %v2458
  %v2505 = vpop.f32.mrb[0].mxu0
  %v2506 = vadd.f32 0.0, %v2505
  %v2507 = vpop.f32.mrb[0].mxu0
  %v2508 = vpop.f32.mrb[0].mxu0
  %v2509 = vadd.f32 0.0, %v2508
  %v2510 = vpop.f32.mrb[0].mxu0
  %2511 = vdwg.mxu0
  %v2513 = vsel %vm374, %v2449, 0
  %v2516 = vsel %vm374, %v2450, 0
  %v2519 = vsel %vm399, %v2448, 0
  %2521 = vmatprep.subr.bf16.mxu0 0
  %2522 = vmatpush1.bf16.msra.mxu0 %v2519
  %2523 = vmatprep.subr.bf16.mxu0 0
  %2524 = vmatpush1.bf16.msra.mxu0 0
  %2525 = vmatprep.subr.bf16.mxu0 0
  %2526 = vmatpush1.bf16.msra.mxu0 0
  %2527 = vmatprep.subr.bf16.mxu0 0
  %2528 = vmatpush1.bf16.msra.mxu0 0
  %2529 = vmatprep.subr.bf16.mxu0 0
  %2530 = vmatpush1.bf16.msra.mxu0 0
  %2531 = vmatprep.subr.bf16.mxu0 0
  %2532 = vmatpush1.bf16.msra.mxu0 0
  %2533 = vmatprep.subr.bf16.mxu0 0
  %2534 = vmatpush1.bf16.msra.mxu0 0
  %2535 = vmatprep.subr.bf16.mxu0 0
  %2536 = vmatpush1.bf16.msra.mxu0 0
  %2537 = vmatprep.subr.bf16.mxu0 0
  %2538 = vmatpush1.bf16.msra.mxu0 0
  %2539 = vmatprep.subr.bf16.mxu0 0
  %2540 = vmatpush1.bf16.msra.mxu0 0
  %2541 = vmatprep.subr.bf16.mxu0 0
  %2542 = vmatpush1.bf16.msra.mxu0 0
  %2543 = vmatprep.subr.bf16.mxu0 0
  %2544 = vmatpush1.bf16.msra.mxu0 0
  %2545 = vmatprep.subr.bf16.mxu0 0
  %2546 = vmatpush1.bf16.msra.mxu0 0
  %2547 = vmatprep.subr.bf16.mxu0 0
  %2548 = vmatpush1.bf16.msra.mxu0 0
  %2549 = vmatprep.subr.bf16.mxu0 0
  %2550 = vmatpush1.bf16.msra.mxu0 0
  %2551 = vmatprep.subr.bf16.mxu0 0
  %2552 = vmatpush1.bf16.msra.mxu0 0
  %2553 = vmatprep.mubr.bf16.mxu0 0
  %2554 = vmatmul.mubr.bf16.gmra.mrb[0].mxu0 %v2513
  %v2555 = vpop.f32.mrb[0].mxu0
  %v2556 = vadd.f32 %v2498, %v2555
  %v2557 = vpop.f32.mrb[0].mxu0
  %v2558 = vpop.f32.mrb[0].mxu0
  %v2559 = vadd.f32 %v2501, %v2558
  %v2560 = vpop.f32.mrb[0].mxu0
  %2561 = vmatprep.mubr.bf16.mxu0 0
  %2562 = vmatmul.mubr.bf16.gmra.mrb[0].mxu0 %v2516
  %v2563 = vpop.f32.mrb[0].mxu0
  %v2564 = vadd.f32 %v2506, %v2563
  %v2565 = vpop.f32.mrb[0].mxu0
  %v2566 = vpop.f32.mrb[0].mxu0
  %v2567 = vadd.f32 %v2509, %v2566
  %v2568 = vpop.f32.mrb[0].mxu0
  %2569 = vdwg.mxu0
  %v2570 = vld [vmem:[%s3 + $0x30] sm:$0x1]
  %v2571 = vlaneseq
  %v2572 = vshrl.u32 %v2571, 7
  %v2573 = vsub.s32 0, %v2572
  %v2574 = vrot.slane %v2570, %v2573
  %v2575 = vadd.f32 %v2556, %v2574
  %v2576 = vadd.f32 %v2559, %v2574
  %v2577 = vadd.f32 %v2564, %v2574
  %v2578 = vadd.f32 %v2567, %v2574
  %v2579 = vxor.u32 %v2575, 2147483648
  %v2580 = vxor.u32 %v2576, 2147483648
  %v2581 = vxor.u32 %v2577, 2147483648
  %v2582 = vxor.u32 %v2578, 2147483648
  %v2583 = vmul.f32 %v2579, 1.442695
  %v2584 = vpow.pop %v2583
  %v2585 = vmul.f32 %v2580, 1.442695
  %v2586 = vpow.pop %v2585
  %v2587 = vmul.f32 %v2581, 1.442695
  %v2588 = vpow.pop %v2587
  %v2589 = vmul.f32 %v2582, 1.442695
  %v2590 = vpow.pop %v2589
  %v2591 = vadd.f32 %v2584, 1.0
  %v2592 = vadd.f32 %v2586, 1.0
  %v2593 = vadd.f32 %v2588, 1.0
  %v2594 = vadd.f32 %v2590, 1.0
  %v2595 = vrcp.pop %v2591
  %v2596 = vmul.f32 1.0, %v2595
  %v2597 = vrcp.pop %v2592
  %v2598 = vmul.f32 1.0, %v2597
  %v2599 = vrcp.pop %v2593
  %v2600 = vmul.f32 1.0, %v2599
  %v2601 = vrcp.pop %v2594
  %v2602 = vmul.f32 1.0, %v2601
  %v2603 = vmul.f32 %v2575, %v2596
  %v2604 = vmul.f32 %v2576, %v2598
  %v2605 = vmul.f32 %v2577, %v2600
  %v2606 = vmul.f32 %v2578, %v2602
  %v2607 = vld [vmem:[%s1 + $0x168] sm:$0xff]
  %v2608 = vld [vmem:[%s1 + $0x170] sm:$0xf]
  %v2609 = vld [vmem:[%s1 + $0x174] sm:$0xff]
  %v2610 = vld [vmem:[%s1 + $0x17c] sm:$0xf]
  %v2611 = vpack.c.bf16 %v2604, %v2603
  %v2612 = vpack.c.bf16 %v2606, %v2605
  %v2617 = vunpack.c.l.b16 %v2607
  %v2618 = vunpack.c.h.b16 %v2607
  %v2619 = vunpack.c.l.b16 %v2608
  %v2620 = vunpack.c.l.b16 %v2609
  %v2621 = vunpack.c.h.b16 %v2609
  %v2622 = vunpack.c.l.b16 %v2610
  %v2623 = vpack.c.b16 %v2620, %v2617
  %v2624 = vpack.c.b16 %v2621, %v2618
  %v2625 = vpack.c.b16 %v2622, %v2619
  %v2630 = vsel %vm1376, %v2611, 0
  %v2633 = vsel %vm1376, %v2612, 0
  %2635 = vmatprep.subr.bf16.mxu0 %v2624
  %2636 = vmatpush1.bf16.msra.mxu0 %v2623
  %2637 = vmatprep.subr.bf16.mxu0 0
  %2638 = vmatpush1.bf16.msra.mxu0 0
  %2639 = vmatprep.subr.bf16.mxu0 0
  %2640 = vmatpush1.bf16.msra.mxu0 0
  %2641 = vmatprep.subr.bf16.mxu0 0
  %2642 = vmatpush1.bf16.msra.mxu0 0
  %2643 = vmatprep.subr.bf16.mxu0 0
  %2644 = vmatpush1.bf16.msra.mxu0 0
  %2645 = vmatprep.subr.bf16.mxu0 0
  %2646 = vmatpush1.bf16.msra.mxu0 0
  %2647 = vmatprep.subr.bf16.mxu0 0
  %2648 = vmatpush1.bf16.msra.mxu0 0
  %2649 = vmatprep.subr.bf16.mxu0 0
  %2650 = vmatpush1.bf16.msra.mxu0 0
  %2651 = vmatprep.subr.bf16.mxu0 0
  %2652 = vmatpush1.bf16.msra.mxu0 0
  %2653 = vmatprep.subr.bf16.mxu0 0
  %2654 = vmatpush1.bf16.msra.mxu0 0
  %2655 = vmatprep.subr.bf16.mxu0 0
  %2656 = vmatpush1.bf16.msra.mxu0 0
  %2657 = vmatprep.subr.bf16.mxu0 0
  %2658 = vmatpush1.bf16.msra.mxu0 0
  %2659 = vmatprep.subr.bf16.mxu0 0
  %2660 = vmatpush1.bf16.msra.mxu0 0
  %2661 = vmatprep.subr.bf16.mxu0 0
  %2662 = vmatpush1.bf16.msra.mxu0 0
  %2663 = vmatprep.subr.bf16.mxu0 0
  %2664 = vmatpush1.bf16.msra.mxu0 0
  %2665 = vmatprep.subr.bf16.mxu0 0
  %2666 = vmatpush1.bf16.msra.mxu0 0
  %2667 = vmatprep.mubr.bf16.mxu0 0
  %2668 = vmatmul.mubr.bf16.gmra.mrb[0].mxu0 %v2630
  %v2669 = vpop.f32.mrb[0].mxu0
  %v2670 = vadd.f32 0.0, %v2669
  %v2671 = vpop.f32.mrb[0].mxu0
  %v2672 = vadd.f32 0.0, %v2671
  %v2673 = vpop.f32.mrb[0].mxu0
  %v2674 = vadd.f32 0.0, %v2673
  %v2675 = vpop.f32.mrb[0].mxu0
  %v2676 = vadd.f32 0.0, %v2675
  %2677 = vmatprep.mubr.bf16.mxu0 0
  %2678 = vmatmul.mubr.bf16.gmra.mrb[0].mxu0 %v2633
  %v2679 = vpop.f32.mrb[0].mxu0
  %v2680 = vadd.f32 0.0, %v2679
  %v2681 = vpop.f32.mrb[0].mxu0
  %v2682 = vadd.f32 0.0, %v2681
  %v2683 = vpop.f32.mrb[0].mxu0
  %v2684 = vadd.f32 0.0, %v2683
  %v2685 = vpop.f32.mrb[0].mxu0
  %v2686 = vadd.f32 0.0, %v2685
  %2687 = vdwg.mxu0
  %2688 = vmatprep.subr.bf16.mxu0 0
  %2689 = vmatpush1.bf16.msra.mxu0 %v2625
  %2690 = vmatprep.subr.bf16.mxu0 0
  %2691 = vmatpush1.bf16.msra.mxu0 0
  %2692 = vmatprep.subr.bf16.mxu0 0
  %2693 = vmatpush1.bf16.msra.mxu0 0
  %2694 = vmatprep.subr.bf16.mxu0 0
  %2695 = vmatpush1.bf16.msra.mxu0 0
  %2696 = vmatprep.subr.bf16.mxu0 0
  %2697 = vmatpush1.bf16.msra.mxu0 0
  %2698 = vmatprep.subr.bf16.mxu0 0
  %2699 = vmatpush1.bf16.msra.mxu0 0
  %2700 = vmatprep.subr.bf16.mxu0 0
  %2701 = vmatpush1.bf16.msra.mxu0 0
  %2702 = vmatprep.subr.bf16.mxu0 0
  %2703 = vmatpush1.bf16.msra.mxu0 0
  %2704 = vmatprep.subr.bf16.mxu0 0
  %2705 = vmatpush1.bf16.msra.mxu0 0
  %2706 = vmatprep.subr.bf16.mxu0 0
  %2707 = vmatpush1.bf16.msra.mxu0 0
  %2708 = vmatprep.subr.bf16.mxu0 0
  %2709 = vmatpush1.bf16.msra.mxu0 0
  %2710 = vmatprep.subr.bf16.mxu0 0
  %2711 = vmatpush1.bf16.msra.mxu0 0
  %2712 = vmatprep.subr.bf16.mxu0 0
  %2713 = vmatpush1.bf16.msra.mxu0 0
  %2714 = vmatprep.subr.bf16.mxu0 0
  %2715 = vmatpush1.bf16.msra.mxu0 0
  %2716 = vmatprep.subr.bf16.mxu0 0
  %2717 = vmatpush1.bf16.msra.mxu0 0
  %2718 = vmatprep.subr.bf16.mxu0 0
  %2719 = vmatpush1.bf16.msra.mxu0 0
  %2720 = vmatprep.mubr.bf16.mxu0 0
  %2721 = vmatmul.mubr.bf16.gmra.mrb[0].mxu0 %v2630
  %v2722 = vpop.f32.mrb[0].mxu0
  %v2723 = vadd.f32 0.0, %v2722
  %v2724 = vpop.f32.mrb[0].mxu0
  %v2725 = vpop.f32.mrb[0].mxu0
  %v2726 = vadd.f32 0.0, %v2725
  %v2727 = vpop.f32.mrb[0].mxu0
  %2728 = vmatprep.mubr.bf16.mxu0 0
  %2729 = vmatmul.mubr.bf16.gmra.mrb[0].mxu0 %v2633
  %v2730 = vpop.f32.mrb[0].mxu0
  %v2731 = vadd.f32 0.0, %v2730
  %v2732 = vpop.f32.mrb[0].mxu0
  %v2733 = vpop.f32.mrb[0].mxu0
  %v2734 = vadd.f32 0.0, %v2733
  %v2735 = vpop.f32.mrb[0].mxu0
  %2736 = vdwg.mxu0
  %v2737 = vld [vmem:[%s2 + $0x120] sm:$0xf]
  %v2738 = vpack.c.bf16 %v2674, %v2670
  %v2739 = vpack.c.bf16 %v2684, %v2680
  %v2740 = vld [vmem:[%s2 + $0x128] sm:$0xf]
  %2743 = vrot.lane.b32.xlu0 %v2738, 96
  %v2744 = vpop.permute.xlu0 %2743
  %2745 = vrot.lane.b32.xlu0 %v2739, 96
  %v2746 = vpop.permute.xlu0 %2745
  %v2750 = vsel %vm1643, %v2740, 0
  %2752 = vmatprep.subr.bf16.mxu0 0
  %2753 = vmatpush1.bf16.msra.mxu0 %v2744
  %2754 = vmatprep.subr.bf16.mxu0 0
  %2755 = vmatpush1.bf16.msra.mxu0 %v2746
  %2756 = vmatprep.subr.bf16.mxu0 0
  %2757 = vmatpush1.bf16.msra.mxu0 0
  %2758 = vmatprep.subr.bf16.mxu0 0
  %2759 = vmatpush1.bf16.msra.mxu0 0
  %2760 = vmatprep.subr.bf16.mxu0 0
  %2761 = vmatpush1.bf16.msra.mxu0 0
  %2762 = vmatprep.subr.bf16.mxu0 0
  %2763 = vmatpush1.bf16.msra.mxu0 0
  %2764 = vmatprep.subr.bf16.mxu0 0
  %2765 = vmatpush1.bf16.msra.mxu0 0
  %2766 = vmatprep.subr.bf16.mxu0 0
  %2767 = vmatpush1.bf16.msra.mxu0 0
  %2768 = vmatprep.subr.bf16.mxu0 0
  %2769 = vmatpush1.bf16.msra.mxu0 0
  %2770 = vmatprep.subr.bf16.mxu0 0
  %2771 = vmatpush1.bf16.msra.mxu0 0
  %2772 = vmatprep.subr.bf16.mxu0 0
  %2773 = vmatpush1.bf16.msra.mxu0 0
  %2774 = vmatprep.subr.bf16.mxu0 0
  %2775 = vmatpush1.bf16.msra.mxu0 0
  %2776 = vmatprep.subr.bf16.mxu0 0
  %2777 = vmatpush1.bf16.msra.mxu0 0
  %2778 = vmatprep.subr.bf16.mxu0 0
  %2779 = vmatpush1.bf16.msra.mxu0 0
  %2780 = vmatprep.subr.bf16.mxu0 0
  %2781 = vmatpush1.bf16.msra.mxu0 0
  %2782 = vmatprep.subr.bf16.mxu0 0
  %2783 = vmatpush1.bf16.msra.mxu0 0
  %2784 = vmatprep.mubr.bf16.mxu0 0
  %2785 = vmatmul.mubr.bf16.gmra.mrb[0].mxu0 %v2750
  %v2786 = vpop.f32.mrb[0].mxu0
  %v2787 = vadd.f32 0.0, %v2786
  %v2788 = vpop.f32.mrb[0].mxu0
  %v2789 = vpop.f32.mrb[0].mxu0
  %v2790 = vpop.f32.mrb[0].mxu0
  %2791 = vdwg.mxu0
  %v2793 = vsel %vm1643, %v2737, 0
  %2795 = vmatprep.subr.bf16.mxu0 0
  %2796 = vmatpush1.bf16.msra.mxu0 %v2738
  %2797 = vmatprep.subr.bf16.mxu0 0
  %2798 = vmatpush1.bf16.msra.mxu0 %v2739
  %2799 = vmatprep.subr.bf16.mxu0 0
  %2800 = vmatpush1.bf16.msra.mxu0 0
  %2801 = vmatprep.subr.bf16.mxu0 0
  %2802 = vmatpush1.bf16.msra.mxu0 0
  %2803 = vmatprep.subr.bf16.mxu0 0
  %2804 = vmatpush1.bf16.msra.mxu0 0
  %2805 = vmatprep.subr.bf16.mxu0 0
  %2806 = vmatpush1.bf16.msra.mxu0 0
  %2807 = vmatprep.subr.bf16.mxu0 0
  %2808 = vmatpush1.bf16.msra.mxu0 0
  %2809 = vmatprep.subr.bf16.mxu0 0
  %2810 = vmatpush1.bf16.msra.mxu0 0
  %2811 = vmatprep.subr.bf16.mxu0 0
  %2812 = vmatpush1.bf16.msra.mxu0 0
  %2813 = vmatprep.subr.bf16.mxu0 0
  %2814 = vmatpush1.bf16.msra.mxu0 0
  %2815 = vmatprep.subr.bf16.mxu0 0
  %2816 = vmatpush1.bf16.msra.mxu0 0
  %2817 = vmatprep.subr.bf16.mxu0 0
  %2818 = vmatpush1.bf16.msra.mxu0 0
  %2819 = vmatprep.subr.bf16.mxu0 0
  %2820 = vmatpush1.bf16.msra.mxu0 0
  %2821 = vmatprep.subr.bf16.mxu0 0
  %2822 = vmatpush1.bf16.msra.mxu0 0
  %2823 = vmatprep.subr.bf16.mxu0 0
  %2824 = vmatpush1.bf16.msra.mxu0 0
  %2825 = vmatprep.subr.bf16.mxu0 0
  %2826 = vmatpush1.bf16.msra.mxu0 0
  %2827 = vmatprep.mubr.bf16.mxu0 0
  %2828 = vmatmul.mubr.bf16.gmra.mrb[0].mxu0 %v2793
  %v2829 = vpop.f32.mrb[0].mxu0
  %v2830 = vadd.f32 %v2787, %v2829
  %v2831 = vpop.f32.mrb[0].mxu0
  %v2832 = vpop.f32.mrb[0].mxu0
  %v2833 = vpop.f32.mrb[0].mxu0
  %2834 = vdwg.mxu0
  %v2835 = vld [vmem:[%s2 + $0x130] sm:$0xf]
  %2836 = vrot.lane.b32.xlu0 %v2738, 64
  %v2837 = vpop.permute.xlu0 %2836
  %2838 = vrot.lane.b32.xlu0 %v2739, 64
  %v2839 = vpop.permute.xlu0 %2838
  %v2843 = vsel %vm1643, %v2835, 0
  %2845 = vmatprep.subr.bf16.mxu0 0
  %2846 = vmatpush1.bf16.msra.mxu0 %v2837
  %2847 = vmatprep.subr.bf16.mxu0 0
  %2848 = vmatpush1.bf16.msra.mxu0 %v2839
  %2849 = vmatprep.subr.bf16.mxu0 0
  %2850 = vmatpush1.bf16.msra.mxu0 0
  %2851 = vmatprep.subr.bf16.mxu0 0
  %2852 = vmatpush1.bf16.msra.mxu0 0
  %2853 = vmatprep.subr.bf16.mxu0 0
  %2854 = vmatpush1.bf16.msra.mxu0 0
  %2855 = vmatprep.subr.bf16.mxu0 0
  %2856 = vmatpush1.bf16.msra.mxu0 0
  %2857 = vmatprep.subr.bf16.mxu0 0
  %2858 = vmatpush1.bf16.msra.mxu0 0
  %2859 = vmatprep.subr.bf16.mxu0 0
  %2860 = vmatpush1.bf16.msra.mxu0 0
  %2861 = vmatprep.subr.bf16.mxu0 0
  %2862 = vmatpush1.bf16.msra.mxu0 0
  %2863 = vmatprep.subr.bf16.mxu0 0
  %2864 = vmatpush1.bf16.msra.mxu0 0
  %2865 = vmatprep.subr.bf16.mxu0 0
  %2866 = vmatpush1.bf16.msra.mxu0 0
  %2867 = vmatprep.subr.bf16.mxu0 0
  %2868 = vmatpush1.bf16.msra.mxu0 0
  %2869 = vmatprep.subr.bf16.mxu0 0
  %2870 = vmatpush1.bf16.msra.mxu0 0
  %2871 = vmatprep.subr.bf16.mxu0 0
  %2872 = vmatpush1.bf16.msra.mxu0 0
  %2873 = vmatprep.subr.bf16.mxu0 0
  %2874 = vmatpush1.bf16.msra.mxu0 0
  %2875 = vmatprep.subr.bf16.mxu0 0
  %2876 = vmatpush1.bf16.msra.mxu0 0
  %2877 = vmatprep.mubr.bf16.mxu0 0
  %2878 = vmatmul.mubr.bf16.gmra.mrb[0].mxu0 %v2843
  %v2879 = vpop.f32.mrb[0].mxu0
  %v2880 = vadd.f32 0.0, %v2879
  %v2881 = vpop.f32.mrb[0].mxu0
  %v2882 = vpop.f32.mrb[0].mxu0
  %v2883 = vpop.f32.mrb[0].mxu0
  %2884 = vdwg.mxu0
  %v2885 = vadd.f32 %v2830, %v2880
  %v2886 = vld [vmem:[%s2 + $0x138] sm:$0xf]
  %2887 = vrot.lane.b32.xlu0 %v2738, 32
  %v2888 = vpop.permute.xlu0 %2887
  %2889 = vrot.lane.b32.xlu0 %v2739, 32
  %v2890 = vpop.permute.xlu0 %2889
  %v2894 = vsel %vm1643, %v2886, 0
  %2896 = vmatprep.subr.bf16.mxu0 0
  %2897 = vmatpush1.bf16.msra.mxu0 %v2888
  %2898 = vmatprep.subr.bf16.mxu0 0
  %2899 = vmatpush1.bf16.msra.mxu0 %v2890
  %2900 = vmatprep.subr.bf16.mxu0 0
  %2901 = vmatpush1.bf16.msra.mxu0 0
  %2902 = vmatprep.subr.bf16.mxu0 0
  %2903 = vmatpush1.bf16.msra.mxu0 0
  %2904 = vmatprep.subr.bf16.mxu0 0
  %2905 = vmatpush1.bf16.msra.mxu0 0
  %2906 = vmatprep.subr.bf16.mxu0 0
  %2907 = vmatpush1.bf16.msra.mxu0 0
  %2908 = vmatprep.subr.bf16.mxu0 0
  %2909 = vmatpush1.bf16.msra.mxu0 0
  %2910 = vmatprep.subr.bf16.mxu0 0
  %2911 = vmatpush1.bf16.msra.mxu0 0
  %2912 = vmatprep.subr.bf16.mxu0 0
  %2913 = vmatpush1.bf16.msra.mxu0 0
  %2914 = vmatprep.subr.bf16.mxu0 0
  %2915 = vmatpush1.bf16.msra.mxu0 0
  %2916 = vmatprep.subr.bf16.mxu0 0
  %2917 = vmatpush1.bf16.msra.mxu0 0
  %2918 = vmatprep.subr.bf16.mxu0 0
  %2919 = vmatpush1.bf16.msra.mxu0 0
  %2920 = vmatprep.subr.bf16.mxu0 0
  %2921 = vmatpush1.bf16.msra.mxu0 0
  %2922 = vmatprep.subr.bf16.mxu0 0
  %2923 = vmatpush1.bf16.msra.mxu0 0
  %2924 = vmatprep.subr.bf16.mxu0 0
  %2925 = vmatpush1.bf16.msra.mxu0 0
  %2926 = vmatprep.subr.bf16.mxu0 0
  %2927 = vmatpush1.bf16.msra.mxu0 0
  %2928 = vmatprep.mubr.bf16.mxu0 0
  %2929 = vmatmul.mubr.bf16.gmra.mrb[0].mxu0 %v2894
  %v2930 = vpop.f32.mrb[0].mxu0
  %v2931 = vadd.f32 0.0, %v2930
  %v2932 = vpop.f32.mrb[0].mxu0
  %v2933 = vpop.f32.mrb[0].mxu0
  %v2934 = vpop.f32.mrb[0].mxu0
  %2935 = vdwg.mxu0
  %v2936 = vadd.f32 %v2885, %v2931
  %v2937 = vld [vmem:[%s2 + $0x140] sm:$0xf]
  %v2938 = vpack.c.bf16 %v2676, %v2672
  %v2939 = vpack.c.bf16 %v2686, %v2682
  %v2941 = vsel %vm1643, %v2937, 0
  %2943 = vmatprep.subr.bf16.mxu0 0
  %2944 = vmatpush1.bf16.msra.mxu0 %v2938
  %2945 = vmatprep.subr.bf16.mxu0 0
  %2946 = vmatpush1.bf16.msra.mxu0 %v2939
  %2947 = vmatprep.subr.bf16.mxu0 0
  %2948 = vmatpush1.bf16.msra.mxu0 0
  %2949 = vmatprep.subr.bf16.mxu0 0
  %2950 = vmatpush1.bf16.msra.mxu0 0
  %2951 = vmatprep.subr.bf16.mxu0 0
  %2952 = vmatpush1.bf16.msra.mxu0 0
  %2953 = vmatprep.subr.bf16.mxu0 0
  %2954 = vmatpush1.bf16.msra.mxu0 0
  %2955 = vmatprep.subr.bf16.mxu0 0
  %2956 = vmatpush1.bf16.msra.mxu0 0
  %2957 = vmatprep.subr.bf16.mxu0 0
  %2958 = vmatpush1.bf16.msra.mxu0 0
  %2959 = vmatprep.subr.bf16.mxu0 0
  %2960 = vmatpush1.bf16.msra.mxu0 0
  %2961 = vmatprep.subr.bf16.mxu0 0
  %2962 = vmatpush1.bf16.msra.mxu0 0
  %2963 = vmatprep.subr.bf16.mxu0 0
  %2964 = vmatpush1.bf16.msra.mxu0 0
  %2965 = vmatprep.subr.bf16.mxu0 0
  %2966 = vmatpush1.bf16.msra.mxu0 0
  %2967 = vmatprep.subr.bf16.mxu0 0
  %2968 = vmatpush1.bf16.msra.mxu0 0
  %2969 = vmatprep.subr.bf16.mxu0 0
  %2970 = vmatpush1.bf16.msra.mxu0 0
  %2971 = vmatprep.subr.bf16.mxu0 0
  %2972 = vmatpush1.bf16.msra.mxu0 0
  %2973 = vmatprep.subr.bf16.mxu0 0
  %2974 = vmatpush1.bf16.msra.mxu0 0
  %2975 = vmatprep.mubr.bf16.mxu0 0
  %2976 = vmatmul.mubr.bf16.gmra.mrb[0].mxu0 %v2941
  %v2977 = vpop.f32.mrb[0].mxu0
  %v2978 = vadd.f32 0.0, %v2977
  %v2979 = vpop.f32.mrb[0].mxu0
  %v2980 = vpop.f32.mrb[0].mxu0
  %v2981 = vpop.f32.mrb[0].mxu0
  %2982 = vdwg.mxu0
  %v2983 = vadd.f32 %v2936, %v2978
  %v2984 = vld [vmem:[%s2 + $0x148] sm:$0xf]
  %2987 = vrot.lane.b32.xlu0 %v2938, 96
  %v2988 = vpop.permute.xlu0 %2987
  %2989 = vrot.lane.b32.xlu0 %v2939, 96
  %v2990 = vpop.permute.xlu0 %2989
  %v2994 = vsel %vm1643, %v2984, 0
  %2996 = vmatprep.subr.bf16.mxu0 0
  %2997 = vmatpush1.bf16.msra.mxu0 %v2988
  %2998 = vmatprep.subr.bf16.mxu0 0
  %2999 = vmatpush1.bf16.msra.mxu0 %v2990
  %3000 = vmatprep.subr.bf16.mxu0 0
  %3001 = vmatpush1.bf16.msra.mxu0 0
  %3002 = vmatprep.subr.bf16.mxu0 0
  %3003 = vmatpush1.bf16.msra.mxu0 0
  %3004 = vmatprep.subr.bf16.mxu0 0
  %3005 = vmatpush1.bf16.msra.mxu0 0
  %3006 = vmatprep.subr.bf16.mxu0 0
  %3007 = vmatpush1.bf16.msra.mxu0 0
  %3008 = vmatprep.subr.bf16.mxu0 0
  %3009 = vmatpush1.bf16.msra.mxu0 0
  %3010 = vmatprep.subr.bf16.mxu0 0
  %3011 = vmatpush1.bf16.msra.mxu0 0
  %3012 = vmatprep.subr.bf16.mxu0 0
  %3013 = vmatpush1.bf16.msra.mxu0 0
  %3014 = vmatprep.subr.bf16.mxu0 0
  %3015 = vmatpush1.bf16.msra.mxu0 0
  %3016 = vmatprep.subr.bf16.mxu0 0
  %3017 = vmatpush1.bf16.msra.mxu0 0
  %3018 = vmatprep.subr.bf16.mxu0 0
  %3019 = vmatpush1.bf16.msra.mxu0 0
  %3020 = vmatprep.subr.bf16.mxu0 0
  %3021 = vmatpush1.bf16.msra.mxu0 0
  %3022 = vmatprep.subr.bf16.mxu0 0
  %3023 = vmatpush1.bf16.msra.mxu0 0
  %3024 = vmatprep.subr.bf16.mxu0 0
  %3025 = vmatpush1.bf16.msra.mxu0 0
  %3026 = vmatprep.subr.bf16.mxu0 0
  %3027 = vmatpush1.bf16.msra.mxu0 0
  %3028 = vmatprep.mubr.bf16.mxu0 0
  %3029 = vmatmul.mubr.bf16.gmra.mrb[0].mxu0 %v2994
  %v3030 = vpop.f32.mrb[0].mxu0
  %v3031 = vadd.f32 0.0, %v3030
  %v3032 = vpop.f32.mrb[0].mxu0
  %v3033 = vpop.f32.mrb[0].mxu0
  %v3034 = vpop.f32.mrb[0].mxu0
  %3035 = vdwg.mxu0
  %v3036 = vadd.f32 %v2983, %v3031
  %v3037 = vld [vmem:[%s2 + $0x150] sm:$0xf]
  %3038 = vrot.lane.b32.xlu0 %v2938, 64
  %v3039 = vpop.permute.xlu0 %3038
  %3040 = vrot.lane.b32.xlu0 %v2939, 64
  %v3041 = vpop.permute.xlu0 %3040
  %v3045 = vsel %vm1643, %v3037, 0
  %3047 = vmatprep.subr.bf16.mxu0 0
  %3048 = vmatpush1.bf16.msra.mxu0 %v3039
  %3049 = vmatprep.subr.bf16.mxu0 0
  %3050 = vmatpush1.bf16.msra.mxu0 %v3041
  %3051 = vmatprep.subr.bf16.mxu0 0
  %3052 = vmatpush1.bf16.msra.mxu0 0
  %3053 = vmatprep.subr.bf16.mxu0 0
  %3054 = vmatpush1.bf16.msra.mxu0 0
  %3055 = vmatprep.subr.bf16.mxu0 0
  %3056 = vmatpush1.bf16.msra.mxu0 0
  %3057 = vmatprep.subr.bf16.mxu0 0
  %3058 = vmatpush1.bf16.msra.mxu0 0
  %3059 = vmatprep.subr.bf16.mxu0 0
  %3060 = vmatpush1.bf16.msra.mxu0 0
  %3061 = vmatprep.subr.bf16.mxu0 0
  %3062 = vmatpush1.bf16.msra.mxu0 0
  %3063 = vmatprep.subr.bf16.mxu0 0
  %3064 = vmatpush1.bf16.msra.mxu0 0
  %3065 = vmatprep.subr.bf16.mxu0 0
  %3066 = vmatpush1.bf16.msra.mxu0 0
  %3067 = vmatprep.subr.bf16.mxu0 0
  %3068 = vmatpush1.bf16.msra.mxu0 0
  %3069 = vmatprep.subr.bf16.mxu0 0
  %3070 = vmatpush1.bf16.msra.mxu0 0
  %3071 = vmatprep.subr.bf16.mxu0 0
  %3072 = vmatpush1.bf16.msra.mxu0 0
  %3073 = vmatprep.subr.bf16.mxu0 0
  %3074 = vmatpush1.bf16.msra.mxu0 0
  %3075 = vmatprep.subr.bf16.mxu0 0
  %3076 = vmatpush1.bf16.msra.mxu0 0
  %3077 = vmatprep.subr.bf16.mxu0 0
  %3078 = vmatpush1.bf16.msra.mxu0 0
  %3079 = vmatprep.mubr.bf16.mxu0 0
  %3080 = vmatmul.mubr.bf16.gmra.mrb[0].mxu0 %v3045
  %v3081 = vpop.f32.mrb[0].mxu0
  %v3082 = vadd.f32 0.0, %v3081
  %v3083 = vpop.f32.mrb[0].mxu0
  %v3084 = vpop.f32.mrb[0].mxu0
  %v3085 = vpop.f32.mrb[0].mxu0
  %3086 = vdwg.mxu0
  %v3087 = vadd.f32 %v3036, %v3082
  %v3088 = vld [vmem:[%s2 + $0x158] sm:$0xf]
  %3089 = vrot.lane.b32.xlu0 %v2938, 32
  %v3090 = vpop.permute.xlu0 %3089
  %3091 = vrot.lane.b32.xlu0 %v2939, 32
  %v3092 = vpop.permute.xlu0 %3091
  %v3096 = vsel %vm1643, %v3088, 0
  %3098 = vmatprep.subr.bf16.mxu0 0
  %3099 = vmatpush1.bf16.msra.mxu0 %v3090
  %3100 = vmatprep.subr.bf16.mxu0 0
  %3101 = vmatpush1.bf16.msra.mxu0 %v3092
  %3102 = vmatprep.subr.bf16.mxu0 0
  %3103 = vmatpush1.bf16.msra.mxu0 0
  %3104 = vmatprep.subr.bf16.mxu0 0
  %3105 = vmatpush1.bf16.msra.mxu0 0
  %3106 = vmatprep.subr.bf16.mxu0 0
  %3107 = vmatpush1.bf16.msra.mxu0 0
  %3108 = vmatprep.subr.bf16.mxu0 0
  %3109 = vmatpush1.bf16.msra.mxu0 0
  %3110 = vmatprep.subr.bf16.mxu0 0
  %3111 = vmatpush1.bf16.msra.mxu0 0
  %3112 = vmatprep.subr.bf16.mxu0 0
  %3113 = vmatpush1.bf16.msra.mxu0 0
  %3114 = vmatprep.subr.bf16.mxu0 0
  %3115 = vmatpush1.bf16.msra.mxu0 0
  %3116 = vmatprep.subr.bf16.mxu0 0
  %3117 = vmatpush1.bf16.msra.mxu0 0
  %3118 = vmatprep.subr.bf16.mxu0 0
  %3119 = vmatpush1.bf16.msra.mxu0 0
  %3120 = vmatprep.subr.bf16.mxu0 0
  %3121 = vmatpush1.bf16.msra.mxu0 0
  %3122 = vmatprep.subr.bf16.mxu0 0
  %3123 = vmatpush1.bf16.msra.mxu0 0
  %3124 = vmatprep.subr.bf16.mxu0 0
  %3125 = vmatpush1.bf16.msra.mxu0 0
  %3126 = vmatprep.subr.bf16.mxu0 0
  %3127 = vmatpush1.bf16.msra.mxu0 0
  %3128 = vmatprep.subr.bf16.mxu0 0
  %3129 = vmatpush1.bf16.msra.mxu0 0
  %3130 = vmatprep.mubr.bf16.mxu0 0
  %3131 = vmatmul.mubr.bf16.gmra.mrb[0].mxu0 %v3096
  %v3132 = vpop.f32.mrb[0].mxu0
  %v3133 = vadd.f32 0.0, %v3132
  %v3134 = vpop.f32.mrb[0].mxu0
  %v3135 = vpop.f32.mrb[0].mxu0
  %v3136 = vpop.f32.mrb[0].mxu0
  %3137 = vdwg.mxu0
  %v3138 = vadd.f32 %v3087, %v3133
  %v3139 = vld [vmem:[%s2 + $0x160] sm:$0xf]
  %v3140 = vpack.c.bf16 %v2726, %v2723
  %v3141 = vpack.c.bf16 %v2734, %v2731
  %v3143 = vsel %vm1643, %v3139, 0
  %3145 = vmatprep.subr.bf16.mxu0 0
  %3146 = vmatpush1.bf16.msra.mxu0 %v3140
  %3147 = vmatprep.subr.bf16.mxu0 0
  %3148 = vmatpush1.bf16.msra.mxu0 %v3141
  %3149 = vmatprep.subr.bf16.mxu0 0
  %3150 = vmatpush1.bf16.msra.mxu0 0
  %3151 = vmatprep.subr.bf16.mxu0 0
  %3152 = vmatpush1.bf16.msra.mxu0 0
  %3153 = vmatprep.subr.bf16.mxu0 0
  %3154 = vmatpush1.bf16.msra.mxu0 0
  %3155 = vmatprep.subr.bf16.mxu0 0
  %3156 = vmatpush1.bf16.msra.mxu0 0
  %3157 = vmatprep.subr.bf16.mxu0 0
  %3158 = vmatpush1.bf16.msra.mxu0 0
  %3159 = vmatprep.subr.bf16.mxu0 0
  %3160 = vmatpush1.bf16.msra.mxu0 0
  %3161 = vmatprep.subr.bf16.mxu0 0
  %3162 = vmatpush1.bf16.msra.mxu0 0
  %3163 = vmatprep.subr.bf16.mxu0 0
  %3164 = vmatpush1.bf16.msra.mxu0 0
  %3165 = vmatprep.subr.bf16.mxu0 0
  %3166 = vmatpush1.bf16.msra.mxu0 0
  %3167 = vmatprep.subr.bf16.mxu0 0
  %3168 = vmatpush1.bf16.msra.mxu0 0
  %3169 = vmatprep.subr.bf16.mxu0 0
  %3170 = vmatpush1.bf16.msra.mxu0 0
  %3171 = vmatprep.subr.bf16.mxu0 0
  %3172 = vmatpush1.bf16.msra.mxu0 0
  %3173 = vmatprep.subr.bf16.mxu0 0
  %3174 = vmatpush1.bf16.msra.mxu0 0
  %3175 = vmatprep.subr.bf16.mxu0 0
  %3176 = vmatpush1.bf16.msra.mxu0 0
  %3177 = vmatprep.mubr.bf16.mxu0 0
  %3178 = vmatmul.mubr.bf16.gmra.mrb[0].mxu0 %v3143
  %v3179 = vpop.f32.mrb[0].mxu0
  %v3180 = vadd.f32 0.0, %v3179
  %v3181 = vpop.f32.mrb[0].mxu0
  %v3182 = vpop.f32.mrb[0].mxu0
  %v3183 = vpop.f32.mrb[0].mxu0
  %3184 = vdwg.mxu0
  %v3185 = vadd.f32 %v3138, %v3180
  %v3186 = vld [vmem:[%s3 + $0x38] sm:$0x1]
  %v3187 = vlaneseq
  %v3188 = vshrl.u32 %v3187, 7
  %v3189 = vsub.s32 0, %v3188
  %v3190 = vrot.slane %v3186, %v3189
  %v3191 = vadd.f32 %v3185, %v3190
  %v3192 = vxor.u32 %v3191, 2147483648
  %v3193 = vmul.f32 %v3192, 1.442695
  %v3194 = vpow.pop %v3193
  %v3195 = vadd.f32 %v3194, 1.0
  %v3196 = vrcp.pop %v3195
  %v3197 = vmul.f32 1.0, %v3196
  %v3198 = vmul.f32 %v3191, %v3197
  %v3199 = vld [vmem:[%s1 + $0x180] sm:$0xf]
  %v3200 = vld [vmem:[%s1 + $0x18c] sm:$0xf]
  %v3201 = vld [vmem:[%s1 + $0x198] sm:$0xf]
  %v3202 = vld [vmem:[%s1 + $0x1a4] sm:$0xf]
  %v3203 = vpack.c.bf16 %v3198, %v3198
  %v3204 = vld [vmem:[%s3 + $0x40] sm:$0x1]
  %v3205 = vlaneseq
  %v3206 = vshrl.u32 %v3205, 7
  %v3207 = vsub.s32 0, %v3206
  %v3208 = vrot.slane %v3204, %v3207
  %v3213 = vunpack.c.l.b16 %v3199
  %v3214 = vunpack.c.l.b16 %v3200
  %v3215 = vunpack.c.l.b16 %v3201
  %v3216 = vunpack.c.l.b16 %v3202
  %v3217 = vpack.c.b16 %v3214, %v3213
  %v3218 = vpack.c.b16 %v3216, %v3215
  %v3222 = vsel %vm1643, %v3203, 0
  %3224 = vmatprep.subr.bf16.mxu0 0
  %3225 = vmatpush1.bf16.msra.mxu0 %v3217
  %3226 = vmatprep.subr.bf16.mxu0 0
  %3227 = vmatpush1.bf16.msra.mxu0 %v3218
  %3228 = vmatprep.subr.bf16.mxu0 0
  %3229 = vmatpush1.bf16.msra.mxu0 0
  %3230 = vmatprep.subr.bf16.mxu0 0
  %3231 = vmatpush1.bf16.msra.mxu0 0
  %3232 = vmatprep.subr.bf16.mxu0 0
  %3233 = vmatpush1.bf16.msra.mxu0 0
  %3234 = vmatprep.subr.bf16.mxu0 0
  %3235 = vmatpush1.bf16.msra.mxu0 0
  %3236 = vmatprep.subr.bf16.mxu0 0
  %3237 = vmatpush1.bf16.msra.mxu0 0
  %3238 = vmatprep.subr.bf16.mxu0 0
  %3239 = vmatpush1.bf16.msra.mxu0 0
  %3240 = vmatprep.subr.bf16.mxu0 0
  %3241 = vmatpush1.bf16.msra.mxu0 0
  %3242 = vmatprep.subr.bf16.mxu0 0
  %3243 = vmatpush1.bf16.msra.mxu0 0
  %3244 = vmatprep.subr.bf16.mxu0 0
  %3245 = vmatpush1.bf16.msra.mxu0 0
  %3246 = vmatprep.subr.bf16.mxu0 0
  %3247 = vmatpush1.bf16.msra.mxu0 0
  %3248 = vmatprep.subr.bf16.mxu0 0
  %3249 = vmatpush1.bf16.msra.mxu0 0
  %3250 = vmatprep.subr.bf16.mxu0 0
  %3251 = vmatpush1.bf16.msra.mxu0 0
  %3252 = vmatprep.subr.bf16.mxu0 0
  %3253 = vmatpush1.bf16.msra.mxu0 0
  %3254 = vmatprep.subr.bf16.mxu0 0
  %3255 = vmatpush1.bf16.msra.mxu0 0
  %3256 = vmatprep.mubr.bf16.mxu0 0
  %3257 = vmatmul.mubr.bf16.gmra.mrb[0].mxu0 %v3222
  %v3258 = vpop.f32.mrb[0].mxu0
  %v3259 = vadd.f32 %v3208, %v3258
  %v3260 = vpop.f32.mrb[0].mxu0
  %v3261 = vpop.f32.mrb[0].mxu0
  %v3262 = vpop.f32.mrb[0].mxu0
  %3263 = vdwg.mxu0
  %v3264 = vxor.u32 %v3259, 2147483648
  %v3265 = vmul.f32 %v3264, 1.442695
  %v3266 = vpow.pop %v3265
  %v3267 = vadd.f32 %v3266, 1.0
  %v3268 = vrcp.pop %v3267
  %v3269 = vmul.f32 1.0, %v3268
  %v3270 = vmul.f32 %v3259, %v3269
  %v3271 = vld [vmem:[%s3 + $0x80] sm:$0xff]
  %v3273 = vcombine.high %v3270, %v3270
  %v3275 = vunpack.c.l.s4 1966171168
  %v3276 = vunpack.c.0.s8 %v3275
  %v3277 = vlaneseq
  %v3278 = vshrl.u32 %v3277, 7
  %v3279 = vsub.s32 %v3276, %v3278
  %v3280 = vrot.slane %v3270, %v3279
  %v3282 = vunpack.c.l.s4 1966171168
  %v3283 = vunpack.c.0.s8 %v3282
  %v3284 = vlaneseq
  %v3285 = vshrl.u32 %v3284, 7
  %v3286 = vsub.s32 %v3283, %v3285
  %v3287 = vrot.slane %v3273, %v3286
  %v3288 = vcombine.high %v3280, %v3280
  %v3289 = vcombine.high %v3287, %v3287
  %v3291 = vunpack.c.l.s4 1966171168
  %v3292 = vunpack.c.0.s8 %v3291
  %v3293 = vlaneseq
  %v3294 = vshrl.u32 %v3293, 7
  %v3295 = vsub.s32 %v3292, %v3294
  %v3296 = vrot.slane %v3280, %v3295
  %v3298 = vunpack.c.l.s4 1966171168
  %v3299 = vunpack.c.0.s8 %v3298
  %v3300 = vlaneseq
  %v3301 = vshrl.u32 %v3300, 7
  %v3302 = vsub.s32 %v3299, %v3301
  %v3303 = vrot.slane %v3287, %v3302
  %v3305 = vunpack.c.l.s4 1966171168
  %v3306 = vunpack.c.0.s8 %v3305
  %v3307 = vlaneseq
  %v3308 = vshrl.u32 %v3307, 7
  %v3309 = vsub.s32 %v3306, %v3308
  %v3310 = vrot.slane %v3288, %v3309
  %v3312 = vunpack.c.l.s4 1966171168
  %v3313 = vunpack.c.0.s8 %v3312
  %v3314 = vlaneseq
  %v3315 = vshrl.u32 %v3314, 7
  %v3316 = vsub.s32 %v3313, %v3315
  %v3317 = vrot.slane %v3289, %v3316
  %v3318 = vcombine.high %v3296, %v3296
  %v3319 = vcombine.high %v3303, %v3303
  %v3320 = vcombine.high %v3310, %v3310
  %v3321 = vcombine.high %v3317, %v3317
  %v3322 = vlaneseq
  %v3323 = vshrl.u32 %v3322, 7
  %v3324 = vsub.s32 0, %v3323
  %v3325 = vrot.slane %v3271, %v3324
  %3327 = vbcast.lane.b32.xlu0 %v3325, 256
  %v3328 = vpop.permute.xlu0 %3327
  %v3329 = vlaneseq
  %v3330 = vshrl.u32 %v3329, 7
  %v3331 = vsub.s32 1, %v3330
  %v3332 = vrot.slane %v3271, %v3331
  %3334 = vbcast.lane.b32.xlu0 %v3332, 256
  %v3335 = vpop.permute.xlu0 %3334
  %v3336 = vlaneseq
  %v3337 = vshrl.u32 %v3336, 7
  %v3338 = vsub.s32 2, %v3337
  %v3339 = vrot.slane %v3271, %v3338
  %3341 = vbcast.lane.b32.xlu0 %v3339, 256
  %v3342 = vpop.permute.xlu0 %3341
  %v3343 = vlaneseq
  %v3344 = vshrl.u32 %v3343, 7
  %v3345 = vsub.s32 3, %v3344
  %v3346 = vrot.slane %v3271, %v3345
  %3348 = vbcast.lane.b32.xlu0 %v3346, 256
  %v3349 = vpop.permute.xlu0 %3348
  %v3350 = vlaneseq
  %v3351 = vshrl.u32 %v3350, 7
  %v3352 = vsub.s32 4, %v3351
  %v3353 = vrot.slane %v3271, %v3352
  %3355 = vbcast.lane.b32.xlu0 %v3353, 256
  %v3356 = vpop.permute.xlu0 %3355
  %v3357 = vlaneseq
  %v3358 = vshrl.u32 %v3357, 7
  %v3359 = vsub.s32 5, %v3358
  %v3360 = vrot.slane %v3271, %v3359
  %3362 = vbcast.lane.b32.xlu0 %v3360, 256
  %v3363 = vpop.permute.xlu0 %3362
  %v3364 = vlaneseq
  %v3365 = vshrl.u32 %v3364, 7
  %v3366 = vsub.s32 6, %v3365
  %v3367 = vrot.slane %v3271, %v3366
  %3369 = vbcast.lane.b32.xlu0 %v3367, 256
  %v3370 = vpop.permute.xlu0 %3369
  %v3371 = vlaneseq
  %v3372 = vshrl.u32 %v3371, 7
  %v3373 = vsub.s32 7, %v3372
  %v3374 = vrot.slane %v3271, %v3373
  %3376 = vbcast.lane.b32.xlu0 %v3374, 256
  %v3377 = vpop.permute.xlu0 %3376
  %v3378 = vlaneseq
  %v3379 = vshrl.u32 %v3378, 7
  %v3380 = vsub.s32 0, %v3379
  %v3381 = vrot.slane %v3296, %v3380
  %v3382 = vlaneseq
  %v3383 = vshrl.u32 %v3382, 7
  %v3384 = vsub.s32 0, %v3383
  %v3385 = vrot.slane %v3310, %v3384
  %v3386 = vlaneseq
  %v3387 = vshrl.u32 %v3386, 7
  %v3388 = vsub.s32 0, %v3387
  %v3389 = vrot.slane %v3318, %v3388
  %v3390 = vlaneseq
  %v3391 = vshrl.u32 %v3390, 7
  %v3392 = vsub.s32 0, %v3391
  %v3393 = vrot.slane %v3320, %v3392
  %v3394 = vlaneseq
  %v3395 = vshrl.u32 %v3394, 7
  %v3396 = vsub.s32 0, %v3395
  %v3397 = vrot.slane %v3303, %v3396
  %v3398 = vlaneseq
  %v3399 = vshrl.u32 %v3398, 7
  %v3400 = vsub.s32 0, %v3399
  %v3401 = vrot.slane %v3317, %v3400
  %v3402 = vlaneseq
  %v3403 = vshrl.u32 %v3402, 7
  %v3404 = vsub.s32 0, %v3403
  %v3405 = vrot.slane %v3319, %v3404
  %v3406 = vlaneseq
  %v3407 = vshrl.u32 %v3406, 7
  %v3408 = vsub.s32 0, %v3407
  %v3409 = vrot.slane %v3321, %v3408
  %v3418 = vadd.f32 %v3381, %v3328
  %v3419 = vadd.f32 %v3385, %v3335
  %v3420 = vadd.f32 %v3389, %v3342
  %v3421 = vadd.f32 %v3393, %v3349
  %v3422 = vadd.f32 %v3397, %v3356
  %v3423 = vadd.f32 %v3401, %v3363
  %v3424 = vadd.f32 %v3405, %v3370
  %v3425 = vadd.f32 %v3409, %v3377
  %v3426 = vsel %vm1376, %v3418, -inf
  %v3427 = vsel %vm1376, %v3419, -inf
  %v3428 = vsel %vm1376, %v3420, -inf
  %v3429 = vsel %vm1376, %v3421, -inf
  %v3430 = vsel %vm1376, %v3422, -inf
  %v3431 = vmax.f32 %v3426, %v3430
  %v3432 = vsel %vm1376, %v3423, -inf
  %v3433 = vmax.f32 %v3427, %v3432
  %v3434 = vsel %vm1376, %v3424, -inf
  %v3435 = vmax.f32 %v3428, %v3434
  %v3436 = vsel %vm1376, %v3425, -inf
  %v3437 = vmax.f32 %v3429, %v3436
  %v3438 = vmax.f32 %v3431, %v3433
  %v3439 = vmax.f32 %v3435, %v3437
  %v3440 = vmax.f32 %v3438, %v3439
  %v3442 = vcombine.high %v3440, %v3440
  %v3444 = vunpack.c.l.s4 1966171168
  %v3445 = vunpack.c.0.s8 %v3444
  %v3446 = vlaneseq
  %v3447 = vshrl.u32 %v3446, 7
  %v3448 = vsub.s32 %v3445, %v3447
  %v3449 = vrot.slane %v3440, %v3448
  %v3451 = vunpack.c.l.s4 1966171168
  %v3452 = vunpack.c.0.s8 %v3451
  %v3453 = vlaneseq
  %v3454 = vshrl.u32 %v3453, 7
  %v3455 = vsub.s32 %v3452, %v3454
  %v3456 = vrot.slane %v3442, %v3455
  %v3457 = vcombine.high %v3449, %v3449
  %v3458 = vcombine.high %v3456, %v3456
  %v3460 = vunpack.c.l.s4 1966171168
  %v3461 = vunpack.c.0.s8 %v3460
  %v3462 = vlaneseq
  %v3463 = vshrl.u32 %v3462, 7
  %v3464 = vsub.s32 %v3461, %v3463
  %v3465 = vrot.slane %v3449, %v3464
  %v3467 = vunpack.c.l.s4 1966171168
  %v3468 = vunpack.c.0.s8 %v3467
  %v3469 = vlaneseq
  %v3470 = vshrl.u32 %v3469, 7
  %v3471 = vsub.s32 %v3468, %v3470
  %v3472 = vrot.slane %v3456, %v3471
  %v3474 = vunpack.c.l.s4 1966171168
  %v3475 = vunpack.c.0.s8 %v3474
  %v3476 = vlaneseq
  %v3477 = vshrl.u32 %v3476, 7
  %v3478 = vsub.s32 %v3475, %v3477
  %v3479 = vrot.slane %v3457, %v3478
  %v3481 = vunpack.c.l.s4 1966171168
  %v3482 = vunpack.c.0.s8 %v3481
  %v3483 = vlaneseq
  %v3484 = vshrl.u32 %v3483, 7
  %v3485 = vsub.s32 %v3482, %v3484
  %v3486 = vrot.slane %v3458, %v3485
  %v3487 = vcombine.high %v3465, %v3465
  %v3488 = vcombine.high %v3472, %v3472
  %v3489 = vcombine.high %v3479, %v3479
  %v3490 = vcombine.high %v3486, %v3486
  %v3491 = vlaneseq
  %v3492 = vshrl.u32 %v3491, 7
  %v3493 = vsub.s32 0, %v3492
  %v3494 = vrot.slane %v3465, %v3493
  %v3495 = vlaneseq
  %v3496 = vshrl.u32 %v3495, 7
  %v3497 = vsub.s32 0, %v3496
  %v3498 = vrot.slane %v3479, %v3497
  %v3499 = vlaneseq
  %v3500 = vshrl.u32 %v3499, 7
  %v3501 = vsub.s32 0, %v3500
  %v3502 = vrot.slane %v3487, %v3501
  %v3503 = vlaneseq
  %v3504 = vshrl.u32 %v3503, 7
  %v3505 = vsub.s32 0, %v3504
  %v3506 = vrot.slane %v3489, %v3505
  %v3507 = vlaneseq
  %v3508 = vshrl.u32 %v3507, 7
  %v3509 = vsub.s32 0, %v3508
  %v3510 = vrot.slane %v3472, %v3509
  %v3511 = vlaneseq
  %v3512 = vshrl.u32 %v3511, 7
  %v3513 = vsub.s32 0, %v3512
  %v3514 = vrot.slane %v3486, %v3513
  %v3515 = vlaneseq
  %v3516 = vshrl.u32 %v3515, 7
  %v3517 = vsub.s32 0, %v3516
  %v3518 = vrot.slane %v3488, %v3517
  %v3519 = vlaneseq
  %v3520 = vshrl.u32 %v3519, 7
  %v3521 = vsub.s32 0, %v3520
  %v3522 = vrot.slane %v3490, %v3521
  %v3531 = vadd.f32 %v3494, %v3328
  %v3532 = vadd.f32 %v3498, %v3335
  %v3533 = vadd.f32 %v3502, %v3342
  %v3534 = vadd.f32 %v3506, %v3349
  %v3535 = vadd.f32 %v3510, %v3356
  %v3536 = vadd.f32 %v3514, %v3363
  %v3537 = vadd.f32 %v3518, %v3370
  %v3538 = vadd.f32 %v3522, %v3377
  %v3539 = vsel %vm1376, %v3531, -inf
  %v3540 = vsel %vm1376, %v3532, -inf
  %v3541 = vsel %vm1376, %v3533, -inf
  %v3542 = vsel %vm1376, %v3534, -inf
  %v3543 = vsel %vm1376, %v3535, -inf
  %v3544 = vmax.f32 %v3539, %v3543
  %v3545 = vsel %vm1376, %v3536, -inf
  %v3546 = vmax.f32 %v3540, %v3545
  %v3547 = vsel %vm1376, %v3537, -inf
  %v3548 = vmax.f32 %v3541, %v3547
  %v3549 = vsel %vm1376, %v3538, -inf
  %v3550 = vmax.f32 %v3542, %v3549
  %v3551 = vmax.f32 %v3544, %v3546
  %v3552 = vmax.f32 %v3548, %v3550
  %v3553 = vmax.f32 %v3551, %v3552
  %v3555 = vcombine.high %v3553, %v3553
  %v3557 = vunpack.c.l.s4 1966171168
  %v3558 = vunpack.c.0.s8 %v3557
  %v3559 = vlaneseq
  %v3560 = vshrl.u32 %v3559, 7
  %v3561 = vsub.s32 %v3558, %v3560
  %v3562 = vrot.slane %v3553, %v3561
  %v3564 = vunpack.c.l.s4 1966171168
  %v3565 = vunpack.c.0.s8 %v3564
  %v3566 = vlaneseq
  %v3567 = vshrl.u32 %v3566, 7
  %v3568 = vsub.s32 %v3565, %v3567
  %v3569 = vrot.slane %v3555, %v3568
  %v3570 = vcombine.high %v3562, %v3562
  %v3571 = vcombine.high %v3569, %v3569
  %v3573 = vunpack.c.l.s4 1966171168
  %v3574 = vunpack.c.0.s8 %v3573
  %v3575 = vlaneseq
  %v3576 = vshrl.u32 %v3575, 7
  %v3577 = vsub.s32 %v3574, %v3576
  %v3578 = vrot.slane %v3562, %v3577
  %v3580 = vunpack.c.l.s4 1966171168
  %v3581 = vunpack.c.0.s8 %v3580
  %v3582 = vlaneseq
  %v3583 = vshrl.u32 %v3582, 7
  %v3584 = vsub.s32 %v3581, %v3583
  %v3585 = vrot.slane %v3569, %v3584
  %v3587 = vunpack.c.l.s4 1966171168
  %v3588 = vunpack.c.0.s8 %v3587
  %v3589 = vlaneseq
  %v3590 = vshrl.u32 %v3589, 7
  %v3591 = vsub.s32 %v3588, %v3590
  %v3592 = vrot.slane %v3570, %v3591
  %v3594 = vunpack.c.l.s4 1966171168
  %v3595 = vunpack.c.0.s8 %v3594
  %v3596 = vlaneseq
  %v3597 = vshrl.u32 %v3596, 7
  %v3598 = vsub.s32 %v3595, %v3597
  %v3599 = vrot.slane %v3571, %v3598
  %v3600 = vcombine.high %v3578, %v3578
  %v3601 = vcombine.high %v3585, %v3585
  %v3602 = vcombine.high %v3592, %v3592
  %v3603 = vcombine.high %v3599, %v3599
  %v3604 = vlaneseq
  %v3605 = vshrl.u32 %v3604, 7
  %v3606 = vsub.s32 0, %v3605
  %v3607 = vrot.slane %v3578, %v3606
  %v3608 = vlaneseq
  %v3609 = vshrl.u32 %v3608, 7
  %v3610 = vsub.s32 0, %v3609
  %v3611 = vrot.slane %v3592, %v3610
  %v3612 = vlaneseq
  %v3613 = vshrl.u32 %v3612, 7
  %v3614 = vsub.s32 0, %v3613
  %v3615 = vrot.slane %v3600, %v3614
  %v3616 = vlaneseq
  %v3617 = vshrl.u32 %v3616, 7
  %v3618 = vsub.s32 0, %v3617
  %v3619 = vrot.slane %v3602, %v3618
  %v3620 = vlaneseq
  %v3621 = vshrl.u32 %v3620, 7
  %v3622 = vsub.s32 0, %v3621
  %v3623 = vrot.slane %v3585, %v3622
  %v3624 = vlaneseq
  %v3625 = vshrl.u32 %v3624, 7
  %v3626 = vsub.s32 0, %v3625
  %v3627 = vrot.slane %v3599, %v3626
  %v3628 = vlaneseq
  %v3629 = vshrl.u32 %v3628, 7
  %v3630 = vsub.s32 0, %v3629
  %v3631 = vrot.slane %v3601, %v3630
  %v3632 = vlaneseq
  %v3633 = vshrl.u32 %v3632, 7
  %v3634 = vsub.s32 0, %v3633
  %v3635 = vrot.slane %v3603, %v3634
  %v3644 = vadd.f32 %v3607, %v3328
  %v3645 = vadd.f32 %v3611, %v3335
  %v3646 = vadd.f32 %v3615, %v3342
  %v3647 = vadd.f32 %v3619, %v3349
  %v3648 = vadd.f32 %v3623, %v3356
  %v3649 = vadd.f32 %v3627, %v3363
  %v3650 = vadd.f32 %v3631, %v3370
  %v3651 = vadd.f32 %v3635, %v3377
  %v3652 = vsel %vm1376, %v3644, -inf
  %v3653 = vsel %vm1376, %v3645, -inf
  %v3654 = vsel %vm1376, %v3646, -inf
  %v3655 = vsel %vm1376, %v3647, -inf
  %v3656 = vsel %vm1376, %v3648, -inf
  %v3657 = vmax.f32 %v3652, %v3656
  %v3658 = vsel %vm1376, %v3649, -inf
  %v3659 = vmax.f32 %v3653, %v3658
  %v3660 = vsel %vm1376, %v3650, -inf
  %v3661 = vmax.f32 %v3654, %v3660
  %v3662 = vsel %vm1376, %v3651, -inf
  %v3663 = vmax.f32 %v3655, %v3662
  %v3664 = vmax.f32 %v3657, %v3659
  %v3665 = vmax.f32 %v3661, %v3663
  %v3666 = vmax.f32 %v3664, %v3665
  %v3667 = vld [vmem:[%s1 + $0x1b0] sm:$0xf]
  %v3668 = vld [vmem:[%s1 + $0x1bc] sm:$0xf]
  %v3669 = vpack.c.bf16 %v3270, %v3270
  %v3670 = vld [vmem:[%s1 + $0x1c8] sm:$0xf]
  %v3671 = vld [vmem:[%s1 + $0x1d4] sm:$0xf]
  %v3672 = vpack.c.bf16 %v3440, %v3440
  %v3675 = vunpack.c.l.b16 %v3670
  %v3676 = vunpack.c.l.b16 %v3671
  %v3677 = vpack.c.b16 %v3676, %v3675
  %v3680 = vsel %vm1376, %v3672, 0
  %3682 = vmatprep.subr.bf16.mxu0 0
  %3683 = vmatpush1.bf16.msra.mxu0 %v3677
  %3684 = vmatprep.subr.bf16.mxu0 0
  %3685 = vmatpush1.bf16.msra.mxu0 0
  %3686 = vmatprep.subr.bf16.mxu0 0
  %3687 = vmatpush1.bf16.msra.mxu0 0
  %3688 = vmatprep.subr.bf16.mxu0 0
  %3689 = vmatpush1.bf16.msra.mxu0 0
  %3690 = vmatprep.subr.bf16.mxu0 0
  %3691 = vmatpush1.bf16.msra.mxu0 0
  %3692 = vmatprep.subr.bf16.mxu0 0
  %3693 = vmatpush1.bf16.msra.mxu0 0
  %3694 = vmatprep.subr.bf16.mxu0 0
  %3695 = vmatpush1.bf16.msra.mxu0 0
  %3696 = vmatprep.subr.bf16.mxu0 0
  %3697 = vmatpush1.bf16.msra.mxu0 0
  %3698 = vmatprep.subr.bf16.mxu0 0
  %3699 = vmatpush1.bf16.msra.mxu0 0
  %3700 = vmatprep.subr.bf16.mxu0 0
  %3701 = vmatpush1.bf16.msra.mxu0 0
  %3702 = vmatprep.subr.bf16.mxu0 0
  %3703 = vmatpush1.bf16.msra.mxu0 0
  %3704 = vmatprep.subr.bf16.mxu0 0
  %3705 = vmatpush1.bf16.msra.mxu0 0
  %3706 = vmatprep.subr.bf16.mxu0 0
  %3707 = vmatpush1.bf16.msra.mxu0 0
  %3708 = vmatprep.subr.bf16.mxu0 0
  %3709 = vmatpush1.bf16.msra.mxu0 0
  %3710 = vmatprep.subr.bf16.mxu0 0
  %3711 = vmatpush1.bf16.msra.mxu0 0
  %3712 = vmatprep.subr.bf16.mxu0 0
  %3713 = vmatpush1.bf16.msra.mxu0 0
  %3714 = vmatprep.mubr.bf16.mxu0 0
  %3715 = vmatmul.mubr.bf16.gmra.mrb[0].mxu0 %v3680
  %v3716 = vpop.f32.mrb[0].mxu0
  %v3717 = vadd.f32 0.0, %v3716
  %v3718 = vpop.f32.mrb[0].mxu0
  %v3719 = vpop.f32.mrb[0].mxu0
  %v3720 = vpop.f32.mrb[0].mxu0
  %3721 = vdwg.mxu0
  %v3724 = vunpack.c.l.b16 %v3667
  %v3725 = vunpack.c.l.b16 %v3668
  %v3726 = vpack.c.b16 %v3725, %v3724
  %v3729 = vsel %vm1376, %v3669, 0
  %3731 = vmatprep.subr.bf16.mxu0 0
  %3732 = vmatpush1.bf16.msra.mxu0 %v3726
  %3733 = vmatprep.subr.bf16.mxu0 0
  %3734 = vmatpush1.bf16.msra.mxu0 0
  %3735 = vmatprep.subr.bf16.mxu0 0
  %3736 = vmatpush1.bf16.msra.mxu0 0
  %3737 = vmatprep.subr.bf16.mxu0 0
  %3738 = vmatpush1.bf16.msra.mxu0 0
  %3739 = vmatprep.subr.bf16.mxu0 0
  %3740 = vmatpush1.bf16.msra.mxu0 0
  %3741 = vmatprep.subr.bf16.mxu0 0
  %3742 = vmatpush1.bf16.msra.mxu0 0
  %3743 = vmatprep.subr.bf16.mxu0 0
  %3744 = vmatpush1.bf16.msra.mxu0 0
  %3745 = vmatprep.subr.bf16.mxu0 0
  %3746 = vmatpush1.bf16.msra.mxu0 0
  %3747 = vmatprep.subr.bf16.mxu0 0
  %3748 = vmatpush1.bf16.msra.mxu0 0
  %3749 = vmatprep.subr.bf16.mxu0 0
  %3750 = vmatpush1.bf16.msra.mxu0 0
  %3751 = vmatprep.subr.bf16.mxu0 0
  %3752 = vmatpush1.bf16.msra.mxu0 0
  %3753 = vmatprep.subr.bf16.mxu0 0
  %3754 = vmatpush1.bf16.msra.mxu0 0
  %3755 = vmatprep.subr.bf16.mxu0 0
  %3756 = vmatpush1.bf16.msra.mxu0 0
  %3757 = vmatprep.subr.bf16.mxu0 0
  %3758 = vmatpush1.bf16.msra.mxu0 0
  %3759 = vmatprep.subr.bf16.mxu0 0
  %3760 = vmatpush1.bf16.msra.mxu0 0
  %3761 = vmatprep.subr.bf16.mxu0 0
  %3762 = vmatpush1.bf16.msra.mxu0 0
  %3763 = vmatprep.mubr.bf16.mxu0 0
  %3764 = vmatmul.mubr.bf16.gmra.mrb[0].mxu0 %v3729
  %v3765 = vpop.f32.mrb[0].mxu0
  %v3766 = vadd.f32 %v3717, %v3765
  %v3767 = vpop.f32.mrb[0].mxu0
  %v3768 = vpop.f32.mrb[0].mxu0
  %v3769 = vpop.f32.mrb[0].mxu0
  %3770 = vdwg.mxu0
  %v3771 = vld [vmem:[%s1 + $0x1e0] sm:$0xf]
  %v3772 = vld [vmem:[%s1 + $0x1ec] sm:$0xf]
  %v3773 = vpack.c.bf16 %v3553, %v3553
  %v3776 = vunpack.c.l.b16 %v3771
  %v3777 = vunpack.c.l.b16 %v3772
  %v3778 = vpack.c.b16 %v3777, %v3776
  %v3781 = vsel %vm1376, %v3773, 0
  %3783 = vmatprep.subr.bf16.mxu0 0
  %3784 = vmatpush1.bf16.msra.mxu0 %v3778
  %3785 = vmatprep.subr.bf16.mxu0 0
  %3786 = vmatpush1.bf16.msra.mxu0 0
  %3787 = vmatprep.subr.bf16.mxu0 0
  %3788 = vmatpush1.bf16.msra.mxu0 0
  %3789 = vmatprep.subr.bf16.mxu0 0
  %3790 = vmatpush1.bf16.msra.mxu0 0
  %3791 = vmatprep.subr.bf16.mxu0 0
  %3792 = vmatpush1.bf16.msra.mxu0 0
  %3793 = vmatprep.subr.bf16.mxu0 0
  %3794 = vmatpush1.bf16.msra.mxu0 0
  %3795 = vmatprep.subr.bf16.mxu0 0
  %3796 = vmatpush1.bf16.msra.mxu0 0
  %3797 = vmatprep.subr.bf16.mxu0 0
  %3798 = vmatpush1.bf16.msra.mxu0 0
  %3799 = vmatprep.subr.bf16.mxu0 0
  %3800 = vmatpush1.bf16.msra.mxu0 0
  %3801 = vmatprep.subr.bf16.mxu0 0
  %3802 = vmatpush1.bf16.msra.mxu0 0
  %3803 = vmatprep.subr.bf16.mxu0 0
  %3804 = vmatpush1.bf16.msra.mxu0 0
  %3805 = vmatprep.subr.bf16.mxu0 0
  %3806 = vmatpush1.bf16.msra.mxu0 0
  %3807 = vmatprep.subr.bf16.mxu0 0
  %3808 = vmatpush1.bf16.msra.mxu0 0
  %3809 = vmatprep.subr.bf16.mxu0 0
  %3810 = vmatpush1.bf16.msra.mxu0 0
  %3811 = vmatprep.subr.bf16.mxu0 0
  %3812 = vmatpush1.bf16.msra.mxu0 0
  %3813 = vmatprep.subr.bf16.mxu0 0
  %3814 = vmatpush1.bf16.msra.mxu0 0
  %3815 = vmatprep.mubr.bf16.mxu0 0
  %3816 = vmatmul.mubr.bf16.gmra.mrb[0].mxu0 %v3781
  %v3817 = vpop.f32.mrb[0].mxu0
  %v3818 = vadd.f32 0.0, %v3817
  %v3819 = vpop.f32.mrb[0].mxu0
  %v3820 = vpop.f32.mrb[0].mxu0
  %v3821 = vpop.f32.mrb[0].mxu0
  %3822 = vdwg.mxu0
  %v3823 = vadd.f32 %v3766, %v3818
  %v3824 = vld [vmem:[%s1 + $0x1f8] sm:$0xf]
  %v3825 = vld [vmem:[%s1 + $0x204] sm:$0xf]
  %v3826 = vpack.c.bf16 %v3666, %v3666
  %v3829 = vunpack.c.l.b16 %v3824
  %v3830 = vunpack.c.l.b16 %v3825
  %v3831 = vpack.c.b16 %v3830, %v3829
  %v3834 = vsel %vm1376, %v3826, 0
  %3836 = vmatprep.subr.bf16.mxu0 0
  %3837 = vmatpush1.bf16.msra.mxu0 %v3831
  %3838 = vmatprep.subr.bf16.mxu0 0
  %3839 = vmatpush1.bf16.msra.mxu0 0
  %3840 = vmatprep.subr.bf16.mxu0 0
  %3841 = vmatpush1.bf16.msra.mxu0 0
  %3842 = vmatprep.subr.bf16.mxu0 0
  %3843 = vmatpush1.bf16.msra.mxu0 0
  %3844 = vmatprep.subr.bf16.mxu0 0
  %3845 = vmatpush1.bf16.msra.mxu0 0
  %3846 = vmatprep.subr.bf16.mxu0 0
  %3847 = vmatpush1.bf16.msra.mxu0 0
  %3848 = vmatprep.subr.bf16.mxu0 0
  %3849 = vmatpush1.bf16.msra.mxu0 0
  %3850 = vmatprep.subr.bf16.mxu0 0
  %3851 = vmatpush1.bf16.msra.mxu0 0
  %3852 = vmatprep.subr.bf16.mxu0 0
  %3853 = vmatpush1.bf16.msra.mxu0 0
  %3854 = vmatprep.subr.bf16.mxu0 0
  %3855 = vmatpush1.bf16.msra.mxu0 0
  %3856 = vmatprep.subr.bf16.mxu0 0
  %3857 = vmatpush1.bf16.msra.mxu0 0
  %3858 = vmatprep.subr.bf16.mxu0 0
  %3859 = vmatpush1.bf16.msra.mxu0 0
  %3860 = vmatprep.subr.bf16.mxu0 0
  %3861 = vmatpush1.bf16.msra.mxu0 0
  %3862 = vmatprep.subr.bf16.mxu0 0
  %3863 = vmatpush1.bf16.msra.mxu0 0
  %3864 = vmatprep.subr.bf16.mxu0 0
  %3865 = vmatpush1.bf16.msra.mxu0 0
  %3866 = vmatprep.subr.bf16.mxu0 0
  %3867 = vmatpush1.bf16.msra.mxu0 0
  %3868 = vmatprep.mubr.bf16.mxu0 0
  %3869 = vmatmul.mubr.bf16.gmra.mrb[0].mxu0 %v3834
  %v3870 = vpop.f32.mrb[0].mxu0
  %v3871 = vadd.f32 0.0, %v3870
  %v3872 = vpop.f32.mrb[0].mxu0
  %v3873 = vpop.f32.mrb[0].mxu0
  %v3874 = vpop.f32.mrb[0].mxu0
  %3875 = vdwg.mxu0
  %v3876 = vadd.f32 %v3823, %v3871
  %v3877 = vld [vmem:[%s3 + $0x48] sm:$0x1]
  %v3878 = vlaneseq
  %v3879 = vshrl.u32 %v3878, 7
  %v3880 = vsub.s32 0, %v3879
  %v3881 = vrot.slane %v3877, %v3880
  %v3882 = vadd.f32 %v3876, %v3881
  %v3883 = vxor.u32 %v3882, 2147483648
  %v3884 = vmul.f32 %v3883, 1.442695
  %v3885 = vpow.pop %v3884
  %v3886 = vadd.f32 %v3885, 1.0
  %v3887 = vrcp.pop %v3886
  %v3888 = vmul.f32 1.0, %v3887
  %v3889 = vmul.f32 %v3882, %v3888
  %v3890 = vld [vmem:[%s1 + $0x210] sm:$0xf]
  %v3891 = vld [vmem:[%s1 + $0x21c] sm:$0xf]
  %v3892 = vld [vmem:[%s3 + $0x50] sm:$0x1]
  %v3893 = vlaneseq
  %v3894 = vshrl.u32 %v3893, 7
  %v3895 = vsub.s32 0, %v3894
  %v3896 = vrot.slane %v3892, %v3895
  %v3899 = vunpack.c.l.b16 %v3890
  %v3900 = vunpack.c.l.b16 %v3891
  %v3901 = vpack.c.b16 %v3900, %v3899
  %3903 = vmatprep.subr.bf16.mxu0 0
  %3904 = vmatpush1.bf16.msra.mxu0 %v3901
  %3905 = vmatprep.subr.bf16.mxu0 0
  %3906 = vmatpush1.bf16.msra.mxu0 0
  %3907 = vmatprep.subr.bf16.mxu0 0
  %3908 = vmatpush1.bf16.msra.mxu0 0
  %3909 = vmatprep.subr.bf16.mxu0 0
  %3910 = vmatpush1.bf16.msra.mxu0 0
  %3911 = vmatprep.subr.bf16.mxu0 0
  %3912 = vmatpush1.bf16.msra.mxu0 0
  %3913 = vmatprep.subr.bf16.mxu0 0
  %3914 = vmatpush1.bf16.msra.mxu0 0
  %3915 = vmatprep.subr.bf16.mxu0 0
  %3916 = vmatpush1.bf16.msra.mxu0 0
  %3917 = vmatprep.subr.bf16.mxu0 0
  %3918 = vmatpush1.bf16.msra.mxu0 0
  %3919 = vmatprep.subr.bf16.mxu0 0
  %3920 = vmatpush1.bf16.msra.mxu0 0
  %3921 = vmatprep.subr.bf16.mxu0 0
  %3922 = vmatpush1.bf16.msra.mxu0 0
  %3923 = vmatprep.subr.bf16.mxu0 0
  %3924 = vmatpush1.bf16.msra.mxu0 0
  %3925 = vmatprep.subr.bf16.mxu0 0
  %3926 = vmatpush1.bf16.msra.mxu0 0
  %3927 = vmatprep.subr.bf16.mxu0 0
  %3928 = vmatpush1.bf16.msra.mxu0 0
  %3929 = vmatprep.subr.bf16.mxu0 0
  %3930 = vmatpush1.bf16.msra.mxu0 0
  %3931 = vmatprep.subr.bf16.mxu0 0
  %3932 = vmatpush1.bf16.msra.mxu0 0
  %3933 = vmatprep.subr.bf16.mxu0 0
  %3934 = vmatpush1.bf16.msra.mxu0 0
  %3935 = vmatprep.mubr.bf16.mxu0 0
  %3936 = vmatmul.mubr.bf16.gmra.mrb[0].mxu0 %v2630
  %v3937 = vpop.f32.mrb[0].mxu0
  %v3938 = vadd.f32 %v3896, %v3937
  %v3939 = vpop.f32.mrb[0].mxu0
  %v3940 = vpop.f32.mrb[0].mxu0
  %v3941 = vadd.f32 %v3896, %v3940
  %v3942 = vpop.f32.mrb[0].mxu0
  %3943 = vmatprep.mubr.bf16.mxu0 0
  %3944 = vmatmul.mubr.bf16.gmra.mrb[0].mxu0 %v2633
  %v3945 = vpop.f32.mrb[0].mxu0
  %v3946 = vadd.f32 %v3896, %v3945
  %v3947 = vpop.f32.mrb[0].mxu0
  %v3948 = vpop.f32.mrb[0].mxu0
  %v3949 = vadd.f32 %v3896, %v3948
  %v3950 = vpop.f32.mrb[0].mxu0
  %3951 = vdwg.mxu0
  %v3952 = vld [vmem:[%s1 + $0x228] sm:$0xf]
  %v3953 = vld [vmem:[%s1 + $0x234] sm:$0xf]
  %v3954 = vld [vmem:[%s1 + $0x240] sm:$0xf]
  %v3955 = vld [vmem:[%s1 + $0x24c] sm:$0xf]
  %v3956 = vpack.c.bf16 %v3889, %v3889
  %v3957 = vld [vmem:[%s3 + $0x58] sm:$0x1]
  %v3958 = vlaneseq
  %v3959 = vshrl.u32 %v3958, 7
  %v3960 = vsub.s32 0, %v3959
  %v3961 = vrot.slane %v3957, %v3960
  %v3966 = vunpack.c.l.b16 %v3952
  %v3967 = vunpack.c.l.b16 %v3953
  %v3968 = vunpack.c.l.b16 %v3954
  %v3969 = vunpack.c.l.b16 %v3955
  %v3970 = vpack.c.b16 %v3967, %v3966
  %v3971 = vpack.c.b16 %v3969, %v3968
  %v3975 = vsel %vm1643, %v3956, 0
  %3977 = vmatprep.subr.bf16.mxu0 0
  %3978 = vmatpush1.bf16.msra.mxu0 %v3970
  %3979 = vmatprep.subr.bf16.mxu0 0
  %3980 = vmatpush1.bf16.msra.mxu0 %v3971
  %3981 = vmatprep.subr.bf16.mxu0 0
  %3982 = vmatpush1.bf16.msra.mxu0 0
  %3983 = vmatprep.subr.bf16.mxu0 0
  %3984 = vmatpush1.bf16.msra.mxu0 0
  %3985 = vmatprep.subr.bf16.mxu0 0
  %3986 = vmatpush1.bf16.msra.mxu0 0
  %3987 = vmatprep.subr.bf16.mxu0 0
  %3988 = vmatpush1.bf16.msra.mxu0 0
  %3989 = vmatprep.subr.bf16.mxu0 0
  %3990 = vmatpush1.bf16.msra.mxu0 0
  %3991 = vmatprep.subr.bf16.mxu0 0
  %3992 = vmatpush1.bf16.msra.mxu0 0
  %3993 = vmatprep.subr.bf16.mxu0 0
  %3994 = vmatpush1.bf16.msra.mxu0 0
  %3995 = vmatprep.subr.bf16.mxu0 0
  %3996 = vmatpush1.bf16.msra.mxu0 0
  %3997 = vmatprep.subr.bf16.mxu0 0
  %3998 = vmatpush1.bf16.msra.mxu0 0
  %3999 = vmatprep.subr.bf16.mxu0 0
  %4000 = vmatpush1.bf16.msra.mxu0 0
  %4001 = vmatprep.subr.bf16.mxu0 0
  %4002 = vmatpush1.bf16.msra.mxu0 0
  %4003 = vmatprep.subr.bf16.mxu0 0
  %4004 = vmatpush1.bf16.msra.mxu0 0
  %4005 = vmatprep.subr.bf16.mxu0 0
  %4006 = vmatpush1.bf16.msra.mxu0 0
  %4007 = vmatprep.subr.bf16.mxu0 0
  %4008 = vmatpush1.bf16.msra.mxu0 0
  %4009 = vmatprep.mubr.bf16.mxu0 0
  %4010 = vmatmul.mubr.bf16.gmra.mrb[0].mxu0 %v3975
  %v4011 = vpop.f32.mrb[0].mxu0
  %v4012 = vadd.f32 %v3961, %v4011
  %v4013 = vpop.f32.mrb[0].mxu0
  %v4014 = vpop.f32.mrb[0].mxu0
  %v4015 = vpop.f32.mrb[0].mxu0
  %4016 = vdwg.mxu0
  %v4017 = vxor.u32 %v3938, 2147483648
  %v4018 = vxor.u32 %v3941, 2147483648
  %v4019 = vxor.u32 %v3946, 2147483648
  %v4020 = vxor.u32 %v3949, 2147483648
  %v4021 = vmul.f32 %v4017, 1.442695
  %v4022 = vpow.pop %v4021
  %v4023 = vmul.f32 %v4018, 1.442695
  %v4024 = vpow.pop %v4023
  %v4025 = vmul.f32 %v4019, 1.442695
  %v4026 = vpow.pop %v4025
  %v4027 = vmul.f32 %v4020, 1.442695
  %v4028 = vpow.pop %v4027
  %v4029 = vadd.f32 %v4022, 1.0
  %v4030 = vadd.f32 %v4024, 1.0
  %v4031 = vadd.f32 %v4026, 1.0
  %v4032 = vadd.f32 %v4028, 1.0
  %v4033 = vrcp.pop %v4029
  %v4034 = vmul.f32 1.0, %v4033
  %v4035 = vrcp.pop %v4030
  %v4036 = vmul.f32 1.0, %v4035
  %v4037 = vrcp.pop %v4031
  %v4038 = vmul.f32 1.0, %v4037
  %v4039 = vrcp.pop %v4032
  %v4040 = vmul.f32 1.0, %v4039
  %v4041 = vxor.u32 %v4012, 2147483648
  %v4042 = vmul.f32 %v4041, 1.442695
  %v4043 = vpow.pop %v4042
  %v4044 = vadd.f32 %v4043, 1.0
  %v4045 = vrcp.pop %v4044
  %v4046 = vmul.f32 1.0, %v4045
  %v4047 = vld [vmem:[%s3 + $0x60] sm:$0x1]
  %v4048 = vlaneseq
  %v4049 = vshrl.u32 %v4048, 7
  %v4050 = vsub.s32 0, %v4049
  %v4051 = vrot.slane %v4047, %v4050
  %v4052 = vmul.f32 %v4034, %v4051
  %v4053 = vmul.f32 %v4036, %v4051
  %v4054 = vmul.f32 %v4038, %v4051
  %v4055 = vmul.f32 %v4040, %v4051
  %v4056 = vld [vmem:[%s3 + $0x68] sm:$0x1]
  %v4057 = vlaneseq
  %v4058 = vshrl.u32 %v4057, 7
  %v4059 = vsub.s32 0, %v4058
  %v4060 = vrot.slane %v4056, %v4059
  %v4061 = vadd.f32 %v4052, %v4060
  %v4062 = vadd.f32 %v4053, %v4060
  %v4063 = vadd.f32 %v4054, %v4060
  %v4064 = vadd.f32 %v4055, %v4060
  %v4065 = vmul.f32 %v4061, %v4034
  %v4066 = vmul.f32 %v4062, %v4036
  %v4067 = vmul.f32 %v4063, %v4038
  %v4068 = vmul.f32 %v4064, %v4040
  %v4069 = vld [vmem:[%s3 + $0x88] sm:$0xff]
  %v4070 = vld [vmem:[%s3 + $0x90] sm:$0xff]
  %v4071 = vld [vmem:[%s3 + $0x98] sm:$0xff]
  %v4072 = vld [vmem:[%s3 + $0xa0] sm:$0xff]
  %v4073 = vadd.f32 %v4065, %v4069
  %v4074 = vadd.f32 %v4066, %v4070
  %v4075 = vadd.f32 %v4067, %v4071
  %v4076 = vadd.f32 %v4068, %v4072
  %v4077 = vld [vmem:[%s3 + $0x70] sm:$0x1]
  %v4078 = vlaneseq
  %v4079 = vshrl.u32 %v4078, 7
  %v4080 = vsub.s32 0, %v4079
  %v4081 = vrot.slane %v4077, %v4080
  %v4082 = vmul.f32 %v4046, %v4081
  %v4083 = vld [vmem:[%s3 + $0x78] sm:$0x1]
  %v4084 = vlaneseq
  %v4085 = vshrl.u32 %v4084, 7
  %v4086 = vsub.s32 0, %v4085
  %v4087 = vrot.slane %v4083, %v4086
  %v4088 = vadd.f32 %v4082, %v4087
  %v4089 = vmul.f32 %v4088, %v4046
  %v4090 = vld [vmem:[%s3 + $0xa8] sm:$0xff]
  %v4091 = vadd.f32 %v4089, %v4090
  %4092 = vst [vmem:[%s4] sm:$0xff] 0.0
  %4093 = vst [vmem:[%s4 + $0x8] sm:$0xff] 0.0
  %4094 = vst [vmem:[%s4 + $0x10] sm:$0xff] 0.0
  %4095 = vst [vmem:[%s4 + $0x18] sm:$0xff] 0.0
  %4096 = vst [vmem:[%s4 + $0x20] sm:$0xff] 0.0
  %4097 = vst.msk [vmem:[%s4] sm:$0xff] %vm1376, %v4073
  %4098 = vst.msk [vmem:[%s4 + $0x8] sm:$0xff] %vm1376, %v4074
  %4099 = vst.msk [vmem:[%s4 + $0x10] sm:$0xff] %vm1376, %v4075
  %4100 = vst.msk [vmem:[%s4 + $0x18] sm:$0xff] %vm1376, %v4076
  %4105 = vrot.lane.b32.xlu0 %v3938, 16
  %v4106 = vpop.permute.xlu0 %4105
  %4107 = vrot.lane.b32.xlu0 %v3941, 16
  %v4108 = vpop.permute.xlu0 %4107
  %4109 = vrot.lane.b32.xlu0 %v3946, 16
  %v4110 = vpop.permute.xlu0 %4109
  %4111 = vrot.lane.b32.xlu0 %v3949, 16
  %v4112 = vpop.permute.xlu0 %4111
  %vm4117 = vcmask 261248
  %4118 = vst.msk [vmem:[%s4] sm:$0xff] %vm4117, %v4106
  %4119 = vst.msk [vmem:[%s4 + $0x8] sm:$0xff] %vm4117, %v4108
  %4120 = vst.msk [vmem:[%s4 + $0x10] sm:$0xff] %vm4117, %v4110
  %4121 = vst.msk [vmem:[%s4 + $0x18] sm:$0xff] %vm4117, %v4112
  %4122 = vst.msk [vmem:[%s4 + $0x20] sm:$0xff] %vm1376, %v4091
  %4124 = vrot.lane.b32.xlu0 %v4012, 16
  %v4125 = vpop.permute.xlu0 %4124
  %4127 = vst.msk [vmem:[%s4 + $0x20] sm:$0xff] %vm4117, %v4125
  // Predicated region
  $region18: #{forward.1} parent=0 // pred_check
    _
  $region19: #{forward.1} parent=0 // pred_check_branch
    %4129 = sbr.rel (0) target = $region21
  $region20: #{forward.1} parent=0 // pred_region
    _
  $region21: #{forward.1} parent=0 // pred_fallthru
    _
  // Predicated region
  $region22: #{forward.1} parent=0 // pred_check
    _
  $region23: #{forward.1} parent=0 // pred_check_branch
    %4131 = sbr.rel (0) target = $region25
  $region24: #{forward.1} parent=0 // pred_region
    _
  $region25: #{forward.1} parent=0 // pred_fallthru
    _

</llo_original>
